<compile_context>
chip_gen: v7x
topology: tpu7x:2x2x1
jax: 0.10.0
libtpu: 0.0.40
codegen_flags: <defaults>
</compile_context>

<pallas_src>
import numpy as np

import jax
import jax.numpy as jnp
from jax import lax
from jax.experimental import pallas as pl
from jax.experimental.pallas import tpu as pltpu


def _round_up(x, m):
    return (x + m - 1) // m * m


# ----------------------------------------------------------------------------
# Fused Pallas kernel (whole ETDS forward, one image-group per grid step)
# ----------------------------------------------------------------------------
def _make_fused_kernel(W, L, num_block):
    """W: image width (row stride in lanes), L: total lane width (G * H * W)."""

    def conv3x3(masks_ref, state, w_taps, bias, relu):
        # state: (Cin, L) f32, w_taps: (9, Cout, Cin) bf16 value, bias: (Cout, 1) f32.
        # One masked lane-roll (XLU) + one small MXU dot per tap; f32 accumulation.
        acc = None
        for ky in range(3):
            for kx in range(3):
                t = ky * 3 + kx
                off = (ky - 1) * W + (kx - 1)
                if off == 0:
                    xt = state                                   # center tap: mask is all-ones
                else:
                    # shifted[p] = state[p + off]; wrap-around taps are zeroed by the mask
                    xt = pltpu.roll(state, shift=(-off) % L, axis=1) * masks_ref[t]
                c = jnp.dot(w_taps[t], xt.astype(jnp.bfloat16),
                            preferred_element_type=jnp.float32)
                acc = c if acc is None else acc + c
        y = acc + bias
        return jnp.maximum(y, 0.0) if relu else y

    def kernel(masks_ref, x_ref, w0_ref, b0_ref, wb_ref, bb_ref, wl_ref, bl_ref,
               sum_ref, res_ref):
        # first layer: conv_first | conv_residual_first fused over state [x ; r], ReLU
        state = conv3x3(masks_ref, x_ref[0], w0_ref[...], b0_ref[...], True)

        # residual blocks: one merged block-structured conv per block; state stays in VMEM
        def block_body(i, s):
            return conv3x3(masks_ref, s, wb_ref[i], bb_ref[i], True)

        state = lax.fori_loop(0, num_block, block_body, state)

        # last layer: conv_last | conv_residual_last, no activation
        y = conv3x3(masks_ref, state, wl_ref[...], bl_ref[...], False)
        half = y.shape[0] // 2                 # aligned (multiple of 8) split
        x_last = y[:half]
        r_last = y[half:]
        sum_ref[0] = x_last + r_last           # pixel-shuffle is linear -> sum first
        res_ref[0] = r_last

    return kernel


def _fused_etds_pallas(x_g, masks, w0, b0, wb, bb, wl, bl, W, num_block):
    num_groups, Cin_pad, L = x_g.shape
    Cs = w0.shape[1]
    two_up2p = wl.shape[1]
    up2_pad = two_up2p // 2

    flops = 2 * num_groups * L * 9 * (Cin_pad * Cs + num_block * Cs * Cs + Cs * two_up2p)
    bytes_accessed = (4 * (x_g.size + masks.size + b0.size + bb.size + bl.size
                           + 2 * num_groups * up2_pad * L)
                      + 2 * (w0.size + wb.size + wl.size))

    return pl.pallas_call(
        _make_fused_kernel(W, L, num_block),
        out_shape=(jax.ShapeDtypeStruct((num_groups, up2_pad, L), jnp.float32),
                   jax.ShapeDtypeStruct((num_groups, up2_pad, L), jnp.float32)),
        grid=(num_groups,),
        in_specs=[
            pl.BlockSpec((9, 1, L), lambda n: (0, 0, 0)),          # tap padding masks
            pl.BlockSpec((1, Cin_pad, L), lambda n: (n, 0, 0)),    # input image group
            pl.BlockSpec(w0.shape, lambda n: (0, 0, 0)),           # first-layer taps (bf16)
            pl.BlockSpec(b0.shape, lambda n: (0, 0)),
            pl.BlockSpec(wb.shape, lambda n: (0, 0, 0, 0)),        # block taps (bf16)
            pl.BlockSpec(bb.shape, lambda n: (0, 0, 0)),
            pl.BlockSpec(wl.shape, lambda n: (0, 0, 0)),           # last-layer taps (bf16)
            pl.BlockSpec(bl.shape, lambda n: (0, 0)),
        ],
        out_specs=(pl.BlockSpec((1, up2_pad, L), lambda n: (n, 0, 0)),
                   pl.BlockSpec((1, up2_pad, L), lambda n: (n, 0, 0))),
        compiler_params=pltpu.CompilerParams(
            dimension_semantics=("parallel",)),
        cost_estimate=pl.CostEstimate(flops=flops, transcendentals=0,
                                      bytes_accessed=bytes_accessed),
    )(masks, x_g, w0, b0, wb, bb, wl, bl)


# ----------------------------------------------------------------------------
# Host-side helpers: weight packing, masks, pixel shuffle
# ----------------------------------------------------------------------------
def _hwio_to_taps(w):
    """(3,3,Ci,Co) HWIO -> (9, Co, Ci), tap t = ky*3 + kx."""
    return jnp.transpose(w, (0, 1, 3, 2)).reshape(9, w.shape[3], w.shape[2])


def _make_tap_masks(H, W):
    """(9, 1, H*W) f32 masks implementing the implicit zero padding of a 3x3 conv."""
    hh, ww = np.meshgrid(np.arange(H), np.arange(W), indexing="ij")
    hh = hh.reshape(-1)
    ww = ww.reshape(-1)
    masks = np.zeros((9, 1, H * W), np.float32)
    t = 0
    for dy in range(3):
        for dx in range(3):
            valid = ((hh + dy - 1 >= 0) & (hh + dy - 1 < H)
                     & (ww + dx - 1 >= 0) & (ww + dx - 1 < W))
            masks[t, 0] = valid.astype(np.float32)
            t += 1
    return jnp.asarray(masks)


def _pixel_shuffle_chw_flat(y, H, W, r):
    """(N, C*r*r, H*W) channel-major -> NCHW (N, C, H*r, W*r) (== nn.PixelShuffle)."""
    N, Crr, _ = y.shape
    C = Crr // (r * r)
    y = y.reshape(N, C, r, r, H, W)
    y = jnp.transpose(y, (0, 1, 4, 2, 5, 3))
    return y.reshape(N, C, H * r, W * r)


# ----------------------------------------------------------------------------
# ETDS forward (Pallas)
# ----------------------------------------------------------------------------
def etds_forward(params, inp_nchw, upscale):
    """Returns (x + r, r) in NCHW, matching ETDS.forward."""
    N, Cin, H, W = inp_nchw.shape
    HW = H * W
    F = params["conv_first_w"].shape[-1]
    R = params["conv_res_first_w"].shape[-1]
    num_block = len(params["blocks"])
    up2 = params["conv_last_w"].shape[-1]

    Cin_pad = _round_up(Cin, 8)
    Cs = _round_up(F + R, 8)          # concatenated state channels [x ; r]
    up2_pad = _round_up(up2, 8)

    f32 = jnp.float32
    bf16 = jnp.bfloat16

    # ---- first layer: rows 0..F-1 = conv_first, rows F..F+R-1 = conv_residual_first
    w0 = jnp.zeros((3, 3, Cin_pad, Cs), f32)
    w0 = w0.at[:, :, :Cin, :F].set(params["conv_first_w"])
    w0 = w0.at[:, :, :Cin, F:F + R].set(params["conv_res_first_w"])
    b0 = jnp.zeros((Cs,), f32)
    b0 = b0.at[:F].set(params["conv_first_b"])
    b0 = b0.at[F:F + R].set(params["conv_res_first_b"])

    # ---- residual blocks: merged block-structured weight over state [x ; r]
    #   x_new = relu(backbone(x) + add_res(r) + bb_b + add_b), r_new = relu(res(r) + res_b)
    # (padded state channels keep zero weights/bias so they stay exactly zero)
    wbs, bbs = [], []
    for blk in params["blocks"]:
        wbi = jnp.zeros((3, 3, Cs, Cs), f32)
        wbi = wbi.at[:, :, :F, :F].set(blk["bb_w"])              # x -> x
        wbi = wbi.at[:, :, F:F + R, :F].set(blk["add_w"])        # r -> x
        wbi = wbi.at[:, :, F:F + R, F:F + R].set(blk["res_w"])   # r -> r
        bbi = jnp.zeros((Cs,), f32)
        bbi = bbi.at[:F].set(blk["bb_b"] + blk["add_b"])
        bbi = bbi.at[F:F + R].set(blk["res_b"])
        wbs.append(_hwio_to_taps(wbi))
        bbs.append(bbi)
    wb = jnp.stack(wbs).astype(bf16)                   # (num_block, 9, Cs, Cs)
    bb = jnp.stack(bbs).reshape(num_block, Cs, 1)      # f32

    # ---- last layer: rows [0,up2) = conv_last(x), rows [up2_pad, up2_pad+up2) = res_last(r)
    wl = jnp.zeros((3, 3, Cs, 2 * up2_pad), f32)
    wl = wl.at[:, :, :F, :up2].set(params["conv_last_w"])
    wl = wl.at[:, :, F:F + R, up2_pad:up2_pad + up2].set(params["conv_res_last_w"])
    bl = jnp.zeros((2 * up2_pad,), f32)
    bl = bl.at[:up2].set(params["conv_last_b"])
    bl = bl.at[up2_pad:up2_pad + up2].set(params["conv_res_last_b"])

    w0_taps = _hwio_to_taps(w0).astype(bf16)           # (9, Cs, Cin_pad)
    wl_taps = _hwio_to_taps(wl).astype(bf16)           # (9, 2*up2_pad, Cs)
    b0m = b0.reshape(Cs, 1)
    blm = bl.reshape(2 * up2_pad, 1)

    # ---- lane-axis image batching: G images per grid step, grid kept even when possible
    if N % 2 == 0 and N >= 2:
        G = N // 2            # grid length 2 -> both v7x TensorCores get equal shares
    else:
        G = 1
    num_groups = N // G
    L = G * HW
    masks = jnp.tile(_make_tap_masks(H, W), (1, 1, G))  # (9, 1, G*HW)

    # NCHW -> channel-major, lane-dense groups (num_groups, Cin_pad, G*HW)
    x_flat = inp_nchw.reshape(N, Cin, HW).astype(f32)
    if Cin_pad > Cin:
        x_flat = jnp.pad(x_flat, ((0, 0), (0, Cin_pad - Cin), (0, 0)))
    x_g = (x_flat.reshape(num_groups, G, Cin_pad, HW)
           .transpose(0, 2, 1, 3).reshape(num_groups, Cin_pad, L))

    sum_y, r_y = _fused_etds_pallas(x_g, masks, w0_taps, b0m, wb, bb, wl_taps, blm,
                                    W, num_block)

    def ungroup(y):
        return (y.reshape(num_groups, up2_pad, G, HW)
                .transpose(0, 2, 1, 3).reshape(N, up2_pad, HW))

    out = _pixel_shuffle_chw_flat(ungroup(sum_y)[:, :up2], H, W, upscale)
    r_out = _pixel_shuffle_chw_flat(ungroup(r_y)[:, :up2], H, W, upscale)
    return out, r_out


# ----------------------------------------------------------------------------
# Pure-JAX reference used only to validate the Pallas result.  Its convs use the
# same bf16-operand / f32-accumulate precision as the kernel's MXU dots, so the
# comparison tolerance only has to absorb f32 accumulation-order differences.
# ----------------------------------------------------------------------------
def _conv_ref(x, w, b):
    y = lax.conv_general_dilated(
        x.astype(jnp.bfloat16), w.astype(jnp.bfloat16),
        window_strides=(1, 1), padding=((1, 1), (1, 1)),
        dimension_numbers=("NHWC", "HWIO", "NHWC"),
        preferred_element_type=jnp.float32)
    return y + b


def _pixel_shuffle_nhwc(x, r):
    N, H, W, Crr = x.shape
    C = Crr // (r * r)
    x = x.reshape(N, H, W, C, r, r)
    x = jnp.transpose(x, (0, 1, 4, 2, 5, 3))
    return x.reshape(N, H * r, W * r, C)


def etds_forward_ref(params, inp_nchw, upscale):
    x_in = jnp.transpose(inp_nchw, (0, 2, 3, 1))
    x = jax.nn.relu(_conv_ref(x_in, params["conv_first_w"], params["conv_first_b"]))
    r = jax.nn.relu(_conv_ref(x_in, params["conv_res_first_w"], params["conv_res_first_b"]))
    for blk in params["blocks"]:
        x, r = (jax.nn.relu(_conv_ref(x, blk["bb_w"], blk["bb_b"])
                            + _conv_ref(r, blk["add_w"], blk["add_b"])),
                jax.nn.relu(_conv_ref(r, blk["res_w"], blk["res_b"])))
    x = _pixel_shuffle_nhwc(_conv_ref(x, params["conv_last_w"], params["conv_last_b"]), upscale)
    r = _pixel_shuffle_nhwc(_conv_ref(r, params["conv_res_last_w"], params["conv_res_last_b"]), upscale)
    out = x + r
    return jnp.transpose(out, (0, 3, 1, 2)), jnp.transpose(r, (0, 3, 1, 2))


# ----------------------------------------------------------------------------
# Deterministic parameter construction (shapes from the module's __init__).
# NOTE: ETDS.init_weights fills the residual convs with identity/zeros; here all
# parameters get small random values so every conv path is exercised — the forward
# semantics are unchanged.
# ----------------------------------------------------------------------------
def init_params(key, num_in_ch, num_out_ch, upscale, num_block, num_feat,
                num_residual_feat):
    assert num_feat > num_residual_feat >= num_in_ch and num_out_ch == num_in_ch
    F_ = num_feat - num_residual_feat           # backbone feature count
    R_ = num_residual_feat
    up2 = num_out_ch * upscale ** 2

    def conv_params(key, cin, cout, scale=0.1):
        kw, kb = jax.random.split(key)
        w = scale * jax.random.normal(kw, (3, 3, cin, cout), jnp.float32)
        b = scale * jax.random.normal(kb, (cout,), jnp.float32)
        return w, b

    keys = jax.random.split(key, 4 + 3 * num_block)
    params = {}
    params["conv_first_w"], params["conv_first_b"] = conv_params(keys[0], num_in_ch, F_)
    params["conv_res_first_w"], params["conv_res_first_b"] = conv_params(keys[1], num_in_ch, R_)
    blocks = []
    for i in range(num_block):
        k0, k1, k2 = keys[2 + 3 * i: 5 + 3 * i]
        bb_w, bb_b = conv_params(k0, F_, F_)
        res_w, res_b = conv_params(k1, R_, R_)
        add_w, add_b = conv_params(k2, R_, F_)
        blocks.append(dict(bb_w=bb_w, bb_b=bb_b, res_w=res_w, res_b=res_b,
                           add_w=add_w, add_b=add_b))
    params["blocks"] = blocks
    params["conv_last_w"], params["conv_last_b"] = conv_params(keys[-2], F_, up2)
    params["conv_res_last_w"], params["conv_res_last_b"] = conv_params(keys[-1], R_, up2)
    return params


# ----------------------------------------------------------------------------
if __name__ == "__main__":
    num_in_ch = 3
    num_out_ch = 3
    upscale = 2
    num_block = 2
    num_feat = 16
    num_residual_feat = 4
    N, H, W = 4, 16, 16          # 4 images -> 2 groups of 2 (even parallel grid, 512 lanes)

    key = jax.random.PRNGKey(0)
    key_p, key_x = jax.random.split(key)
    params = init_params(key_p, num_in_ch, num_out_ch, upscale, num_block,
                         num_feat, num_residual_feat)
    x = jax.random.normal(key_x, (N, num_in_ch, H, W), jnp.float32)

    fwd = jax.jit(etds_forward, static_argnums=(2,))
    out, r = fwd(params, x, upscale)
    out = jax.block_until_ready(out)
    r = jax.block_until_ready(r)

    # sanity check against a precision-matched pure-JAX reference
    out_ref, r_ref = etds_forward_ref(params, x, upscale)
    assert out.shape == (N, num_out_ch, H * upscale, W * upscale)
    assert r.shape == (N, num_out_ch, H * upscale, W * upscale)
    assert jnp.allclose(out, out_ref, rtol=2e-3, atol=2e-3), "output mismatch"
    assert jnp.allclose(r, r_ref, rtol=2e-3, atol=2e-3), "residual mismatch"

    print("KERNEL_OK")
</pallas_src>

<mosaic_0001>
module attributes {stable_mosaic.version = 11 : i64} {
  func.func @kernel(%arg0: i32, %arg1: memref<9x1x512xf32, #tpu.memory_space<vmem>>, %arg2: memref<1x8x512xf32, #tpu.memory_space<vmem>>, %arg3: memref<9x16x8xbf16, #tpu.memory_space<vmem>>, %arg4: memref<16x1xf32, #tpu.memory_space<vmem>>, %arg5: memref<2x9x16x16xbf16, #tpu.memory_space<vmem>>, %arg6: memref<2x16x1xf32, #tpu.memory_space<vmem>>, %arg7: memref<9x32x16xbf16, #tpu.memory_space<vmem>>, %arg8: memref<32x1xf32, #tpu.memory_space<vmem>>, %arg9: memref<1x16x512xf32, #tpu.memory_space<vmem>>, %arg10: memref<1x16x512xf32, #tpu.memory_space<vmem>>) attributes {dimension_semantics = [#tpu.dimension_semantics<parallel>], iteration_bounds = array<i64: 2>, scalar_prefetch = 0 : i64, scratch_operands = 0 : i64, tpu.core_type = #tpu.core_type<tc>, window_params = [{pipeline_mode = #tpu.pipeline_mode<synchronous>, transform_indices = @transform_0, window_bounds = array<i64: 9, 1, 512>}, {transform_indices = @transform_1, window_bounds = array<i64: 1, 8, 512>}, {pipeline_mode = #tpu.pipeline_mode<synchronous>, transform_indices = @transform_2, window_bounds = array<i64: 9, 16, 8>}, {pipeline_mode = #tpu.pipeline_mode<synchronous>, transform_indices = @transform_3, window_bounds = array<i64: 16, 1>}, {pipeline_mode = #tpu.pipeline_mode<synchronous>, transform_indices = @transform_4, window_bounds = array<i64: 2, 9, 16, 16>}, {pipeline_mode = #tpu.pipeline_mode<synchronous>, transform_indices = @transform_5, window_bounds = array<i64: 2, 16, 1>}, {pipeline_mode = #tpu.pipeline_mode<synchronous>, transform_indices = @transform_6, window_bounds = array<i64: 9, 32, 16>}, {pipeline_mode = #tpu.pipeline_mode<synchronous>, transform_indices = @transform_7, window_bounds = array<i64: 32, 1>}, {transform_indices = @transform_8, window_bounds = array<i64: 1, 16, 512>}, {transform_indices = @transform_9, window_bounds = array<i64: 1, 16, 512>}]} {
    %c0 = arith.constant 0 : index
    %c0_0 = arith.constant 0 : index
    %c0_1 = arith.constant 0 : index
    %0 = vector.load %arg2[%c0, %c0_0, %c0_1] : memref<1x8x512xf32, #tpu.memory_space<vmem>>, vector<1x8x512xf32>
    %1 = vector.shape_cast %0 : vector<1x8x512xf32> to vector<8x512xf32>
    %c0_2 = arith.constant 0 : index
    %c0_3 = arith.constant 0 : index
    %c0_4 = arith.constant 0 : index
    %2 = vector.load %arg3[%c0_2, %c0_3, %c0_4] : memref<9x16x8xbf16, #tpu.memory_space<vmem>>, vector<9x16x8xbf16>
    %c0_5 = arith.constant 0 : index
    %c0_6 = arith.constant 0 : index
    %3 = vector.load %arg4[%c0_5, %c0_6] : memref<16x1xf32, #tpu.memory_space<vmem>>, vector<16x1xf32>
    %c17_i32 = arith.constant 17 : i32
    %4 = tpu.dynamic_rotate %1 by %c17_i32 dim 1 : vector<8x512xf32>, i32 -> vector<8x512xf32>
    %c0_7 = arith.constant 0 : index
    %c0_8 = arith.constant 0 : index
    %c0_9 = arith.constant 0 : index
    %5 = vector.load %arg1[%c0_7, %c0_8, %c0_9] : memref<9x1x512xf32, #tpu.memory_space<vmem>>, vector<1x1x512xf32>
    %6 = vector.shape_cast %5 : vector<1x1x512xf32> to vector<1x512xf32>
    %7 = vector.broadcast %6 : vector<1x512xf32> to vector<8x512xf32>
    %8 = arith.mulf %4, %7 : vector<8x512xf32>
    %9 = vector.extract_strided_slice %2 {offsets = [0, 0, 0], sizes = [1, 16, 8], strides = [1, 1, 1]} : vector<9x16x8xbf16> to vector<1x16x8xbf16>
    %10 = vector.shape_cast %9 : vector<1x16x8xbf16> to vector<16x8xbf16>
    %11 = arith.truncf %8 : vector<8x512xf32> to vector<8x512xbf16>
    %cst = arith.constant dense<0.000000e+00> : vector<16x512xf32>
    %12 = tpu.matmul %10, %11, %cst {dimension_numbers = #tpu.dot_dimension_numbers<[1], [0], [0], [1], [0, 0, 1, 1], [], []>} : vector<16x8xbf16>, vector<8x512xbf16>, vector<16x512xf32> -> vector<16x512xf32>
    %c16_i32 = arith.constant 16 : i32
    %13 = tpu.dynamic_rotate %1 by %c16_i32 dim 1 : vector<8x512xf32>, i32 -> vector<8x512xf32>
    %c1 = arith.constant 1 : index
    %c0_10 = arith.constant 0 : index
    %c0_11 = arith.constant 0 : index
    %14 = vector.load %arg1[%c1, %c0_10, %c0_11] : memref<9x1x512xf32, #tpu.memory_space<vmem>>, vector<1x1x512xf32>
    %15 = vector.shape_cast %14 : vector<1x1x512xf32> to vector<1x512xf32>
    %16 = vector.broadcast %15 : vector<1x512xf32> to vector<8x512xf32>
    %17 = arith.mulf %13, %16 : vector<8x512xf32>
    %18 = vector.extract_strided_slice %2 {offsets = [1, 0, 0], sizes = [1, 16, 8], strides = [1, 1, 1]} : vector<9x16x8xbf16> to vector<1x16x8xbf16>
    %19 = vector.shape_cast %18 : vector<1x16x8xbf16> to vector<16x8xbf16>
    %20 = arith.truncf %17 : vector<8x512xf32> to vector<8x512xbf16>
    %cst_12 = arith.constant dense<0.000000e+00> : vector<16x512xf32>
    %21 = tpu.matmul %19, %20, %cst_12 {dimension_numbers = #tpu.dot_dimension_numbers<[1], [0], [0], [1], [0, 0, 1, 1], [], []>} : vector<16x8xbf16>, vector<8x512xbf16>, vector<16x512xf32> -> vector<16x512xf32>
    %22 = arith.addf %12, %21 : vector<16x512xf32>
    %c15_i32 = arith.constant 15 : i32
    %23 = tpu.dynamic_rotate %1 by %c15_i32 dim 1 : vector<8x512xf32>, i32 -> vector<8x512xf32>
    %c2 = arith.constant 2 : index
    %c0_13 = arith.constant 0 : index
    %c0_14 = arith.constant 0 : index
    %24 = vector.load %arg1[%c2, %c0_13, %c0_14] : memref<9x1x512xf32, #tpu.memory_space<vmem>>, vector<1x1x512xf32>
    %25 = vector.shape_cast %24 : vector<1x1x512xf32> to vector<1x512xf32>
    %26 = vector.broadcast %25 : vector<1x512xf32> to vector<8x512xf32>
    %27 = arith.mulf %23, %26 : vector<8x512xf32>
    %28 = vector.extract_strided_slice %2 {offsets = [2, 0, 0], sizes = [1, 16, 8], strides = [1, 1, 1]} : vector<9x16x8xbf16> to vector<1x16x8xbf16>
    %29 = vector.shape_cast %28 : vector<1x16x8xbf16> to vector<16x8xbf16>
    %30 = arith.truncf %27 : vector<8x512xf32> to vector<8x512xbf16>
    %cst_15 = arith.constant dense<0.000000e+00> : vector<16x512xf32>
    %31 = tpu.matmul %29, %30, %cst_15 {dimension_numbers = #tpu.dot_dimension_numbers<[1], [0], [0], [1], [0, 0, 1, 1], [], []>} : vector<16x8xbf16>, vector<8x512xbf16>, vector<16x512xf32> -> vector<16x512xf32>
    %32 = arith.addf %22, %31 : vector<16x512xf32>
    %c1_i32 = arith.constant 1 : i32
    %33 = tpu.dynamic_rotate %1 by %c1_i32 dim 1 : vector<8x512xf32>, i32 -> vector<8x512xf32>
    %c3 = arith.constant 3 : index
    %c0_16 = arith.constant 0 : index
    %c0_17 = arith.constant 0 : index
    %34 = vector.load %arg1[%c3, %c0_16, %c0_17] : memref<9x1x512xf32, #tpu.memory_space<vmem>>, vector<1x1x512xf32>
    %35 = vector.shape_cast %34 : vector<1x1x512xf32> to vector<1x512xf32>
    %36 = vector.broadcast %35 : vector<1x512xf32> to vector<8x512xf32>
    %37 = arith.mulf %33, %36 : vector<8x512xf32>
    %38 = vector.extract_strided_slice %2 {offsets = [3, 0, 0], sizes = [1, 16, 8], strides = [1, 1, 1]} : vector<9x16x8xbf16> to vector<1x16x8xbf16>
    %39 = vector.shape_cast %38 : vector<1x16x8xbf16> to vector<16x8xbf16>
    %40 = arith.truncf %37 : vector<8x512xf32> to vector<8x512xbf16>
    %cst_18 = arith.constant dense<0.000000e+00> : vector<16x512xf32>
    %41 = tpu.matmul %39, %40, %cst_18 {dimension_numbers = #tpu.dot_dimension_numbers<[1], [0], [0], [1], [0, 0, 1, 1], [], []>} : vector<16x8xbf16>, vector<8x512xbf16>, vector<16x512xf32> -> vector<16x512xf32>
    %42 = arith.addf %32, %41 : vector<16x512xf32>
    %43 = vector.extract_strided_slice %2 {offsets = [4, 0, 0], sizes = [1, 16, 8], strides = [1, 1, 1]} : vector<9x16x8xbf16> to vector<1x16x8xbf16>
    %44 = vector.shape_cast %43 : vector<1x16x8xbf16> to vector<16x8xbf16>
    %45 = arith.truncf %1 : vector<8x512xf32> to vector<8x512xbf16>
    %cst_19 = arith.constant dense<0.000000e+00> : vector<16x512xf32>
    %46 = tpu.matmul %44, %45, %cst_19 {dimension_numbers = #tpu.dot_dimension_numbers<[1], [0], [0], [1], [0, 0, 1, 1], [], []>} : vector<16x8xbf16>, vector<8x512xbf16>, vector<16x512xf32> -> vector<16x512xf32>
    %47 = arith.addf %42, %46 : vector<16x512xf32>
    %c511_i32 = arith.constant 511 : i32
    %48 = tpu.dynamic_rotate %1 by %c511_i32 dim 1 : vector<8x512xf32>, i32 -> vector<8x512xf32>
    %c5 = arith.constant 5 : index
    %c0_20 = arith.constant 0 : index
    %c0_21 = arith.constant 0 : index
    %49 = vector.load %arg1[%c5, %c0_20, %c0_21] : memref<9x1x512xf32, #tpu.memory_space<vmem>>, vector<1x1x512xf32>
    %50 = vector.shape_cast %49 : vector<1x1x512xf32> to vector<1x512xf32>
    %51 = vector.broadcast %50 : vector<1x512xf32> to vector<8x512xf32>
    %52 = arith.mulf %48, %51 : vector<8x512xf32>
    %53 = vector.extract_strided_slice %2 {offsets = [5, 0, 0], sizes = [1, 16, 8], strides = [1, 1, 1]} : vector<9x16x8xbf16> to vector<1x16x8xbf16>
    %54 = vector.shape_cast %53 : vector<1x16x8xbf16> to vector<16x8xbf16>
    %55 = arith.truncf %52 : vector<8x512xf32> to vector<8x512xbf16>
    %cst_22 = arith.constant dense<0.000000e+00> : vector<16x512xf32>
    %56 = tpu.matmul %54, %55, %cst_22 {dimension_numbers = #tpu.dot_dimension_numbers<[1], [0], [0], [1], [0, 0, 1, 1], [], []>} : vector<16x8xbf16>, vector<8x512xbf16>, vector<16x512xf32> -> vector<16x512xf32>
    %57 = arith.addf %47, %56 : vector<16x512xf32>
    %c497_i32 = arith.constant 497 : i32
    %58 = tpu.dynamic_rotate %1 by %c497_i32 dim 1 : vector<8x512xf32>, i32 -> vector<8x512xf32>
    %c6 = arith.constant 6 : index
    %c0_23 = arith.constant 0 : index
    %c0_24 = arith.constant 0 : index
    %59 = vector.load %arg1[%c6, %c0_23, %c0_24] : memref<9x1x512xf32, #tpu.memory_space<vmem>>, vector<1x1x512xf32>
    %60 = vector.shape_cast %59 : vector<1x1x512xf32> to vector<1x512xf32>
    %61 = vector.broadcast %60 : vector<1x512xf32> to vector<8x512xf32>
    %62 = arith.mulf %58, %61 : vector<8x512xf32>
    %63 = vector.extract_strided_slice %2 {offsets = [6, 0, 0], sizes = [1, 16, 8], strides = [1, 1, 1]} : vector<9x16x8xbf16> to vector<1x16x8xbf16>
    %64 = vector.shape_cast %63 : vector<1x16x8xbf16> to vector<16x8xbf16>
    %65 = arith.truncf %62 : vector<8x512xf32> to vector<8x512xbf16>
    %cst_25 = arith.constant dense<0.000000e+00> : vector<16x512xf32>
    %66 = tpu.matmul %64, %65, %cst_25 {dimension_numbers = #tpu.dot_dimension_numbers<[1], [0], [0], [1], [0, 0, 1, 1], [], []>} : vector<16x8xbf16>, vector<8x512xbf16>, vector<16x512xf32> -> vector<16x512xf32>
    %67 = arith.addf %57, %66 : vector<16x512xf32>
    %c496_i32 = arith.constant 496 : i32
    %68 = tpu.dynamic_rotate %1 by %c496_i32 dim 1 : vector<8x512xf32>, i32 -> vector<8x512xf32>
    %c7 = arith.constant 7 : index
    %c0_26 = arith.constant 0 : index
    %c0_27 = arith.constant 0 : index
    %69 = vector.load %arg1[%c7, %c0_26, %c0_27] : memref<9x1x512xf32, #tpu.memory_space<vmem>>, vector<1x1x512xf32>
    %70 = vector.shape_cast %69 : vector<1x1x512xf32> to vector<1x512xf32>
    %71 = vector.broadcast %70 : vector<1x512xf32> to vector<8x512xf32>
    %72 = arith.mulf %68, %71 : vector<8x512xf32>
    %73 = vector.extract_strided_slice %2 {offsets = [7, 0, 0], sizes = [1, 16, 8], strides = [1, 1, 1]} : vector<9x16x8xbf16> to vector<1x16x8xbf16>
    %74 = vector.shape_cast %73 : vector<1x16x8xbf16> to vector<16x8xbf16>
    %75 = arith.truncf %72 : vector<8x512xf32> to vector<8x512xbf16>
    %cst_28 = arith.constant dense<0.000000e+00> : vector<16x512xf32>
    %76 = tpu.matmul %74, %75, %cst_28 {dimension_numbers = #tpu.dot_dimension_numbers<[1], [0], [0], [1], [0, 0, 1, 1], [], []>} : vector<16x8xbf16>, vector<8x512xbf16>, vector<16x512xf32> -> vector<16x512xf32>
    %77 = arith.addf %67, %76 : vector<16x512xf32>
    %c495_i32 = arith.constant 495 : i32
    %78 = tpu.dynamic_rotate %1 by %c495_i32 dim 1 : vector<8x512xf32>, i32 -> vector<8x512xf32>
    %c8 = arith.constant 8 : index
    %c0_29 = arith.constant 0 : index
    %c0_30 = arith.constant 0 : index
    %79 = vector.load %arg1[%c8, %c0_29, %c0_30] : memref<9x1x512xf32, #tpu.memory_space<vmem>>, vector<1x1x512xf32>
    %80 = vector.shape_cast %79 : vector<1x1x512xf32> to vector<1x512xf32>
    %81 = vector.broadcast %80 : vector<1x512xf32> to vector<8x512xf32>
    %82 = arith.mulf %78, %81 : vector<8x512xf32>
    %83 = vector.extract_strided_slice %2 {offsets = [8, 0, 0], sizes = [1, 16, 8], strides = [1, 1, 1]} : vector<9x16x8xbf16> to vector<1x16x8xbf16>
    %84 = vector.shape_cast %83 : vector<1x16x8xbf16> to vector<16x8xbf16>
    %85 = arith.truncf %82 : vector<8x512xf32> to vector<8x512xbf16>
    %cst_31 = arith.constant dense<0.000000e+00> : vector<16x512xf32>
    %86 = tpu.matmul %84, %85, %cst_31 {dimension_numbers = #tpu.dot_dimension_numbers<[1], [0], [0], [1], [0, 0, 1, 1], [], []>} : vector<16x8xbf16>, vector<8x512xbf16>, vector<16x512xf32> -> vector<16x512xf32>
    %87 = arith.addf %77, %86 : vector<16x512xf32>
    %88 = vector.broadcast %3 : vector<16x1xf32> to vector<16x512xf32>
    %89 = arith.addf %87, %88 : vector<16x512xf32>
    %cst_32 = arith.constant 0.000000e+00 : f32
    %90 = vector.broadcast %cst_32 : f32 to vector<16x512xf32>
    %91 = arith.maximumf %89, %90 : vector<16x512xf32>
    %c0_i32 = arith.constant 0 : i32
    %c2_i32 = arith.constant 2 : i32
    %92 = arith.addi %c0_i32, %c2_i32 : i32
    %c1_i32_33 = arith.constant 1 : i32
    %93 = scf.for %arg11 = %c0_i32 to %92 step %c1_i32_33 iter_args(%arg12 = %91) -> (vector<16x512xf32>)  : i32 {
      %191 = arith.index_cast %arg11 : i32 to index
      %c0_87 = arith.constant 0 : index
      %c0_88 = arith.constant 0 : index
      %c0_89 = arith.constant 0 : index
      %192 = vector.load %arg5[%191, %c0_87, %c0_88, %c0_89] : memref<2x9x16x16xbf16, #tpu.memory_space<vmem>>, vector<1x9x16x16xbf16>
      %193 = vector.shape_cast %192 : vector<1x9x16x16xbf16> to vector<9x16x16xbf16>
      %194 = arith.index_cast %arg11 : i32 to index
      %c0_90 = arith.constant 0 : index
      %c0_91 = arith.constant 0 : index
      %195 = vector.load %arg6[%194, %c0_90, %c0_91] : memref<2x16x1xf32, #tpu.memory_space<vmem>>, vector<1x16x1xf32>
      %196 = vector.shape_cast %195 : vector<1x16x1xf32> to vector<16x1xf32>
      %c17_i32_92 = arith.constant 17 : i32
      %197 = tpu.dynamic_rotate %arg12 by %c17_i32_92 dim 1 : vector<16x512xf32>, i32 -> vector<16x512xf32>
      %c0_93 = arith.constant 0 : index
      %c0_94 = arith.constant 0 : index
      %c0_95 = arith.constant 0 : index
      %198 = vector.load %arg1[%c0_93, %c0_94, %c0_95] : memref<9x1x512xf32, #tpu.memory_space<vmem>>, vector<1x1x512xf32>
      %199 = vector.shape_cast %198 : vector<1x1x512xf32> to vector<1x512xf32>
      %200 = vector.broadcast %199 : vector<1x512xf32> to vector<16x512xf32>
      %201 = arith.mulf %197, %200 : vector<16x512xf32>
      %202 = vector.extract_strided_slice %193 {offsets = [0, 0, 0], sizes = [1, 16, 16], strides = [1, 1, 1]} : vector<9x16x16xbf16> to vector<1x16x16xbf16>
      %203 = vector.shape_cast %202 : vector<1x16x16xbf16> to vector<16x16xbf16>
      %204 = arith.truncf %201 : vector<16x512xf32> to vector<16x512xbf16>
      %cst_96 = arith.constant dense<0.000000e+00> : vector<16x512xf32>
      %205 = tpu.matmul %203, %204, %cst_96 {dimension_numbers = #tpu.dot_dimension_numbers<[1], [0], [0], [1], [0, 0, 1, 1], [], []>} : vector<16x16xbf16>, vector<16x512xbf16>, vector<16x512xf32> -> vector<16x512xf32>
      %c16_i32_97 = arith.constant 16 : i32
      %206 = tpu.dynamic_rotate %arg12 by %c16_i32_97 dim 1 : vector<16x512xf32>, i32 -> vector<16x512xf32>
      %c1_98 = arith.constant 1 : index
      %c0_99 = arith.constant 0 : index
      %c0_100 = arith.constant 0 : index
      %207 = vector.load %arg1[%c1_98, %c0_99, %c0_100] : memref<9x1x512xf32, #tpu.memory_space<vmem>>, vector<1x1x512xf32>
      %208 = vector.shape_cast %207 : vector<1x1x512xf32> to vector<1x512xf32>
      %209 = vector.broadcast %208 : vector<1x512xf32> to vector<16x512xf32>
      %210 = arith.mulf %206, %209 : vector<16x512xf32>
      %211 = vector.extract_strided_slice %193 {offsets = [1, 0, 0], sizes = [1, 16, 16], strides = [1, 1, 1]} : vector<9x16x16xbf16> to vector<1x16x16xbf16>
      %212 = vector.shape_cast %211 : vector<1x16x16xbf16> to vector<16x16xbf16>
      %213 = arith.truncf %210 : vector<16x512xf32> to vector<16x512xbf16>
      %cst_101 = arith.constant dense<0.000000e+00> : vector<16x512xf32>
      %214 = tpu.matmul %212, %213, %cst_101 {dimension_numbers = #tpu.dot_dimension_numbers<[1], [0], [0], [1], [0, 0, 1, 1], [], []>} : vector<16x16xbf16>, vector<16x512xbf16>, vector<16x512xf32> -> vector<16x512xf32>
      %215 = arith.addf %205, %214 : vector<16x512xf32>
      %c15_i32_102 = arith.constant 15 : i32
      %216 = tpu.dynamic_rotate %arg12 by %c15_i32_102 dim 1 : vector<16x512xf32>, i32 -> vector<16x512xf32>
      %c2_103 = arith.constant 2 : index
      %c0_104 = arith.constant 0 : index
      %c0_105 = arith.constant 0 : index
      %217 = vector.load %arg1[%c2_103, %c0_104, %c0_105] : memref<9x1x512xf32, #tpu.memory_space<vmem>>, vector<1x1x512xf32>
      %218 = vector.shape_cast %217 : vector<1x1x512xf32> to vector<1x512xf32>
      %219 = vector.broadcast %218 : vector<1x512xf32> to vector<16x512xf32>
      %220 = arith.mulf %216, %219 : vector<16x512xf32>
      %221 = vector.extract_strided_slice %193 {offsets = [2, 0, 0], sizes = [1, 16, 16], strides = [1, 1, 1]} : vector<9x16x16xbf16> to vector<1x16x16xbf16>
      %222 = vector.shape_cast %221 : vector<1x16x16xbf16> to vector<16x16xbf16>
      %223 = arith.truncf %220 : vector<16x512xf32> to vector<16x512xbf16>
      %cst_106 = arith.constant dense<0.000000e+00> : vector<16x512xf32>
      %224 = tpu.matmul %222, %223, %cst_106 {dimension_numbers = #tpu.dot_dimension_numbers<[1], [0], [0], [1], [0, 0, 1, 1], [], []>} : vector<16x16xbf16>, vector<16x512xbf16>, vector<16x512xf32> -> vector<16x512xf32>
      %225 = arith.addf %215, %224 : vector<16x512xf32>
      %c1_i32_107 = arith.constant 1 : i32
      %226 = tpu.dynamic_rotate %arg12 by %c1_i32_107 dim 1 : vector<16x512xf32>, i32 -> vector<16x512xf32>
      %c3_108 = arith.constant 3 : index
      %c0_109 = arith.constant 0 : index
      %c0_110 = arith.constant 0 : index
      %227 = vector.load %arg1[%c3_108, %c0_109, %c0_110] : memref<9x1x512xf32, #tpu.memory_space<vmem>>, vector<1x1x512xf32>
      %228 = vector.shape_cast %227 : vector<1x1x512xf32> to vector<1x512xf32>
      %229 = vector.broadcast %228 : vector<1x512xf32> to vector<16x512xf32>
      %230 = arith.mulf %226, %229 : vector<16x512xf32>
      %231 = vector.extract_strided_slice %193 {offsets = [3, 0, 0], sizes = [1, 16, 16], strides = [1, 1, 1]} : vector<9x16x16xbf16> to vector<1x16x16xbf16>
      %232 = vector.shape_cast %231 : vector<1x16x16xbf16> to vector<16x16xbf16>
      %233 = arith.truncf %230 : vector<16x512xf32> to vector<16x512xbf16>
      %cst_111 = arith.constant dense<0.000000e+00> : vector<16x512xf32>
      %234 = tpu.matmul %232, %233, %cst_111 {dimension_numbers = #tpu.dot_dimension_numbers<[1], [0], [0], [1], [0, 0, 1, 1], [], []>} : vector<16x16xbf16>, vector<16x512xbf16>, vector<16x512xf32> -> vector<16x512xf32>
      %235 = arith.addf %225, %234 : vector<16x512xf32>
      %236 = vector.extract_strided_slice %193 {offsets = [4, 0, 0], sizes = [1, 16, 16], strides = [1, 1, 1]} : vector<9x16x16xbf16> to vector<1x16x16xbf16>
      %237 = vector.shape_cast %236 : vector<1x16x16xbf16> to vector<16x16xbf16>
      %238 = arith.truncf %arg12 : vector<16x512xf32> to vector<16x512xbf16>
      %cst_112 = arith.constant dense<0.000000e+00> : vector<16x512xf32>
      %239 = tpu.matmul %237, %238, %cst_112 {dimension_numbers = #tpu.dot_dimension_numbers<[1], [0], [0], [1], [0, 0, 1, 1], [], []>} : vector<16x16xbf16>, vector<16x512xbf16>, vector<16x512xf32> -> vector<16x512xf32>
      %240 = arith.addf %235, %239 : vector<16x512xf32>
      %c511_i32_113 = arith.constant 511 : i32
      %241 = tpu.dynamic_rotate %arg12 by %c511_i32_113 dim 1 : vector<16x512xf32>, i32 -> vector<16x512xf32>
      %c5_114 = arith.constant 5 : index
      %c0_115 = arith.constant 0 : index
      %c0_116 = arith.constant 0 : index
      %242 = vector.load %arg1[%c5_114, %c0_115, %c0_116] : memref<9x1x512xf32, #tpu.memory_space<vmem>>, vector<1x1x512xf32>
      %243 = vector.shape_cast %242 : vector<1x1x512xf32> to vector<1x512xf32>
      %244 = vector.broadcast %243 : vector<1x512xf32> to vector<16x512xf32>
      %245 = arith.mulf %241, %244 : vector<16x512xf32>
      %246 = vector.extract_strided_slice %193 {offsets = [5, 0, 0], sizes = [1, 16, 16], strides = [1, 1, 1]} : vector<9x16x16xbf16> to vector<1x16x16xbf16>
      %247 = vector.shape_cast %246 : vector<1x16x16xbf16> to vector<16x16xbf16>
      %248 = arith.truncf %245 : vector<16x512xf32> to vector<16x512xbf16>
      %cst_117 = arith.constant dense<0.000000e+00> : vector<16x512xf32>
      %249 = tpu.matmul %247, %248, %cst_117 {dimension_numbers = #tpu.dot_dimension_numbers<[1], [0], [0], [1], [0, 0, 1, 1], [], []>} : vector<16x16xbf16>, vector<16x512xbf16>, vector<16x512xf32> -> vector<16x512xf32>
      %250 = arith.addf %240, %249 : vector<16x512xf32>
      %c497_i32_118 = arith.constant 497 : i32
      %251 = tpu.dynamic_rotate %arg12 by %c497_i32_118 dim 1 : vector<16x512xf32>, i32 -> vector<16x512xf32>
      %c6_119 = arith.constant 6 : index
      %c0_120 = arith.constant 0 : index
      %c0_121 = arith.constant 0 : index
      %252 = vector.load %arg1[%c6_119, %c0_120, %c0_121] : memref<9x1x512xf32, #tpu.memory_space<vmem>>, vector<1x1x512xf32>
      %253 = vector.shape_cast %252 : vector<1x1x512xf32> to vector<1x512xf32>
      %254 = vector.broadcast %253 : vector<1x512xf32> to vector<16x512xf32>
      %255 = arith.mulf %251, %254 : vector<16x512xf32>
      %256 = vector.extract_strided_slice %193 {offsets = [6, 0, 0], sizes = [1, 16, 16], strides = [1, 1, 1]} : vector<9x16x16xbf16> to vector<1x16x16xbf16>
      %257 = vector.shape_cast %256 : vector<1x16x16xbf16> to vector<16x16xbf16>
      %258 = arith.truncf %255 : vector<16x512xf32> to vector<16x512xbf16>
      %cst_122 = arith.constant dense<0.000000e+00> : vector<16x512xf32>
      %259 = tpu.matmul %257, %258, %cst_122 {dimension_numbers = #tpu.dot_dimension_numbers<[1], [0], [0], [1], [0, 0, 1, 1], [], []>} : vector<16x16xbf16>, vector<16x512xbf16>, vector<16x512xf32> -> vector<16x512xf32>
      %260 = arith.addf %250, %259 : vector<16x512xf32>
      %c496_i32_123 = arith.constant 496 : i32
      %261 = tpu.dynamic_rotate %arg12 by %c496_i32_123 dim 1 : vector<16x512xf32>, i32 -> vector<16x512xf32>
      %c7_124 = arith.constant 7 : index
      %c0_125 = arith.constant 0 : index
      %c0_126 = arith.constant 0 : index
      %262 = vector.load %arg1[%c7_124, %c0_125, %c0_126] : memref<9x1x512xf32, #tpu.memory_space<vmem>>, vector<1x1x512xf32>
      %263 = vector.shape_cast %262 : vector<1x1x512xf32> to vector<1x512xf32>
      %264 = vector.broadcast %263 : vector<1x512xf32> to vector<16x512xf32>
      %265 = arith.mulf %261, %264 : vector<16x512xf32>
      %266 = vector.extract_strided_slice %193 {offsets = [7, 0, 0], sizes = [1, 16, 16], strides = [1, 1, 1]} : vector<9x16x16xbf16> to vector<1x16x16xbf16>
      %267 = vector.shape_cast %266 : vector<1x16x16xbf16> to vector<16x16xbf16>
      %268 = arith.truncf %265 : vector<16x512xf32> to vector<16x512xbf16>
      %cst_127 = arith.constant dense<0.000000e+00> : vector<16x512xf32>
      %269 = tpu.matmul %267, %268, %cst_127 {dimension_numbers = #tpu.dot_dimension_numbers<[1], [0], [0], [1], [0, 0, 1, 1], [], []>} : vector<16x16xbf16>, vector<16x512xbf16>, vector<16x512xf32> -> vector<16x512xf32>
      %270 = arith.addf %260, %269 : vector<16x512xf32>
      %c495_i32_128 = arith.constant 495 : i32
      %271 = tpu.dynamic_rotate %arg12 by %c495_i32_128 dim 1 : vector<16x512xf32>, i32 -> vector<16x512xf32>
      %c8_129 = arith.constant 8 : index
      %c0_130 = arith.constant 0 : index
      %c0_131 = arith.constant 0 : index
      %272 = vector.load %arg1[%c8_129, %c0_130, %c0_131] : memref<9x1x512xf32, #tpu.memory_space<vmem>>, vector<1x1x512xf32>
      %273 = vector.shape_cast %272 : vector<1x1x512xf32> to vector<1x512xf32>
      %274 = vector.broadcast %273 : vector<1x512xf32> to vector<16x512xf32>
      %275 = arith.mulf %271, %274 : vector<16x512xf32>
      %276 = vector.extract_strided_slice %193 {offsets = [8, 0, 0], sizes = [1, 16, 16], strides = [1, 1, 1]} : vector<9x16x16xbf16> to vector<1x16x16xbf16>
      %277 = vector.shape_cast %276 : vector<1x16x16xbf16> to vector<16x16xbf16>
      %278 = arith.truncf %275 : vector<16x512xf32> to vector<16x512xbf16>
      %cst_132 = arith.constant dense<0.000000e+00> : vector<16x512xf32>
      %279 = tpu.matmul %277, %278, %cst_132 {dimension_numbers = #tpu.dot_dimension_numbers<[1], [0], [0], [1], [0, 0, 1, 1], [], []>} : vector<16x16xbf16>, vector<16x512xbf16>, vector<16x512xf32> -> vector<16x512xf32>
      %280 = arith.addf %270, %279 : vector<16x512xf32>
      %281 = vector.broadcast %196 : vector<16x1xf32> to vector<16x512xf32>
      %282 = arith.addf %280, %281 : vector<16x512xf32>
      %cst_133 = arith.constant 0.000000e+00 : f32
      %283 = vector.broadcast %cst_133 : f32 to vector<16x512xf32>
      %284 = arith.maximumf %282, %283 : vector<16x512xf32>
      scf.yield %284 : vector<16x512xf32>
    }
    %c2_i32_34 = arith.constant 2 : i32
    %c0_35 = arith.constant 0 : index
    %c0_36 = arith.constant 0 : index
    %c0_37 = arith.constant 0 : index
    %94 = vector.load %arg7[%c0_35, %c0_36, %c0_37] : memref<9x32x16xbf16, #tpu.memory_space<vmem>>, vector<9x32x16xbf16>
    %c0_38 = arith.constant 0 : index
    %c0_39 = arith.constant 0 : index
    %95 = vector.load %arg8[%c0_38, %c0_39] : memref<32x1xf32, #tpu.memory_space<vmem>>, vector<32x1xf32>
    %c17_i32_40 = arith.constant 17 : i32
    %96 = tpu.dynamic_rotate %93 by %c17_i32_40 dim 1 : vector<16x512xf32>, i32 -> vector<16x512xf32>
    %c0_41 = arith.constant 0 : index
    %c0_42 = arith.constant 0 : index
    %c0_43 = arith.constant 0 : index
    %97 = vector.load %arg1[%c0_41, %c0_42, %c0_43] : memref<9x1x512xf32, #tpu.memory_space<vmem>>, vector<1x1x512xf32>
    %98 = vector.shape_cast %97 : vector<1x1x512xf32> to vector<1x512xf32>
    %99 = vector.broadcast %98 : vector<1x512xf32> to vector<16x512xf32>
    %100 = arith.mulf %96, %99 : vector<16x512xf32>
    %101 = vector.extract_strided_slice %94 {offsets = [0, 0, 0], sizes = [1, 32, 16], strides = [1, 1, 1]} : vector<9x32x16xbf16> to vector<1x32x16xbf16>
    %102 = vector.shape_cast %101 : vector<1x32x16xbf16> to vector<32x16xbf16>
    %103 = arith.truncf %100 : vector<16x512xf32> to vector<16x512xbf16>
    %cst_44 = arith.constant dense<0.000000e+00> : vector<32x512xf32>
    %104 = tpu.matmul %102, %103, %cst_44 {dimension_numbers = #tpu.dot_dimension_numbers<[1], [0], [0], [1], [0, 0, 1, 1], [], []>} : vector<32x16xbf16>, vector<16x512xbf16>, vector<32x512xf32> -> vector<32x512xf32>
    %c16_i32_45 = arith.constant 16 : i32
    %105 = tpu.dynamic_rotate %93 by %c16_i32_45 dim 1 : vector<16x512xf32>, i32 -> vector<16x512xf32>
    %c1_46 = arith.constant 1 : index
    %c0_47 = arith.constant 0 : index
    %c0_48 = arith.constant 0 : index
    %106 = vector.load %arg1[%c1_46, %c0_47, %c0_48] : memref<9x1x512xf32, #tpu.memory_space<vmem>>, vector<1x1x512xf32>
    %107 = vector.shape_cast %106 : vector<1x1x512xf32> to vector<1x512xf32>
    %108 = vector.broadcast %107 : vector<1x512xf32> to vector<16x512xf32>
    %109 = arith.mulf %105, %108 : vector<16x512xf32>
    %110 = vector.extract_strided_slice %94 {offsets = [1, 0, 0], sizes = [1, 32, 16], strides = [1, 1, 1]} : vector<9x32x16xbf16> to vector<1x32x16xbf16>
    %111 = vector.shape_cast %110 : vector<1x32x16xbf16> to vector<32x16xbf16>
    %112 = arith.truncf %109 : vector<16x512xf32> to vector<16x512xbf16>
    %cst_49 = arith.constant dense<0.000000e+00> : vector<32x512xf32>
    %113 = tpu.matmul %111, %112, %cst_49 {dimension_numbers = #tpu.dot_dimension_numbers<[1], [0], [0], [1], [0, 0, 1, 1], [], []>} : vector<32x16xbf16>, vector<16x512xbf16>, vector<32x512xf32> -> vector<32x512xf32>
    %114 = arith.addf %104, %113 : vector<32x512xf32>
    %c15_i32_50 = arith.constant 15 : i32
    %115 = tpu.dynamic_rotate %93 by %c15_i32_50 dim 1 : vector<16x512xf32>, i32 -> vector<16x512xf32>
    %c2_51 = arith.constant 2 : index
    %c0_52 = arith.constant 0 : index
    %c0_53 = arith.constant 0 : index
    %116 = vector.load %arg1[%c2_51, %c0_52, %c0_53] : memref<9x1x512xf32, #tpu.memory_space<vmem>>, vector<1x1x512xf32>
    %117 = vector.shape_cast %116 : vector<1x1x512xf32> to vector<1x512xf32>
    %118 = vector.broadcast %117 : vector<1x512xf32> to vector<16x512xf32>
    %119 = arith.mulf %115, %118 : vector<16x512xf32>
    %120 = vector.extract_strided_slice %94 {offsets = [2, 0, 0], sizes = [1, 32, 16], strides = [1, 1, 1]} : vector<9x32x16xbf16> to vector<1x32x16xbf16>
    %121 = vector.shape_cast %120 : vector<1x32x16xbf16> to vector<32x16xbf16>
    %122 = arith.truncf %119 : vector<16x512xf32> to vector<16x512xbf16>
    %cst_54 = arith.constant dense<0.000000e+00> : vector<32x512xf32>
    %123 = tpu.matmul %121, %122, %cst_54 {dimension_numbers = #tpu.dot_dimension_numbers<[1], [0], [0], [1], [0, 0, 1, 1], [], []>} : vector<32x16xbf16>, vector<16x512xbf16>, vector<32x512xf32> -> vector<32x512xf32>
    %124 = arith.addf %114, %123 : vector<32x512xf32>
    %c1_i32_55 = arith.constant 1 : i32
    %125 = tpu.dynamic_rotate %93 by %c1_i32_55 dim 1 : vector<16x512xf32>, i32 -> vector<16x512xf32>
    %c3_56 = arith.constant 3 : index
    %c0_57 = arith.constant 0 : index
    %c0_58 = arith.constant 0 : index
    %126 = vector.load %arg1[%c3_56, %c0_57, %c0_58] : memref<9x1x512xf32, #tpu.memory_space<vmem>>, vector<1x1x512xf32>
    %127 = vector.shape_cast %126 : vector<1x1x512xf32> to vector<1x512xf32>
    %128 = vector.broadcast %127 : vector<1x512xf32> to vector<16x512xf32>
    %129 = arith.mulf %125, %128 : vector<16x512xf32>
    %130 = vector.extract_strided_slice %94 {offsets = [3, 0, 0], sizes = [1, 32, 16], strides = [1, 1, 1]} : vector<9x32x16xbf16> to vector<1x32x16xbf16>
    %131 = vector.shape_cast %130 : vector<1x32x16xbf16> to vector<32x16xbf16>
    %132 = arith.truncf %129 : vector<16x512xf32> to vector<16x512xbf16>
    %cst_59 = arith.constant dense<0.000000e+00> : vector<32x512xf32>
    %133 = tpu.matmul %131, %132, %cst_59 {dimension_numbers = #tpu.dot_dimension_numbers<[1], [0], [0], [1], [0, 0, 1, 1], [], []>} : vector<32x16xbf16>, vector<16x512xbf16>, vector<32x512xf32> -> vector<32x512xf32>
    %134 = arith.addf %124, %133 : vector<32x512xf32>
    %135 = vector.extract_strided_slice %94 {offsets = [4, 0, 0], sizes = [1, 32, 16], strides = [1, 1, 1]} : vector<9x32x16xbf16> to vector<1x32x16xbf16>
    %136 = vector.shape_cast %135 : vector<1x32x16xbf16> to vector<32x16xbf16>
    %137 = arith.truncf %93 : vector<16x512xf32> to vector<16x512xbf16>
    %cst_60 = arith.constant dense<0.000000e+00> : vector<32x512xf32>
    %138 = tpu.matmul %136, %137, %cst_60 {dimension_numbers = #tpu.dot_dimension_numbers<[1], [0], [0], [1], [0, 0, 1, 1], [], []>} : vector<32x16xbf16>, vector<16x512xbf16>, vector<32x512xf32> -> vector<32x512xf32>
    %139 = arith.addf %134, %138 : vector<32x512xf32>
    %c511_i32_61 = arith.constant 511 : i32
    %140 = tpu.dynamic_rotate %93 by %c511_i32_61 dim 1 : vector<16x512xf32>, i32 -> vector<16x512xf32>
    %c5_62 = arith.constant 5 : index
    %c0_63 = arith.constant 0 : index
    %c0_64 = arith.constant 0 : index
    %141 = vector.load %arg1[%c5_62, %c0_63, %c0_64] : memref<9x1x512xf32, #tpu.memory_space<vmem>>, vector<1x1x512xf32>
    %142 = vector.shape_cast %141 : vector<1x1x512xf32> to vector<1x512xf32>
    %143 = vector.broadcast %142 : vector<1x512xf32> to vector<16x512xf32>
    %144 = arith.mulf %140, %143 : vector<16x512xf32>
    %145 = vector.extract_strided_slice %94 {offsets = [5, 0, 0], sizes = [1, 32, 16], strides = [1, 1, 1]} : vector<9x32x16xbf16> to vector<1x32x16xbf16>
    %146 = vector.shape_cast %145 : vector<1x32x16xbf16> to vector<32x16xbf16>
    %147 = arith.truncf %144 : vector<16x512xf32> to vector<16x512xbf16>
    %cst_65 = arith.constant dense<0.000000e+00> : vector<32x512xf32>
    %148 = tpu.matmul %146, %147, %cst_65 {dimension_numbers = #tpu.dot_dimension_numbers<[1], [0], [0], [1], [0, 0, 1, 1], [], []>} : vector<32x16xbf16>, vector<16x512xbf16>, vector<32x512xf32> -> vector<32x512xf32>
    %149 = arith.addf %139, %148 : vector<32x512xf32>
    %c497_i32_66 = arith.constant 497 : i32
    %150 = tpu.dynamic_rotate %93 by %c497_i32_66 dim 1 : vector<16x512xf32>, i32 -> vector<16x512xf32>
    %c6_67 = arith.constant 6 : index
    %c0_68 = arith.constant 0 : index
    %c0_69 = arith.constant 0 : index
    %151 = vector.load %arg1[%c6_67, %c0_68, %c0_69] : memref<9x1x512xf32, #tpu.memory_space<vmem>>, vector<1x1x512xf32>
    %152 = vector.shape_cast %151 : vector<1x1x512xf32> to vector<1x512xf32>
    %153 = vector.broadcast %152 : vector<1x512xf32> to vector<16x512xf32>
    %154 = arith.mulf %150, %153 : vector<16x512xf32>
    %155 = vector.extract_strided_slice %94 {offsets = [6, 0, 0], sizes = [1, 32, 16], strides = [1, 1, 1]} : vector<9x32x16xbf16> to vector<1x32x16xbf16>
    %156 = vector.shape_cast %155 : vector<1x32x16xbf16> to vector<32x16xbf16>
    %157 = arith.truncf %154 : vector<16x512xf32> to vector<16x512xbf16>
    %cst_70 = arith.constant dense<0.000000e+00> : vector<32x512xf32>
    %158 = tpu.matmul %156, %157, %cst_70 {dimension_numbers = #tpu.dot_dimension_numbers<[1], [0], [0], [1], [0, 0, 1, 1], [], []>} : vector<32x16xbf16>, vector<16x512xbf16>, vector<32x512xf32> -> vector<32x512xf32>
    %159 = arith.addf %149, %158 : vector<32x512xf32>
    %c496_i32_71 = arith.constant 496 : i32
    %160 = tpu.dynamic_rotate %93 by %c496_i32_71 dim 1 : vector<16x512xf32>, i32 -> vector<16x512xf32>
    %c7_72 = arith.constant 7 : index
    %c0_73 = arith.constant 0 : index
    %c0_74 = arith.constant 0 : index
    %161 = vector.load %arg1[%c7_72, %c0_73, %c0_74] : memref<9x1x512xf32, #tpu.memory_space<vmem>>, vector<1x1x512xf32>
    %162 = vector.shape_cast %161 : vector<1x1x512xf32> to vector<1x512xf32>
    %163 = vector.broadcast %162 : vector<1x512xf32> to vector<16x512xf32>
    %164 = arith.mulf %160, %163 : vector<16x512xf32>
    %165 = vector.extract_strided_slice %94 {offsets = [7, 0, 0], sizes = [1, 32, 16], strides = [1, 1, 1]} : vector<9x32x16xbf16> to vector<1x32x16xbf16>
    %166 = vector.shape_cast %165 : vector<1x32x16xbf16> to vector<32x16xbf16>
    %167 = arith.truncf %164 : vector<16x512xf32> to vector<16x512xbf16>
    %cst_75 = arith.constant dense<0.000000e+00> : vector<32x512xf32>
    %168 = tpu.matmul %166, %167, %cst_75 {dimension_numbers = #tpu.dot_dimension_numbers<[1], [0], [0], [1], [0, 0, 1, 1], [], []>} : vector<32x16xbf16>, vector<16x512xbf16>, vector<32x512xf32> -> vector<32x512xf32>
    %169 = arith.addf %159, %168 : vector<32x512xf32>
    %c495_i32_76 = arith.constant 495 : i32
    %170 = tpu.dynamic_rotate %93 by %c495_i32_76 dim 1 : vector<16x512xf32>, i32 -> vector<16x512xf32>
    %c8_77 = arith.constant 8 : index
    %c0_78 = arith.constant 0 : index
    %c0_79 = arith.constant 0 : index
    %171 = vector.load %arg1[%c8_77, %c0_78, %c0_79] : memref<9x1x512xf32, #tpu.memory_space<vmem>>, vector<1x1x512xf32>
    %172 = vector.shape_cast %171 : vector<1x1x512xf32> to vector<1x512xf32>
    %173 = vector.broadcast %172 : vector<1x512xf32> to vector<16x512xf32>
    %174 = arith.mulf %170, %173 : vector<16x512xf32>
    %175 = vector.extract_strided_slice %94 {offsets = [8, 0, 0], sizes = [1, 32, 16], strides = [1, 1, 1]} : vector<9x32x16xbf16> to vector<1x32x16xbf16>
    %176 = vector.shape_cast %175 : vector<1x32x16xbf16> to vector<32x16xbf16>
    %177 = arith.truncf %174 : vector<16x512xf32> to vector<16x512xbf16>
    %cst_80 = arith.constant dense<0.000000e+00> : vector<32x512xf32>
    %178 = tpu.matmul %176, %177, %cst_80 {dimension_numbers = #tpu.dot_dimension_numbers<[1], [0], [0], [1], [0, 0, 1, 1], [], []>} : vector<32x16xbf16>, vector<16x512xbf16>, vector<32x512xf32> -> vector<32x512xf32>
    %179 = arith.addf %169, %178 : vector<32x512xf32>
    %180 = vector.broadcast %95 : vector<32x1xf32> to vector<32x512xf32>
    %181 = arith.addf %179, %180 : vector<32x512xf32>
    %182 = vector.extract_strided_slice %181 {offsets = [0, 0], sizes = [16, 512], strides = [1, 1]} : vector<32x512xf32> to vector<16x512xf32>
    %183 = vector.extract_strided_slice %181 {offsets = [16, 0], sizes = [16, 512], strides = [1, 1]} : vector<32x512xf32> to vector<16x512xf32>
    %184 = arith.addf %182, %183 : vector<16x512xf32>
    %c0_81 = arith.constant 0 : index
    %c0_82 = arith.constant 0 : index
    %c0_83 = arith.constant 0 : index
    %185 = vector.load %arg9[%c0_81, %c0_82, %c0_83] : memref<1x16x512xf32, #tpu.memory_space<vmem>>, vector<1x16x512xf32>
    %186 = vector.shape_cast %185 : vector<1x16x512xf32> to vector<16x512xf32>
    %187 = vector.shape_cast %184 : vector<16x512xf32> to vector<1x16x512xf32>
    tpu.vector_store %arg9[%c0_81, %c0_82, %c0_83], %187 {strides = array<i32>} : memref<1x16x512xf32, #tpu.memory_space<vmem>>, vector<1x16x512xf32>,
    %c0_84 = arith.constant 0 : index
    %c0_85 = arith.constant 0 : index
    %c0_86 = arith.constant 0 : index
    %188 = vector.load %arg10[%c0_84, %c0_85, %c0_86] : memref<1x16x512xf32, #tpu.memory_space<vmem>>, vector<1x16x512xf32>
    %189 = vector.shape_cast %188 : vector<1x16x512xf32> to vector<16x512xf32>
    %190 = vector.shape_cast %183 : vector<16x512xf32> to vector<1x16x512xf32>
    tpu.vector_store %arg10[%c0_84, %c0_85, %c0_86], %190 {strides = array<i32>} : memref<1x16x512xf32, #tpu.memory_space<vmem>>, vector<1x16x512xf32>,
    return
  }
  func.func @transform_0(%arg0: i32) -> (i32, i32, i32) {
    %c0_i32 = arith.constant 0 : i32
    %c0_i32_0 = arith.constant 0 : i32
    %c0_i32_1 = arith.constant 0 : i32
    %c0_i32_2 = arith.constant 0 : i32
    return %c0_i32, %c0_i32_0, %c0_i32_1 : i32, i32, i32
  }
  func.func @transform_1(%arg0: i32) -> (i32, i32, i32) {
    %c0_i32 = arith.constant 0 : i32
    %c0_i32_0 = arith.constant 0 : i32
    %c0_i32_1 = arith.constant 0 : i32
    return %arg0, %c0_i32, %c0_i32_0 : i32, i32, i32
  }
  func.func @transform_2(%arg0: i32) -> (i32, i32, i32) {
    %c0_i32 = arith.constant 0 : i32
    %c0_i32_0 = arith.constant 0 : i32
    %c0_i32_1 = arith.constant 0 : i32
    %c0_i32_2 = arith.constant 0 : i32
    return %c0_i32, %c0_i32_0, %c0_i32_1 : i32, i32, i32
  }
  func.func @transform_3(%arg0: i32) -> (i32, i32) {
    %c0_i32 = arith.constant 0 : i32
    %c0_i32_0 = arith.constant 0 : i32
    %c0_i32_1 = arith.constant 0 : i32
    return %c0_i32, %c0_i32_0 : i32, i32
  }
  func.func @transform_4(%arg0: i32) -> (i32, i32, i32, i32) {
    %c0_i32 = arith.constant 0 : i32
    %c0_i32_0 = arith.constant 0 : i32
    %c0_i32_1 = arith.constant 0 : i32
    %c0_i32_2 = arith.constant 0 : i32
    %c0_i32_3 = arith.constant 0 : i32
    return %c0_i32, %c0_i32_0, %c0_i32_1, %c0_i32_2 : i32, i32, i32, i32
  }
  func.func @transform_5(%arg0: i32) -> (i32, i32, i32) {
    %c0_i32 = arith.constant 0 : i32
    %c0_i32_0 = arith.constant 0 : i32
    %c0_i32_1 = arith.constant 0 : i32
    %c0_i32_2 = arith.constant 0 : i32
    return %c0_i32, %c0_i32_0, %c0_i32_1 : i32, i32, i32
  }
  func.func @transform_6(%arg0: i32) -> (i32, i32, i32) {
    %c0_i32 = arith.constant 0 : i32
    %c0_i32_0 = arith.constant 0 : i32
    %c0_i32_1 = arith.constant 0 : i32
    %c0_i32_2 = arith.constant 0 : i32
    return %c0_i32, %c0_i32_0, %c0_i32_1 : i32, i32, i32
  }
  func.func @transform_7(%arg0: i32) -> (i32, i32) {
    %c0_i32 = arith.constant 0 : i32
    %c0_i32_0 = arith.constant 0 : i32
    %c0_i32_1 = arith.constant 0 : i32
    return %c0_i32, %c0_i32_0 : i32, i32
  }
  func.func @transform_8(%arg0: i32) -> (i32, i32, i32) {
    %c0_i32 = arith.constant 0 : i32
    %c0_i32_0 = arith.constant 0 : i32
    %c0_i32_1 = arith.constant 0 : i32
    return %arg0, %c0_i32, %c0_i32_0 : i32, i32, i32
  }
  func.func @transform_9(%arg0: i32) -> (i32, i32, i32) {
    %c0_i32 = arith.constant 0 : i32
    %c0_i32_0 = arith.constant 0 : i32
    %c0_i32_1 = arith.constant 0 : i32
    return %arg0, %c0_i32, %c0_i32_0 : i32, i32, i32
  }
}

</mosaic_0001>

<llo_original>
// kernel: etds_forward.1
$region0: #{etds_forward.1}
  #allocation0 [shape = 'u32[]', space=smem, size = 0x4, offset = 0x4, fixed_abs, tag = 'smem constant byte address 0x4 - core index']
  #allocation1 [shape = 'u32[144,128]{1,0:T(1,128)}', space=vmem, size = 0x12000, scoped, tag = 'internal scratch']
  %s0 = inlined_call_operand.vmem [shape: f32[9,1,512], index: 0, kind: input, shape index: {}]
  %s1 = inlined_call_operand.vmem [shape: f32[2,8,512], index: 1, kind: input, shape index: {}]
  %s2 = inlined_call_operand.vmem [shape: bf16[9,16,8], index: 2, kind: input, shape index: {}]
  %s3 = inlined_call_operand.vmem [shape: f32[16,1], index: 3, kind: input, shape index: {}]
  %s4 = inlined_call_operand.vmem [shape: bf16[2,9,16,16], index: 4, kind: input, shape index: {}]
  %s5 = inlined_call_operand.vmem [shape: f32[2,16,1], index: 5, kind: input, shape index: {}]
  %s6 = inlined_call_operand.vmem [shape: bf16[9,32,16], index: 6, kind: input, shape index: {}]
  %s7 = inlined_call_operand.vmem [shape: f32[32,1], index: 7, kind: input, shape index: {}]
  %s8 = inlined_call_operand.vmem [shape: f32[2,16,512], index: 8, kind: output, shape index: {0}]
  %s9 = inlined_call_operand.vmem [shape: f32[2,16,512], index: 9, kind: output, shape index: {1}]
  %10 = xla_tuple %s8, %s9
  %s11 = sld [smem:[#allocation0]]
  $region80: #{etds_forward.1} parent=0
    _
  %s13 = ssub.s32 1, %s11
  %s14 = scalar_select 0, %s13, %s11
  loop: start=0, step=1, limit=4
  $region2: #{etds_forward.1} parent=0 // loop_pre_header
    _
  $region3: #{etds_forward.1} parent=0 // loop_header
    %s16 = sphi 0, %s20
    %p17 = scmp.ge.s32.totalorder %s16, 4
    %s24 = sphi 0, %s24
    %s26 = sphi 0, %s24
    %s27 = sphi 0, %s26
    %s41 = sphi 0, %s27
    %s47 = sphi 0, %s49
    %s50 = sphi 0, %s47
    %s51 = sphi 0, %s50
    %s67 = sphi 0, %s51
    %s71 = sphi 0, %s71
    %s73 = sphi 0, %s71
    %s74 = sphi 0, %s73
    %s88 = sphi 0, %s74
    %s92 = sphi 0, %s92
    %s94 = sphi 0, %s92
    %s95 = sphi 0, %s94
    %s109 = sphi 0, %s95
    %s113 = sphi 0, %s113
    %s115 = sphi 0, %s113
    %s116 = sphi 0, %s115
    %s130 = sphi 0, %s116
    %s134 = sphi 0, %s134
    %s136 = sphi 0, %s134
    %s137 = sphi 0, %s136
    %s151 = sphi 0, %s137
    %s155 = sphi 0, %s155
    %s157 = sphi 0, %s155
    %s158 = sphi 0, %s157
    %s172 = sphi 0, %s158
    %s176 = sphi 0, %s176
    %s178 = sphi 0, %s176
    %s179 = sphi 0, %s178
    %s193 = sphi 0, %s179
    %s199 = sphi 0, %s201
    %s202 = sphi 0, %s199
    %s203 = sphi 0, %s202
    %s219 = sphi 0, %s203
    %s225 = sphi 0, %s227
    %s228 = sphi 0, %s225
    %s229 = sphi 0, %s228
    %s245 = sphi 0, %s229
  $region4: #{etds_forward.1} parent=0 // loop_header_branch
    %19 = sbr.rel (%p17) target = $region8
  $region5: #{etds_forward.1} parent=0 // loop_body
    %s21 = ssub.s32 %s16, 1
    %s22 = ssub.s32 %s16, 2
    %s23 = sadd.s32 %s16, 1
    %s25 = sadd.s32 %s24, 1
    %p28 = scmp.eq.s32.totalorder %s16, 1
    %p29 = scmp.ne.s32.totalorder %s24, %s26
    %p30 = scmp.eq.s32.totalorder %s16, 0
    %p31 = por %p29, %p30
    %p32 = scmp.ne.s32.totalorder %s24, %s26
    %p33 = scmp.eq.s32.totalorder %s21, 1
    %p34 = por %p32, %p33
    %p35 = scmp.ne.s32.totalorder %s26, %s27
    %p36 = scmp.eq.s32.totalorder %s21, 0
    %p37 = por %p35, %p36
    %p38 = scmp.ne.s32.totalorder %s26, %s27
    %p39 = scmp.eq.s32.totalorder %s22, 1
    %p40 = por %p38, %p39
    %p42 = scmp.ne.s32.totalorder %s27, %s41
    %p43 = scmp.eq.s32.totalorder %s22, 0
    %p44 = por %p42, %p43
    %s45 = ssub.s32 %s16, %s23
    %p46 = scmp.eq.s32.totalorder %s45, 0
    %s48 = sadd.s32 %s47, 1
    %s49 = scalar_select %p46, %s47, %s48
    %p52 = pneg %p46
    %p53 = scmp.eq.s32.totalorder %s16, 1
    %p54 = por %p52, %p53
    %p55 = scmp.ne.s32.totalorder %s47, %s50
    %p56 = scmp.eq.s32.totalorder %s16, 0
    %p57 = por %p55, %p56
    %p58 = scmp.ne.s32.totalorder %s47, %s50
    %p59 = scmp.eq.s32.totalorder %s21, 1
    %p60 = por %p58, %p59
    %p61 = scmp.ne.s32.totalorder %s50, %s51
    %p62 = scmp.eq.s32.totalorder %s21, 0
    %p63 = por %p61, %p62
    %p64 = scmp.ne.s32.totalorder %s50, %s51
    %p65 = scmp.eq.s32.totalorder %s22, 1
    %p66 = por %p64, %p65
    %p68 = scmp.ne.s32.totalorder %s51, %s67
    %p69 = scmp.eq.s32.totalorder %s22, 0
    %p70 = por %p68, %p69
    %s72 = sadd.s32 %s71, 1
    %p75 = scmp.eq.s32.totalorder %s16, 1
    %p76 = scmp.ne.s32.totalorder %s71, %s73
    %p77 = scmp.eq.s32.totalorder %s16, 0
    %p78 = por %p76, %p77
    %p79 = scmp.ne.s32.totalorder %s71, %s73
    %p80 = scmp.eq.s32.totalorder %s21, 1
    %p81 = por %p79, %p80
    %p82 = scmp.ne.s32.totalorder %s73, %s74
    %p83 = scmp.eq.s32.totalorder %s21, 0
    %p84 = por %p82, %p83
    %p85 = scmp.ne.s32.totalorder %s73, %s74
    %p86 = scmp.eq.s32.totalorder %s22, 1
    %p87 = por %p85, %p86
    %p89 = scmp.ne.s32.totalorder %s74, %s88
    %p90 = scmp.eq.s32.totalorder %s22, 0
    %p91 = por %p89, %p90
    %s93 = sadd.s32 %s92, 1
    %p96 = scmp.eq.s32.totalorder %s16, 1
    %p97 = scmp.ne.s32.totalorder %s92, %s94
    %p98 = scmp.eq.s32.totalorder %s16, 0
    %p99 = por %p97, %p98
    %p100 = scmp.ne.s32.totalorder %s92, %s94
    %p101 = scmp.eq.s32.totalorder %s21, 1
    %p102 = por %p100, %p101
    %p103 = scmp.ne.s32.totalorder %s94, %s95
    %p104 = scmp.eq.s32.totalorder %s21, 0
    %p105 = por %p103, %p104
    %p106 = scmp.ne.s32.totalorder %s94, %s95
    %p107 = scmp.eq.s32.totalorder %s22, 1
    %p108 = por %p106, %p107
    %p110 = scmp.ne.s32.totalorder %s95, %s109
    %p111 = scmp.eq.s32.totalorder %s22, 0
    %p112 = por %p110, %p111
    %s114 = sadd.s32 %s113, 1
    %p117 = scmp.eq.s32.totalorder %s16, 1
    %p118 = scmp.ne.s32.totalorder %s113, %s115
    %p119 = scmp.eq.s32.totalorder %s16, 0
    %p120 = por %p118, %p119
    %p121 = scmp.ne.s32.totalorder %s113, %s115
    %p122 = scmp.eq.s32.totalorder %s21, 1
    %p123 = por %p121, %p122
    %p124 = scmp.ne.s32.totalorder %s115, %s116
    %p125 = scmp.eq.s32.totalorder %s21, 0
    %p126 = por %p124, %p125
    %p127 = scmp.ne.s32.totalorder %s115, %s116
    %p128 = scmp.eq.s32.totalorder %s22, 1
    %p129 = por %p127, %p128
    %p131 = scmp.ne.s32.totalorder %s116, %s130
    %p132 = scmp.eq.s32.totalorder %s22, 0
    %p133 = por %p131, %p132
    %s135 = sadd.s32 %s134, 1
    %p138 = scmp.eq.s32.totalorder %s16, 1
    %p139 = scmp.ne.s32.totalorder %s134, %s136
    %p140 = scmp.eq.s32.totalorder %s16, 0
    %p141 = por %p139, %p140
    %p142 = scmp.ne.s32.totalorder %s134, %s136
    %p143 = scmp.eq.s32.totalorder %s21, 1
    %p144 = por %p142, %p143
    %p145 = scmp.ne.s32.totalorder %s136, %s137
    %p146 = scmp.eq.s32.totalorder %s21, 0
    %p147 = por %p145, %p146
    %p148 = scmp.ne.s32.totalorder %s136, %s137
    %p149 = scmp.eq.s32.totalorder %s22, 1
    %p150 = por %p148, %p149
    %p152 = scmp.ne.s32.totalorder %s137, %s151
    %p153 = scmp.eq.s32.totalorder %s22, 0
    %p154 = por %p152, %p153
    %s156 = sadd.s32 %s155, 1
    %p159 = scmp.eq.s32.totalorder %s16, 1
    %p160 = scmp.ne.s32.totalorder %s155, %s157
    %p161 = scmp.eq.s32.totalorder %s16, 0
    %p162 = por %p160, %p161
    %p163 = scmp.ne.s32.totalorder %s155, %s157
    %p164 = scmp.eq.s32.totalorder %s21, 1
    %p165 = por %p163, %p164
    %p166 = scmp.ne.s32.totalorder %s157, %s158
    %p167 = scmp.eq.s32.totalorder %s21, 0
    %p168 = por %p166, %p167
    %p169 = scmp.ne.s32.totalorder %s157, %s158
    %p170 = scmp.eq.s32.totalorder %s22, 1
    %p171 = por %p169, %p170
    %p173 = scmp.ne.s32.totalorder %s158, %s172
    %p174 = scmp.eq.s32.totalorder %s22, 0
    %p175 = por %p173, %p174
    %s177 = sadd.s32 %s176, 1
    %p180 = scmp.eq.s32.totalorder %s16, 1
    %p181 = scmp.ne.s32.totalorder %s176, %s178
    %p182 = scmp.eq.s32.totalorder %s16, 0
    %p183 = por %p181, %p182
    %p184 = scmp.ne.s32.totalorder %s176, %s178
    %p185 = scmp.eq.s32.totalorder %s21, 1
    %p186 = por %p184, %p185
    %p187 = scmp.ne.s32.totalorder %s178, %s179
    %p188 = scmp.eq.s32.totalorder %s21, 0
    %p189 = por %p187, %p188
    %p190 = scmp.ne.s32.totalorder %s178, %s179
    %p191 = scmp.eq.s32.totalorder %s22, 1
    %p192 = por %p190, %p191
    %p194 = scmp.ne.s32.totalorder %s179, %s193
    %p195 = scmp.eq.s32.totalorder %s22, 0
    %p196 = por %p194, %p195
    %s197 = ssub.s32 %s16, %s23
    %p198 = scmp.eq.s32.totalorder %s197, 0
    %s200 = sadd.s32 %s199, 1
    %s201 = scalar_select %p198, %s199, %s200
    %p204 = pneg %p198
    %p205 = scmp.eq.s32.totalorder %s16, 1
    %p206 = por %p204, %p205
    %p207 = scmp.ne.s32.totalorder %s199, %s202
    %p208 = scmp.eq.s32.totalorder %s16, 0
    %p209 = por %p207, %p208
    %p210 = scmp.ne.s32.totalorder %s199, %s202
    %p211 = scmp.eq.s32.totalorder %s21, 1
    %p212 = por %p210, %p211
    %p213 = scmp.ne.s32.totalorder %s202, %s203
    %p214 = scmp.eq.s32.totalorder %s21, 0
    %p215 = por %p213, %p214
    %p216 = scmp.ne.s32.totalorder %s202, %s203
    %p217 = scmp.eq.s32.totalorder %s22, 1
    %p218 = por %p216, %p217
    %p220 = scmp.ne.s32.totalorder %s203, %s219
    %p221 = scmp.eq.s32.totalorder %s22, 0
    %p222 = por %p220, %p221
    %s223 = ssub.s32 %s16, %s23
    %p224 = scmp.eq.s32.totalorder %s223, 0
    %s226 = sadd.s32 %s225, 1
    %s227 = scalar_select %p224, %s225, %s226
    %p230 = pneg %p224
    %p231 = scmp.eq.s32.totalorder %s16, 1
    %p232 = por %p230, %p231
    %p233 = scmp.ne.s32.totalorder %s225, %s228
    %p234 = scmp.eq.s32.totalorder %s16, 0
    %p235 = por %p233, %p234
    %p236 = scmp.ne.s32.totalorder %s225, %s228
    %p237 = scmp.eq.s32.totalorder %s21, 1
    %p238 = por %p236, %p237
    %p239 = scmp.ne.s32.totalorder %s228, %s229
    %p240 = scmp.eq.s32.totalorder %s21, 0
    %p241 = por %p239, %p240
    %p242 = scmp.ne.s32.totalorder %s228, %s229
    %p243 = scmp.eq.s32.totalorder %s22, 1
    %p244 = por %p242, %p243
    %p246 = scmp.ne.s32.totalorder %s229, %s245
    %p247 = scmp.eq.s32.totalorder %s22, 0
    %p248 = por %p246, %p247
    %p249 = scmp.le.s32.totalorder 1, %s16
    %p250 = scmp.lt.s32.totalorder %s16, 3
    %p251 = pnand %p249, %p250
    %p252 = pneg %p251
    // Predicated region
    $region9: #{etds_forward.1} parent=5 // pred_check
      _
    $region10: #{etds_forward.1} parent=5 // pred_check_branch
      %254 = sbr.rel (%p251) target = $region12
    $region11: #{etds_forward.1} parent=5 // pred_region
      %s255 = ssub.s32 %s16, 1
      // Predicated region
      $region13: #{etds_forward.1} parent=11 // pred_check
        %p256 = pneg %p37
      $region14: #{etds_forward.1} parent=11 // pred_check_branch
        %258 = sbr.rel (%p256) target = $region16
      $region15: #{etds_forward.1} parent=11 // pred_region
        _
      $region16: #{etds_forward.1} parent=11 // pred_fallthru
        _
      // Predicated region
      $region17: #{etds_forward.1} parent=11 // pred_check
        %p259 = pneg %p84
      $region18: #{etds_forward.1} parent=11 // pred_check_branch
        %261 = sbr.rel (%p259) target = $region20
      $region19: #{etds_forward.1} parent=11 // pred_region
        _
      $region20: #{etds_forward.1} parent=11 // pred_fallthru
        _
      // Predicated region
      $region21: #{etds_forward.1} parent=11 // pred_check
        %p262 = pneg %p105
      $region22: #{etds_forward.1} parent=11 // pred_check_branch
        %264 = sbr.rel (%p262) target = $region24
      $region23: #{etds_forward.1} parent=11 // pred_region
        _
      $region24: #{etds_forward.1} parent=11 // pred_fallthru
        _
      // Predicated region
      $region25: #{etds_forward.1} parent=11 // pred_check
        %p265 = pneg %p126
      $region26: #{etds_forward.1} parent=11 // pred_check_branch
        %267 = sbr.rel (%p265) target = $region28
      $region27: #{etds_forward.1} parent=11 // pred_region
        _
      $region28: #{etds_forward.1} parent=11 // pred_fallthru
        _
      // Predicated region
      $region29: #{etds_forward.1} parent=11 // pred_check
        %p268 = pneg %p147
      $region30: #{etds_forward.1} parent=11 // pred_check_branch
        %270 = sbr.rel (%p268) target = $region32
      $region31: #{etds_forward.1} parent=11 // pred_region
        _
      $region32: #{etds_forward.1} parent=11 // pred_fallthru
        _
      // Predicated region
      $region33: #{etds_forward.1} parent=11 // pred_check
        %p271 = pneg %p168
      $region34: #{etds_forward.1} parent=11 // pred_check_branch
        %273 = sbr.rel (%p271) target = $region36
      $region35: #{etds_forward.1} parent=11 // pred_region
        _
      $region36: #{etds_forward.1} parent=11 // pred_fallthru
        _
      // Predicated region
      $region37: #{etds_forward.1} parent=11 // pred_check
        %p274 = pneg %p189
      $region38: #{etds_forward.1} parent=11 // pred_check_branch
        %276 = sbr.rel (%p274) target = $region40
      $region39: #{etds_forward.1} parent=11 // pred_region
        _
      $region40: #{etds_forward.1} parent=11 // pred_fallthru
        _
    $region12: #{etds_forward.1} parent=5 // pred_fallthru
      _
    %p277 = scmp.lt.s32.totalorder %s16, 2
    // Predicated region
    $region41: #{etds_forward.1} parent=5 // pred_check
      %p278 = pneg %p277
    $region42: #{etds_forward.1} parent=5 // pred_check_branch
      %280 = sbr.rel (%p278) target = $region44
    $region43: #{etds_forward.1} parent=5 // pred_region
      // Predicated region
      $region45: #{etds_forward.1} parent=43 // pred_check
        %p281 = pneg %p57
      $region46: #{etds_forward.1} parent=43 // pred_check_branch
        %283 = sbr.rel (%p281) target = $region48
      $region47: #{etds_forward.1} parent=43 // pred_region
        %p284 = scmp.lt.s32.totalorder %s16, 1
        %s285 = scalar_select %p284, %s16, 1
        %s286 = smul.addr %s285, 4
        %s287 = smul.addr %s286, 8
        %s288 = scalar_lea.vmem %s1, %s287
      $region48: #{etds_forward.1} parent=43 // pred_fallthru
        _
    $region44: #{etds_forward.1} parent=5 // pred_fallthru
      _
    %p289 = scmp.le.s32.totalorder 1, %s16
    %p290 = scmp.lt.s32.totalorder %s16, 3
    %p291 = pnand %p289, %p290
    %p292 = pneg %p291
    // Predicated region
    $region49: #{etds_forward.1} parent=5 // pred_check
      _
    $region50: #{etds_forward.1} parent=5 // pred_check_branch
      %294 = sbr.rel (%p291) target = $region52
    $region51: #{etds_forward.1} parent=5 // pred_region
      %s295 = ssub.s32 %s16, 1
      %p296 = pneg %p37
      %p297 = pneg %p34
      %p298 = scmp.lt.s32.totalorder %s21, 1
      %s299 = scalar_select %p298, %s21, 1
      %s300 = smul.addr %s299, 4
      %s301 = smul.addr %s300, 8
      %s302 = scalar_lea.vmem %s1, %s301
      %p303 = pneg %p63
      %p304 = pneg %p60
      %p305 = pneg %p84
      %p306 = pneg %p81
      %p307 = pneg %p105
      %p308 = pneg %p102
      %p309 = pneg %p126
      %p310 = pneg %p123
      %p311 = pneg %p147
      %p312 = pneg %p144
      %p313 = pneg %p168
      %p314 = pneg %p165
      %p315 = pneg %p189
      %p316 = pneg %p186
      %p317 = pneg %p215
      %p318 = pneg %p212
      %p319 = scmp.lt.s32.totalorder %s21, 1
      %s320 = scalar_select %p319, %s21, 1
      %s321 = smul.addr %s320, 8
      %s322 = smul.addr %s321, 8
      %s323 = scalar_lea.vmem %s8, %s322
      %p324 = pneg %p241
      %p325 = pneg %p238
      %p326 = scmp.lt.s32.totalorder %s21, 1
      %s327 = scalar_select %p326, %s21, 1
      %s328 = smul.addr %s327, 8
      %s329 = smul.addr %s328, 8
      %s330 = scalar_lea.vmem %s9, %s329
      %p331 = scmp.lt.s32.totalorder %s21, 1
      %s332 = scalar_select %p331, %s21, 1
      %s333 = smul.addr %s332, 4
      %s334 = smul.addr %s333, 8
      %s335 = scalar_lea.vmem %s1, %s334
      %p336 = scmp.lt.s32.totalorder %s21, 1
      %s337 = scalar_select %p336, %s21, 1
      %s338 = smul.addr %s337, 8
      %s339 = smul.addr %s338, 8
      %s340 = scalar_lea.vmem %s8, %s339
      %p341 = scmp.lt.s32.totalorder %s21, 1
      %s342 = scalar_select %p341, %s21, 1
      %s343 = smul.addr %s342, 8
      %s344 = smul.addr %s343, 8
      %s345 = scalar_lea.vmem %s9, %s344
      %v347 = vld [vmem:[%s335] sm:$0xff]
      %v348 = vld [vmem:[%s335 + $0x8] sm:$0xff]
      %v349 = vld [vmem:[%s335 + $0x10] sm:$0xff]
      %v350 = vld [vmem:[%s335 + $0x18] sm:$0xff]
      %v351 = vld [vmem:[%s2] sm:$0xf]
      %v352 = vld [vmem:[%s2 + $0x4] sm:$0xf]
      %v353 = vld [vmem:[%s2 + $0x8] sm:$0xf]
      %v354 = vld [vmem:[%s2 + $0xc] sm:$0xf]
      %v355 = vld [vmem:[%s2 + $0x10] sm:$0xf]
      %v356 = vld [vmem:[%s2 + $0x14] sm:$0xf]
      %v357 = vld [vmem:[%s2 + $0x18] sm:$0xf]
      %v358 = vld [vmem:[%s2 + $0x1c] sm:$0xf]
      %v359 = vld [vmem:[%s2 + $0x20] sm:$0xf]
      %v360 = vld [vmem:[%s2 + $0x24] sm:$0xf]
      %v361 = vld [vmem:[%s2 + $0x28] sm:$0xf]
      %v362 = vld [vmem:[%s2 + $0x2c] sm:$0xf]
      %v363 = vld [vmem:[%s2 + $0x30] sm:$0xf]
      %v364 = vld [vmem:[%s2 + $0x34] sm:$0xf]
      %v365 = vld [vmem:[%s2 + $0x38] sm:$0xf]
      %v366 = vld [vmem:[%s2 + $0x3c] sm:$0xf]
      %v367 = vld [vmem:[%s2 + $0x40] sm:$0xf]
      %v368 = vld [vmem:[%s2 + $0x44] sm:$0xf]
      %v369 = vld [vmem:[%s3] sm:$0xff]
      %v370 = vld [vmem:[%s3 + $0x8] sm:$0xff]
      %371 = vrot.lane.b32.xlu0 %v347, 17
      %v372 = vpop.permute.xlu0 %371
      %373 = vrot.lane.b32.xlu0 %v348, 17
      %v374 = vpop.permute.xlu0 %373
      %375 = vrot.lane.b32.xlu0 %v349, 17
      %v376 = vpop.permute.xlu0 %375
      %377 = vrot.lane.b32.xlu0 %v350, 17
      %v378 = vpop.permute.xlu0 %377
      %v379 = vlaneseq
      %v380 = vand.u32 %v379, 127
      %vm381 = vcmp.lt.s32.totalorder %v380, 17
      %v382 = vsel %vm381, %v376, %v378
      %v383 = vsel %vm381, %v374, %v376
      %v384 = vsel %vm381, %v372, %v374
      %v385 = vsel %vm381, %v378, %v372
      %v386 = vld [vmem:[%s0] sm:$0xf]
      %v388 = vlaneseq
      %v389 = vshrl.u32 %v388, 7
      %v390 = vsub.s32 0, %v389
      %v391 = vrot.slane %v386, %v390
      %v392 = vlaneseq
      %v393 = vshrl.u32 %v392, 7
      %v394 = vsub.s32 1, %v393
      %v395 = vrot.slane %v386, %v394
      %v396 = vlaneseq
      %v397 = vshrl.u32 %v396, 7
      %v398 = vsub.s32 2, %v397
      %v399 = vrot.slane %v386, %v398
      %v400 = vlaneseq
      %v401 = vshrl.u32 %v400, 7
      %v402 = vsub.s32 3, %v401
      %v403 = vrot.slane %v386, %v402
      %v408 = vmul.f32 %v385, %v391
      %v409 = vmul.f32 %v384, %v395
      %v410 = vmul.f32 %v383, %v399
      %v411 = vmul.f32 %v382, %v403
      %v412 = vpack.c.bf16 %v408, %v408
      %v413 = vpack.c.bf16 %v409, %v409
      %v414 = vpack.c.bf16 %v410, %v410
      %v415 = vpack.c.bf16 %v411, %v411
      %416 = vrot.lane.b32.xlu0 %v347, 16
      %v417 = vpop.permute.xlu0 %416
      %418 = vrot.lane.b32.xlu0 %v348, 16
      %v419 = vpop.permute.xlu0 %418
      %420 = vrot.lane.b32.xlu0 %v349, 16
      %v421 = vpop.permute.xlu0 %420
      %422 = vrot.lane.b32.xlu0 %v350, 16
      %v423 = vpop.permute.xlu0 %422
      %vm424 = vcmp.lt.s32.totalorder %v380, 16
      %v425 = vsel %vm424, %v421, %v423
      %v426 = vsel %vm424, %v419, %v421
      %v427 = vsel %vm424, %v417, %v419
      %v428 = vsel %vm424, %v423, %v417
      %s429 = scalar_lea.vmem %s0, 4
      %v430 = vld [vmem:[%s429] sm:$0xf]
      %v432 = vlaneseq
      %v433 = vshrl.u32 %v432, 7
      %v434 = vsub.s32 0, %v433
      %v435 = vrot.slane %v430, %v434
      %v436 = vlaneseq
      %v437 = vshrl.u32 %v436, 7
      %v438 = vsub.s32 1, %v437
      %v439 = vrot.slane %v430, %v438
      %v440 = vlaneseq
      %v441 = vshrl.u32 %v440, 7
      %v442 = vsub.s32 2, %v441
      %v443 = vrot.slane %v430, %v442
      %v444 = vlaneseq
      %v445 = vshrl.u32 %v444, 7
      %v446 = vsub.s32 3, %v445
      %v447 = vrot.slane %v430, %v446
      %v452 = vmul.f32 %v428, %v435
      %v453 = vmul.f32 %v427, %v439
      %v454 = vmul.f32 %v426, %v443
      %v455 = vmul.f32 %v425, %v447
      %v456 = vpack.c.bf16 %v452, %v452
      %v457 = vpack.c.bf16 %v453, %v453
      %v458 = vpack.c.bf16 %v454, %v454
      %v459 = vpack.c.bf16 %v455, %v455
      %v462 = vunpack.c.l.b16 %v353
      %v463 = vunpack.c.l.b16 %v354
      %v464 = vpack.c.b16 %v463, %v462
      %vm465 = vcmask 64512
      %v467 = vsel %vm465, %v464, 0
      %vm469 = vcmask 1043456
      %v471 = vsel %vm469, %v456, 0
      %v474 = vsel %vm469, %v457, 0
      %v477 = vsel %vm469, %v458, 0
      %v480 = vsel %vm469, %v459, 0
      %482 = vmatprep.subr.bf16.mxu0 %v474
      %483 = vmatpush1.bf16.msra.mxu0 %v471
      %484 = vmatprep.subr.bf16.mxu0 0
      %485 = vmatpush1.bf16.msra.mxu0 0
      %486 = vmatprep.subr.bf16.mxu0 0
      %487 = vmatpush1.bf16.msra.mxu0 0
      %488 = vmatprep.subr.bf16.mxu0 0
      %489 = vmatpush1.bf16.msra.mxu0 0
      %490 = vmatprep.subr.bf16.mxu0 0
      %491 = vmatpush1.bf16.msra.mxu0 0
      %492 = vmatprep.subr.bf16.mxu0 0
      %493 = vmatpush1.bf16.msra.mxu0 0
      %494 = vmatprep.subr.bf16.mxu0 0
      %495 = vmatpush1.bf16.msra.mxu0 0
      %496 = vmatprep.subr.bf16.mxu0 0
      %497 = vmatpush1.bf16.msra.mxu0 0
      %498 = vmatprep.subr.bf16.mxu0 0
      %499 = vmatpush1.bf16.msra.mxu0 0
      %500 = vmatprep.subr.bf16.mxu0 0
      %501 = vmatpush1.bf16.msra.mxu0 0
      %502 = vmatprep.subr.bf16.mxu0 0
      %503 = vmatpush1.bf16.msra.mxu0 0
      %504 = vmatprep.subr.bf16.mxu0 0
      %505 = vmatpush1.bf16.msra.mxu0 0
      %506 = vmatprep.subr.bf16.mxu0 0
      %507 = vmatpush1.bf16.msra.mxu0 0
      %508 = vmatprep.subr.bf16.mxu0 0
      %509 = vmatpush1.bf16.msra.mxu0 0
      %510 = vmatprep.subr.bf16.mxu0 0
      %511 = vmatpush1.bf16.msra.mxu0 0
      %512 = vmatprep.subr.bf16.mxu0 0
      %513 = vmatpush1.bf16.msra.mxu0 0
      %514 = vmatprep.mubr.bf16.mxu0 0
      %515 = vmatmul.mubr.bf16.gmra.mrb[0].mxu0 %v467
      %v516 = vpop.f32.mrb[0].mxu0
      %v517 = vadd.f32 0.0, %v516
      %v518 = vpop.f32.mrb[0].mxu0
      %v519 = vadd.f32 0.0, %v518
      %v520 = vpop.f32.mrb[0].mxu0
      %v521 = vadd.f32 0.0, %v520
      %v522 = vpop.f32.mrb[0].mxu0
      %v523 = vadd.f32 0.0, %v522
      %524 = vdwg.mxu0
      %525 = vmatprep.subr.bf16.mxu0 %v480
      %526 = vmatpush1.bf16.msra.mxu0 %v477
      %527 = vmatprep.subr.bf16.mxu0 0
      %528 = vmatpush1.bf16.msra.mxu0 0
      %529 = vmatprep.subr.bf16.mxu0 0
      %530 = vmatpush1.bf16.msra.mxu0 0
      %531 = vmatprep.subr.bf16.mxu0 0
      %532 = vmatpush1.bf16.msra.mxu0 0
      %533 = vmatprep.subr.bf16.mxu0 0
      %534 = vmatpush1.bf16.msra.mxu0 0
      %535 = vmatprep.subr.bf16.mxu0 0
      %536 = vmatpush1.bf16.msra.mxu0 0
      %537 = vmatprep.subr.bf16.mxu0 0
      %538 = vmatpush1.bf16.msra.mxu0 0
      %539 = vmatprep.subr.bf16.mxu0 0
      %540 = vmatpush1.bf16.msra.mxu0 0
      %541 = vmatprep.subr.bf16.mxu0 0
      %542 = vmatpush1.bf16.msra.mxu0 0
      %543 = vmatprep.subr.bf16.mxu0 0
      %544 = vmatpush1.bf16.msra.mxu0 0
      %545 = vmatprep.subr.bf16.mxu0 0
      %546 = vmatpush1.bf16.msra.mxu0 0
      %547 = vmatprep.subr.bf16.mxu0 0
      %548 = vmatpush1.bf16.msra.mxu0 0
      %549 = vmatprep.subr.bf16.mxu0 0
      %550 = vmatpush1.bf16.msra.mxu0 0
      %551 = vmatprep.subr.bf16.mxu0 0
      %552 = vmatpush1.bf16.msra.mxu0 0
      %553 = vmatprep.subr.bf16.mxu0 0
      %554 = vmatpush1.bf16.msra.mxu0 0
      %555 = vmatprep.subr.bf16.mxu0 0
      %556 = vmatpush1.bf16.msra.mxu0 0
      %557 = vmatprep.mubr.bf16.mxu0 0
      %558 = vmatmul.mubr.bf16.gmra.mrb[0].mxu0 %v467
      %v559 = vpop.f32.mrb[0].mxu0
      %v560 = vadd.f32 0.0, %v559
      %v561 = vpop.f32.mrb[0].mxu0
      %v562 = vadd.f32 0.0, %v561
      %v563 = vpop.f32.mrb[0].mxu0
      %v564 = vadd.f32 0.0, %v563
      %v565 = vpop.f32.mrb[0].mxu0
      %v566 = vadd.f32 0.0, %v565
      %567 = vdwg.mxu0
      %v570 = vunpack.c.l.b16 %v351
      %v571 = vunpack.c.l.b16 %v352
      %v572 = vpack.c.b16 %v571, %v570
      %v574 = vsel %vm465, %v572, 0
      %v577 = vsel %vm469, %v412, 0
      %v580 = vsel %vm469, %v413, 0
      %v583 = vsel %vm469, %v414, 0
      %v586 = vsel %vm469, %v415, 0
      %588 = vmatprep.subr.bf16.mxu0 %v580
      %589 = vmatpush1.bf16.msra.mxu0 %v577
      %590 = vmatprep.subr.bf16.mxu0 0
      %591 = vmatpush1.bf16.msra.mxu0 0
      %592 = vmatprep.subr.bf16.mxu0 0
      %593 = vmatpush1.bf16.msra.mxu0 0
      %594 = vmatprep.subr.bf16.mxu0 0
      %595 = vmatpush1.bf16.msra.mxu0 0
      %596 = vmatprep.subr.bf16.mxu0 0
      %597 = vmatpush1.bf16.msra.mxu0 0
      %598 = vmatprep.subr.bf16.mxu0 0
      %599 = vmatpush1.bf16.msra.mxu0 0
      %600 = vmatprep.subr.bf16.mxu0 0
      %601 = vmatpush1.bf16.msra.mxu0 0
      %602 = vmatprep.subr.bf16.mxu0 0
      %603 = vmatpush1.bf16.msra.mxu0 0
      %604 = vmatprep.subr.bf16.mxu0 0
      %605 = vmatpush1.bf16.msra.mxu0 0
      %606 = vmatprep.subr.bf16.mxu0 0
      %607 = vmatpush1.bf16.msra.mxu0 0
      %608 = vmatprep.subr.bf16.mxu0 0
      %609 = vmatpush1.bf16.msra.mxu0 0
      %610 = vmatprep.subr.bf16.mxu0 0
      %611 = vmatpush1.bf16.msra.mxu0 0
      %612 = vmatprep.subr.bf16.mxu0 0
      %613 = vmatpush1.bf16.msra.mxu0 0
      %614 = vmatprep.subr.bf16.mxu0 0
      %615 = vmatpush1.bf16.msra.mxu0 0
      %616 = vmatprep.subr.bf16.mxu0 0
      %617 = vmatpush1.bf16.msra.mxu0 0
      %618 = vmatprep.subr.bf16.mxu0 0
      %619 = vmatpush1.bf16.msra.mxu0 0
      %620 = vmatprep.mubr.bf16.mxu0 0
      %621 = vmatmul.mubr.bf16.gmra.mrb[0].mxu0 %v574
      %v622 = vpop.f32.mrb[0].mxu0
      %v623 = vadd.f32 %v517, %v622
      %v624 = vpop.f32.mrb[0].mxu0
      %v625 = vadd.f32 %v519, %v624
      %v626 = vpop.f32.mrb[0].mxu0
      %v627 = vadd.f32 %v521, %v626
      %v628 = vpop.f32.mrb[0].mxu0
      %v629 = vadd.f32 %v523, %v628
      %630 = vdwg.mxu0
      %631 = vmatprep.subr.bf16.mxu0 %v586
      %632 = vmatpush1.bf16.msra.mxu0 %v583
      %633 = vmatprep.subr.bf16.mxu0 0
      %634 = vmatpush1.bf16.msra.mxu0 0
      %635 = vmatprep.subr.bf16.mxu0 0
      %636 = vmatpush1.bf16.msra.mxu0 0
      %637 = vmatprep.subr.bf16.mxu0 0
      %638 = vmatpush1.bf16.msra.mxu0 0
      %639 = vmatprep.subr.bf16.mxu0 0
      %640 = vmatpush1.bf16.msra.mxu0 0
      %641 = vmatprep.subr.bf16.mxu0 0
      %642 = vmatpush1.bf16.msra.mxu0 0
      %643 = vmatprep.subr.bf16.mxu0 0
      %644 = vmatpush1.bf16.msra.mxu0 0
      %645 = vmatprep.subr.bf16.mxu0 0
      %646 = vmatpush1.bf16.msra.mxu0 0
      %647 = vmatprep.subr.bf16.mxu0 0
      %648 = vmatpush1.bf16.msra.mxu0 0
      %649 = vmatprep.subr.bf16.mxu0 0
      %650 = vmatpush1.bf16.msra.mxu0 0
      %651 = vmatprep.subr.bf16.mxu0 0
      %652 = vmatpush1.bf16.msra.mxu0 0
      %653 = vmatprep.subr.bf16.mxu0 0
      %654 = vmatpush1.bf16.msra.mxu0 0
      %655 = vmatprep.subr.bf16.mxu0 0
      %656 = vmatpush1.bf16.msra.mxu0 0
      %657 = vmatprep.subr.bf16.mxu0 0
      %658 = vmatpush1.bf16.msra.mxu0 0
      %659 = vmatprep.subr.bf16.mxu0 0
      %660 = vmatpush1.bf16.msra.mxu0 0
      %661 = vmatprep.subr.bf16.mxu0 0
      %662 = vmatpush1.bf16.msra.mxu0 0
      %663 = vmatprep.mubr.bf16.mxu0 0
      %664 = vmatmul.mubr.bf16.gmra.mrb[0].mxu0 %v574
      %v665 = vpop.f32.mrb[0].mxu0
      %v666 = vadd.f32 %v560, %v665
      %v667 = vpop.f32.mrb[0].mxu0
      %v668 = vadd.f32 %v562, %v667
      %v669 = vpop.f32.mrb[0].mxu0
      %v670 = vadd.f32 %v564, %v669
      %v671 = vpop.f32.mrb[0].mxu0
      %v672 = vadd.f32 %v566, %v671
      %673 = vdwg.mxu0
      %674 = vrot.lane.b32.xlu0 %v347, 15
      %v675 = vpop.permute.xlu0 %674
      %676 = vrot.lane.b32.xlu0 %v348, 15
      %v677 = vpop.permute.xlu0 %676
      %678 = vrot.lane.b32.xlu0 %v349, 15
      %v679 = vpop.permute.xlu0 %678
      %680 = vrot.lane.b32.xlu0 %v350, 15
      %v681 = vpop.permute.xlu0 %680
      %vm682 = vcmp.lt.s32.totalorder %v380, 15
      %v683 = vsel %vm682, %v679, %v681
      %v684 = vsel %vm682, %v677, %v679
      %v685 = vsel %vm682, %v675, %v677
      %v686 = vsel %vm682, %v681, %v675
      %s687 = scalar_lea.vmem %s0, 8
      %v688 = vld [vmem:[%s687] sm:$0xf]
      %v690 = vlaneseq
      %v691 = vshrl.u32 %v690, 7
      %v692 = vsub.s32 0, %v691
      %v693 = vrot.slane %v688, %v692
      %v694 = vlaneseq
      %v695 = vshrl.u32 %v694, 7
      %v696 = vsub.s32 1, %v695
      %v697 = vrot.slane %v688, %v696
      %v698 = vlaneseq
      %v699 = vshrl.u32 %v698, 7
      %v700 = vsub.s32 2, %v699
      %v701 = vrot.slane %v688, %v700
      %v702 = vlaneseq
      %v703 = vshrl.u32 %v702, 7
      %v704 = vsub.s32 3, %v703
      %v705 = vrot.slane %v688, %v704
      %v710 = vmul.f32 %v686, %v693
      %v711 = vmul.f32 %v685, %v697
      %v712 = vmul.f32 %v684, %v701
      %v713 = vmul.f32 %v683, %v705
      %v714 = vpack.c.bf16 %v710, %v710
      %v715 = vpack.c.bf16 %v711, %v711
      %v716 = vpack.c.bf16 %v712, %v712
      %v717 = vpack.c.bf16 %v713, %v713
      %v720 = vunpack.c.l.b16 %v355
      %v721 = vunpack.c.l.b16 %v356
      %v722 = vpack.c.b16 %v721, %v720
      %v724 = vsel %vm465, %v722, 0
      %v727 = vsel %vm469, %v714, 0
      %v730 = vsel %vm469, %v715, 0
      %v733 = vsel %vm469, %v716, 0
      %v736 = vsel %vm469, %v717, 0
      %738 = vmatprep.subr.bf16.mxu0 %v730
      %739 = vmatpush1.bf16.msra.mxu0 %v727
      %740 = vmatprep.subr.bf16.mxu0 0
      %741 = vmatpush1.bf16.msra.mxu0 0
      %742 = vmatprep.subr.bf16.mxu0 0
      %743 = vmatpush1.bf16.msra.mxu0 0
      %744 = vmatprep.subr.bf16.mxu0 0
      %745 = vmatpush1.bf16.msra.mxu0 0
      %746 = vmatprep.subr.bf16.mxu0 0
      %747 = vmatpush1.bf16.msra.mxu0 0
      %748 = vmatprep.subr.bf16.mxu0 0
      %749 = vmatpush1.bf16.msra.mxu0 0
      %750 = vmatprep.subr.bf16.mxu0 0
      %751 = vmatpush1.bf16.msra.mxu0 0
      %752 = vmatprep.subr.bf16.mxu0 0
      %753 = vmatpush1.bf16.msra.mxu0 0
      %754 = vmatprep.subr.bf16.mxu0 0
      %755 = vmatpush1.bf16.msra.mxu0 0
      %756 = vmatprep.subr.bf16.mxu0 0
      %757 = vmatpush1.bf16.msra.mxu0 0
      %758 = vmatprep.subr.bf16.mxu0 0
      %759 = vmatpush1.bf16.msra.mxu0 0
      %760 = vmatprep.subr.bf16.mxu0 0
      %761 = vmatpush1.bf16.msra.mxu0 0
      %762 = vmatprep.subr.bf16.mxu0 0
      %763 = vmatpush1.bf16.msra.mxu0 0
      %764 = vmatprep.subr.bf16.mxu0 0
      %765 = vmatpush1.bf16.msra.mxu0 0
      %766 = vmatprep.subr.bf16.mxu0 0
      %767 = vmatpush1.bf16.msra.mxu0 0
      %768 = vmatprep.subr.bf16.mxu0 0
      %769 = vmatpush1.bf16.msra.mxu0 0
      %770 = vmatprep.mubr.bf16.mxu0 0
      %771 = vmatmul.mubr.bf16.gmra.mrb[0].mxu0 %v724
      %v772 = vpop.f32.mrb[0].mxu0
      %v773 = vadd.f32 0.0, %v772
      %v774 = vpop.f32.mrb[0].mxu0
      %v775 = vadd.f32 0.0, %v774
      %v776 = vpop.f32.mrb[0].mxu0
      %v777 = vadd.f32 0.0, %v776
      %v778 = vpop.f32.mrb[0].mxu0
      %v779 = vadd.f32 0.0, %v778
      %780 = vdwg.mxu0
      %781 = vmatprep.subr.bf16.mxu0 %v736
      %782 = vmatpush1.bf16.msra.mxu0 %v733
      %783 = vmatprep.subr.bf16.mxu0 0
      %784 = vmatpush1.bf16.msra.mxu0 0
      %785 = vmatprep.subr.bf16.mxu0 0
      %786 = vmatpush1.bf16.msra.mxu0 0
      %787 = vmatprep.subr.bf16.mxu0 0
      %788 = vmatpush1.bf16.msra.mxu0 0
      %789 = vmatprep.subr.bf16.mxu0 0
      %790 = vmatpush1.bf16.msra.mxu0 0
      %791 = vmatprep.subr.bf16.mxu0 0
      %792 = vmatpush1.bf16.msra.mxu0 0
      %793 = vmatprep.subr.bf16.mxu0 0
      %794 = vmatpush1.bf16.msra.mxu0 0
      %795 = vmatprep.subr.bf16.mxu0 0
      %796 = vmatpush1.bf16.msra.mxu0 0
      %797 = vmatprep.subr.bf16.mxu0 0
      %798 = vmatpush1.bf16.msra.mxu0 0
      %799 = vmatprep.subr.bf16.mxu0 0
      %800 = vmatpush1.bf16.msra.mxu0 0
      %801 = vmatprep.subr.bf16.mxu0 0
      %802 = vmatpush1.bf16.msra.mxu0 0
      %803 = vmatprep.subr.bf16.mxu0 0
      %804 = vmatpush1.bf16.msra.mxu0 0
      %805 = vmatprep.subr.bf16.mxu0 0
      %806 = vmatpush1.bf16.msra.mxu0 0
      %807 = vmatprep.subr.bf16.mxu0 0
      %808 = vmatpush1.bf16.msra.mxu0 0
      %809 = vmatprep.subr.bf16.mxu0 0
      %810 = vmatpush1.bf16.msra.mxu0 0
      %811 = vmatprep.subr.bf16.mxu0 0
      %812 = vmatpush1.bf16.msra.mxu0 0
      %813 = vmatprep.mubr.bf16.mxu0 0
      %814 = vmatmul.mubr.bf16.gmra.mrb[0].mxu0 %v724
      %v815 = vpop.f32.mrb[0].mxu0
      %v816 = vadd.f32 0.0, %v815
      %v817 = vpop.f32.mrb[0].mxu0
      %v818 = vadd.f32 0.0, %v817
      %v819 = vpop.f32.mrb[0].mxu0
      %v820 = vadd.f32 0.0, %v819
      %v821 = vpop.f32.mrb[0].mxu0
      %v822 = vadd.f32 0.0, %v821
      %823 = vdwg.mxu0
      %v824 = vadd.f32 %v623, %v773
      %v825 = vadd.f32 %v625, %v775
      %v826 = vadd.f32 %v666, %v816
      %v827 = vadd.f32 %v668, %v818
      %v828 = vadd.f32 %v627, %v777
      %v829 = vadd.f32 %v629, %v779
      %v830 = vadd.f32 %v670, %v820
      %v831 = vadd.f32 %v672, %v822
      %832 = vrot.lane.b32.xlu0 %v347, 1
      %v833 = vpop.permute.xlu0 %832
      %834 = vrot.lane.b32.xlu0 %v348, 1
      %v835 = vpop.permute.xlu0 %834
      %836 = vrot.lane.b32.xlu0 %v349, 1
      %v837 = vpop.permute.xlu0 %836
      %838 = vrot.lane.b32.xlu0 %v350, 1
      %v839 = vpop.permute.xlu0 %838
      %vm840 = vcmp.lt.s32.totalorder %v380, 1
      %v841 = vsel %vm840, %v837, %v839
      %v842 = vsel %vm840, %v835, %v837
      %v843 = vsel %vm840, %v833, %v835
      %v844 = vsel %vm840, %v839, %v833
      %s845 = scalar_lea.vmem %s0, 12
      %v846 = vld [vmem:[%s845] sm:$0xf]
      %v848 = vlaneseq
      %v849 = vshrl.u32 %v848, 7
      %v850 = vsub.s32 0, %v849
      %v851 = vrot.slane %v846, %v850
      %v852 = vlaneseq
      %v853 = vshrl.u32 %v852, 7
      %v854 = vsub.s32 1, %v853
      %v855 = vrot.slane %v846, %v854
      %v856 = vlaneseq
      %v857 = vshrl.u32 %v856, 7
      %v858 = vsub.s32 2, %v857
      %v859 = vrot.slane %v846, %v858
      %v860 = vlaneseq
      %v861 = vshrl.u32 %v860, 7
      %v862 = vsub.s32 3, %v861
      %v863 = vrot.slane %v846, %v862
      %v868 = vmul.f32 %v844, %v851
      %v869 = vmul.f32 %v843, %v855
      %v870 = vmul.f32 %v842, %v859
      %v871 = vmul.f32 %v841, %v863
      %v872 = vpack.c.bf16 %v868, %v868
      %v873 = vpack.c.bf16 %v869, %v869
      %v874 = vpack.c.bf16 %v870, %v870
      %v875 = vpack.c.bf16 %v871, %v871
      %v878 = vunpack.c.l.b16 %v357
      %v879 = vunpack.c.l.b16 %v358
      %v880 = vpack.c.b16 %v879, %v878
      %v882 = vsel %vm465, %v880, 0
      %v885 = vsel %vm469, %v872, 0
      %v888 = vsel %vm469, %v873, 0
      %v891 = vsel %vm469, %v874, 0
      %v894 = vsel %vm469, %v875, 0
      %896 = vmatprep.subr.bf16.mxu0 %v888
      %897 = vmatpush1.bf16.msra.mxu0 %v885
      %898 = vmatprep.subr.bf16.mxu0 0
      %899 = vmatpush1.bf16.msra.mxu0 0
      %900 = vmatprep.subr.bf16.mxu0 0
      %901 = vmatpush1.bf16.msra.mxu0 0
      %902 = vmatprep.subr.bf16.mxu0 0
      %903 = vmatpush1.bf16.msra.mxu0 0
      %904 = vmatprep.subr.bf16.mxu0 0
      %905 = vmatpush1.bf16.msra.mxu0 0
      %906 = vmatprep.subr.bf16.mxu0 0
      %907 = vmatpush1.bf16.msra.mxu0 0
      %908 = vmatprep.subr.bf16.mxu0 0
      %909 = vmatpush1.bf16.msra.mxu0 0
      %910 = vmatprep.subr.bf16.mxu0 0
      %911 = vmatpush1.bf16.msra.mxu0 0
      %912 = vmatprep.subr.bf16.mxu0 0
      %913 = vmatpush1.bf16.msra.mxu0 0
      %914 = vmatprep.subr.bf16.mxu0 0
      %915 = vmatpush1.bf16.msra.mxu0 0
      %916 = vmatprep.subr.bf16.mxu0 0
      %917 = vmatpush1.bf16.msra.mxu0 0
      %918 = vmatprep.subr.bf16.mxu0 0
      %919 = vmatpush1.bf16.msra.mxu0 0
      %920 = vmatprep.subr.bf16.mxu0 0
      %921 = vmatpush1.bf16.msra.mxu0 0
      %922 = vmatprep.subr.bf16.mxu0 0
      %923 = vmatpush1.bf16.msra.mxu0 0
      %924 = vmatprep.subr.bf16.mxu0 0
      %925 = vmatpush1.bf16.msra.mxu0 0
      %926 = vmatprep.subr.bf16.mxu0 0
      %927 = vmatpush1.bf16.msra.mxu0 0
      %928 = vmatprep.mubr.bf16.mxu0 0
      %929 = vmatmul.mubr.bf16.gmra.mrb[0].mxu0 %v882
      %v930 = vpop.f32.mrb[0].mxu0
      %v931 = vadd.f32 0.0, %v930
      %v932 = vpop.f32.mrb[0].mxu0
      %v933 = vadd.f32 0.0, %v932
      %v934 = vpop.f32.mrb[0].mxu0
      %v935 = vadd.f32 0.0, %v934
      %v936 = vpop.f32.mrb[0].mxu0
      %v937 = vadd.f32 0.0, %v936
      %938 = vdwg.mxu0
      %939 = vmatprep.subr.bf16.mxu0 %v894
      %940 = vmatpush1.bf16.msra.mxu0 %v891
      %941 = vmatprep.subr.bf16.mxu0 0
      %942 = vmatpush1.bf16.msra.mxu0 0
      %943 = vmatprep.subr.bf16.mxu0 0
      %944 = vmatpush1.bf16.msra.mxu0 0
      %945 = vmatprep.subr.bf16.mxu0 0
      %946 = vmatpush1.bf16.msra.mxu0 0
      %947 = vmatprep.subr.bf16.mxu0 0
      %948 = vmatpush1.bf16.msra.mxu0 0
      %949 = vmatprep.subr.bf16.mxu0 0
      %950 = vmatpush1.bf16.msra.mxu0 0
      %951 = vmatprep.subr.bf16.mxu0 0
      %952 = vmatpush1.bf16.msra.mxu0 0
      %953 = vmatprep.subr.bf16.mxu0 0
      %954 = vmatpush1.bf16.msra.mxu0 0
      %955 = vmatprep.subr.bf16.mxu0 0
      %956 = vmatpush1.bf16.msra.mxu0 0
      %957 = vmatprep.subr.bf16.mxu0 0
      %958 = vmatpush1.bf16.msra.mxu0 0
      %959 = vmatprep.subr.bf16.mxu0 0
      %960 = vmatpush1.bf16.msra.mxu0 0
      %961 = vmatprep.subr.bf16.mxu0 0
      %962 = vmatpush1.bf16.msra.mxu0 0
      %963 = vmatprep.subr.bf16.mxu0 0
      %964 = vmatpush1.bf16.msra.mxu0 0
      %965 = vmatprep.subr.bf16.mxu0 0
      %966 = vmatpush1.bf16.msra.mxu0 0
      %967 = vmatprep.subr.bf16.mxu0 0
      %968 = vmatpush1.bf16.msra.mxu0 0
      %969 = vmatprep.subr.bf16.mxu0 0
      %970 = vmatpush1.bf16.msra.mxu0 0
      %971 = vmatprep.mubr.bf16.mxu0 0
      %972 = vmatmul.mubr.bf16.gmra.mrb[0].mxu0 %v882
      %v973 = vpop.f32.mrb[0].mxu0
      %v974 = vadd.f32 0.0, %v973
      %v975 = vpop.f32.mrb[0].mxu0
      %v976 = vadd.f32 0.0, %v975
      %v977 = vpop.f32.mrb[0].mxu0
      %v978 = vadd.f32 0.0, %v977
      %v979 = vpop.f32.mrb[0].mxu0
      %v980 = vadd.f32 0.0, %v979
      %981 = vdwg.mxu0
      %v982 = vadd.f32 %v824, %v931
      %v983 = vadd.f32 %v825, %v933
      %v984 = vadd.f32 %v826, %v974
      %v985 = vadd.f32 %v827, %v976
      %v986 = vadd.f32 %v828, %v935
      %v987 = vadd.f32 %v829, %v937
      %v988 = vadd.f32 %v830, %v978
      %v989 = vadd.f32 %v831, %v980
      %v990 = vpack.c.bf16 %v347, %v347
      %v991 = vpack.c.bf16 %v348, %v348
      %v992 = vpack.c.bf16 %v349, %v349
      %v993 = vpack.c.bf16 %v350, %v350
      %v996 = vunpack.c.l.b16 %v359
      %v997 = vunpack.c.l.b16 %v360
      %v998 = vpack.c.b16 %v997, %v996
      %v1000 = vsel %vm465, %v998, 0
      %v1003 = vsel %vm469, %v990, 0
      %v1006 = vsel %vm469, %v991, 0
      %v1009 = vsel %vm469, %v992, 0
      %v1012 = vsel %vm469, %v993, 0
      %1014 = vmatprep.subr.bf16.mxu0 %v1006
      %1015 = vmatpush1.bf16.msra.mxu0 %v1003
      %1016 = vmatprep.subr.bf16.mxu0 0
      %1017 = vmatpush1.bf16.msra.mxu0 0
      %1018 = vmatprep.subr.bf16.mxu0 0
      %1019 = vmatpush1.bf16.msra.mxu0 0
      %1020 = vmatprep.subr.bf16.mxu0 0
      %1021 = vmatpush1.bf16.msra.mxu0 0
      %1022 = vmatprep.subr.bf16.mxu0 0
      %1023 = vmatpush1.bf16.msra.mxu0 0
      %1024 = vmatprep.subr.bf16.mxu0 0
      %1025 = vmatpush1.bf16.msra.mxu0 0
      %1026 = vmatprep.subr.bf16.mxu0 0
      %1027 = vmatpush1.bf16.msra.mxu0 0
      %1028 = vmatprep.subr.bf16.mxu0 0
      %1029 = vmatpush1.bf16.msra.mxu0 0
      %1030 = vmatprep.subr.bf16.mxu0 0
      %1031 = vmatpush1.bf16.msra.mxu0 0
      %1032 = vmatprep.subr.bf16.mxu0 0
      %1033 = vmatpush1.bf16.msra.mxu0 0
      %1034 = vmatprep.subr.bf16.mxu0 0
      %1035 = vmatpush1.bf16.msra.mxu0 0
      %1036 = vmatprep.subr.bf16.mxu0 0
      %1037 = vmatpush1.bf16.msra.mxu0 0
      %1038 = vmatprep.subr.bf16.mxu0 0
      %1039 = vmatpush1.bf16.msra.mxu0 0
      %1040 = vmatprep.subr.bf16.mxu0 0
      %1041 = vmatpush1.bf16.msra.mxu0 0
      %1042 = vmatprep.subr.bf16.mxu0 0
      %1043 = vmatpush1.bf16.msra.mxu0 0
      %1044 = vmatprep.subr.bf16.mxu0 0
      %1045 = vmatpush1.bf16.msra.mxu0 0
      %1046 = vmatprep.mubr.bf16.mxu0 0
      %1047 = vmatmul.mubr.bf16.gmra.mrb[0].mxu0 %v1000
      %v1048 = vpop.f32.mrb[0].mxu0
      %v1049 = vadd.f32 0.0, %v1048
      %v1050 = vpop.f32.mrb[0].mxu0
      %v1051 = vadd.f32 0.0, %v1050
      %v1052 = vpop.f32.mrb[0].mxu0
      %v1053 = vadd.f32 0.0, %v1052
      %v1054 = vpop.f32.mrb[0].mxu0
      %v1055 = vadd.f32 0.0, %v1054
      %1056 = vdwg.mxu0
      %1057 = vmatprep.subr.bf16.mxu0 %v1012
      %1058 = vmatpush1.bf16.msra.mxu0 %v1009
      %1059 = vmatprep.subr.bf16.mxu0 0
      %1060 = vmatpush1.bf16.msra.mxu0 0
      %1061 = vmatprep.subr.bf16.mxu0 0
      %1062 = vmatpush1.bf16.msra.mxu0 0
      %1063 = vmatprep.subr.bf16.mxu0 0
      %1064 = vmatpush1.bf16.msra.mxu0 0
      %1065 = vmatprep.subr.bf16.mxu0 0
      %1066 = vmatpush1.bf16.msra.mxu0 0
      %1067 = vmatprep.subr.bf16.mxu0 0
      %1068 = vmatpush1.bf16.msra.mxu0 0
      %1069 = vmatprep.subr.bf16.mxu0 0
      %1070 = vmatpush1.bf16.msra.mxu0 0
      %1071 = vmatprep.subr.bf16.mxu0 0
      %1072 = vmatpush1.bf16.msra.mxu0 0
      %1073 = vmatprep.subr.bf16.mxu0 0
      %1074 = vmatpush1.bf16.msra.mxu0 0
      %1075 = vmatprep.subr.bf16.mxu0 0
      %1076 = vmatpush1.bf16.msra.mxu0 0
      %1077 = vmatprep.subr.bf16.mxu0 0
      %1078 = vmatpush1.bf16.msra.mxu0 0
      %1079 = vmatprep.subr.bf16.mxu0 0
      %1080 = vmatpush1.bf16.msra.mxu0 0
      %1081 = vmatprep.subr.bf16.mxu0 0
      %1082 = vmatpush1.bf16.msra.mxu0 0
      %1083 = vmatprep.subr.bf16.mxu0 0
      %1084 = vmatpush1.bf16.msra.mxu0 0
      %1085 = vmatprep.subr.bf16.mxu0 0
      %1086 = vmatpush1.bf16.msra.mxu0 0
      %1087 = vmatprep.subr.bf16.mxu0 0
      %1088 = vmatpush1.bf16.msra.mxu0 0
      %1089 = vmatprep.mubr.bf16.mxu0 0
      %1090 = vmatmul.mubr.bf16.gmra.mrb[0].mxu0 %v1000
      %v1091 = vpop.f32.mrb[0].mxu0
      %v1092 = vadd.f32 0.0, %v1091
      %v1093 = vpop.f32.mrb[0].mxu0
      %v1094 = vadd.f32 0.0, %v1093
      %v1095 = vpop.f32.mrb[0].mxu0
      %v1096 = vadd.f32 0.0, %v1095
      %v1097 = vpop.f32.mrb[0].mxu0
      %v1098 = vadd.f32 0.0, %v1097
      %1099 = vdwg.mxu0
      %v1100 = vadd.f32 %v982, %v1049
      %v1101 = vadd.f32 %v983, %v1051
      %v1102 = vadd.f32 %v984, %v1092
      %v1103 = vadd.f32 %v985, %v1094
      %v1104 = vadd.f32 %v986, %v1053
      %v1105 = vadd.f32 %v987, %v1055
      %v1106 = vadd.f32 %v988, %v1096
      %v1107 = vadd.f32 %v989, %v1098
      %1108 = vrot.lane.b32.xlu0 %v347, 127
      %v1109 = vpop.permute.xlu0 %1108
      %1110 = vrot.lane.b32.xlu0 %v348, 127
      %v1111 = vpop.permute.xlu0 %1110
      %1112 = vrot.lane.b32.xlu0 %v349, 127
      %v1113 = vpop.permute.xlu0 %1112
      %1114 = vrot.lane.b32.xlu0 %v350, 127
      %v1115 = vpop.permute.xlu0 %1114
      %vm1116 = vcmp.lt.s32.totalorder %v380, 127
      %v1117 = vsel %vm1116, %v1113, %v1115
      %v1118 = vsel %vm1116, %v1111, %v1113
      %v1119 = vsel %vm1116, %v1109, %v1111
      %v1120 = vsel %vm1116, %v1115, %v1109
      %s1121 = scalar_lea.vmem %s0, 20
      %v1122 = vld [vmem:[%s1121] sm:$0xf]
      %v1124 = vlaneseq
      %v1125 = vshrl.u32 %v1124, 7
      %v1126 = vsub.s32 0, %v1125
      %v1127 = vrot.slane %v1122, %v1126
      %v1128 = vlaneseq
      %v1129 = vshrl.u32 %v1128, 7
      %v1130 = vsub.s32 1, %v1129
      %v1131 = vrot.slane %v1122, %v1130
      %v1132 = vlaneseq
      %v1133 = vshrl.u32 %v1132, 7
      %v1134 = vsub.s32 2, %v1133
      %v1135 = vrot.slane %v1122, %v1134
      %v1136 = vlaneseq
      %v1137 = vshrl.u32 %v1136, 7
      %v1138 = vsub.s32 3, %v1137
      %v1139 = vrot.slane %v1122, %v1138
      %v1144 = vmul.f32 %v1119, %v1127
      %v1145 = vmul.f32 %v1118, %v1131
      %v1146 = vmul.f32 %v1117, %v1135
      %v1147 = vmul.f32 %v1120, %v1139
      %v1148 = vpack.c.bf16 %v1144, %v1144
      %v1149 = vpack.c.bf16 %v1145, %v1145
      %v1150 = vpack.c.bf16 %v1146, %v1146
      %v1151 = vpack.c.bf16 %v1147, %v1147
      %v1154 = vunpack.c.l.b16 %v361
      %v1155 = vunpack.c.l.b16 %v362
      %v1156 = vpack.c.b16 %v1155, %v1154
      %v1158 = vsel %vm465, %v1156, 0
      %v1161 = vsel %vm469, %v1148, 0
      %v1164 = vsel %vm469, %v1149, 0
      %v1167 = vsel %vm469, %v1150, 0
      %v1170 = vsel %vm469, %v1151, 0
      %1172 = vmatprep.subr.bf16.mxu0 %v1164
      %1173 = vmatpush1.bf16.msra.mxu0 %v1161
      %1174 = vmatprep.subr.bf16.mxu0 0
      %1175 = vmatpush1.bf16.msra.mxu0 0
      %1176 = vmatprep.subr.bf16.mxu0 0
      %1177 = vmatpush1.bf16.msra.mxu0 0
      %1178 = vmatprep.subr.bf16.mxu0 0
      %1179 = vmatpush1.bf16.msra.mxu0 0
      %1180 = vmatprep.subr.bf16.mxu0 0
      %1181 = vmatpush1.bf16.msra.mxu0 0
      %1182 = vmatprep.subr.bf16.mxu0 0
      %1183 = vmatpush1.bf16.msra.mxu0 0
      %1184 = vmatprep.subr.bf16.mxu0 0
      %1185 = vmatpush1.bf16.msra.mxu0 0
      %1186 = vmatprep.subr.bf16.mxu0 0
      %1187 = vmatpush1.bf16.msra.mxu0 0
      %1188 = vmatprep.subr.bf16.mxu0 0
      %1189 = vmatpush1.bf16.msra.mxu0 0
      %1190 = vmatprep.subr.bf16.mxu0 0
      %1191 = vmatpush1.bf16.msra.mxu0 0
      %1192 = vmatprep.subr.bf16.mxu0 0
      %1193 = vmatpush1.bf16.msra.mxu0 0
      %1194 = vmatprep.subr.bf16.mxu0 0
      %1195 = vmatpush1.bf16.msra.mxu0 0
      %1196 = vmatprep.subr.bf16.mxu0 0
      %1197 = vmatpush1.bf16.msra.mxu0 0
      %1198 = vmatprep.subr.bf16.mxu0 0
      %1199 = vmatpush1.bf16.msra.mxu0 0
      %1200 = vmatprep.subr.bf16.mxu0 0
      %1201 = vmatpush1.bf16.msra.mxu0 0
      %1202 = vmatprep.subr.bf16.mxu0 0
      %1203 = vmatpush1.bf16.msra.mxu0 0
      %1204 = vmatprep.mubr.bf16.mxu0 0
      %1205 = vmatmul.mubr.bf16.gmra.mrb[0].mxu0 %v1158
      %v1206 = vpop.f32.mrb[0].mxu0
      %v1207 = vadd.f32 0.0, %v1206
      %v1208 = vpop.f32.mrb[0].mxu0
      %v1209 = vadd.f32 0.0, %v1208
      %v1210 = vpop.f32.mrb[0].mxu0
      %v1211 = vadd.f32 0.0, %v1210
      %v1212 = vpop.f32.mrb[0].mxu0
      %v1213 = vadd.f32 0.0, %v1212
      %1214 = vdwg.mxu0
      %1215 = vmatprep.subr.bf16.mxu0 %v1170
      %1216 = vmatpush1.bf16.msra.mxu0 %v1167
      %1217 = vmatprep.subr.bf16.mxu0 0
      %1218 = vmatpush1.bf16.msra.mxu0 0
      %1219 = vmatprep.subr.bf16.mxu0 0
      %1220 = vmatpush1.bf16.msra.mxu0 0
      %1221 = vmatprep.subr.bf16.mxu0 0
      %1222 = vmatpush1.bf16.msra.mxu0 0
      %1223 = vmatprep.subr.bf16.mxu0 0
      %1224 = vmatpush1.bf16.msra.mxu0 0
      %1225 = vmatprep.subr.bf16.mxu0 0
      %1226 = vmatpush1.bf16.msra.mxu0 0
      %1227 = vmatprep.subr.bf16.mxu0 0
      %1228 = vmatpush1.bf16.msra.mxu0 0
      %1229 = vmatprep.subr.bf16.mxu0 0
      %1230 = vmatpush1.bf16.msra.mxu0 0
      %1231 = vmatprep.subr.bf16.mxu0 0
      %1232 = vmatpush1.bf16.msra.mxu0 0
      %1233 = vmatprep.subr.bf16.mxu0 0
      %1234 = vmatpush1.bf16.msra.mxu0 0
      %1235 = vmatprep.subr.bf16.mxu0 0
      %1236 = vmatpush1.bf16.msra.mxu0 0
      %1237 = vmatprep.subr.bf16.mxu0 0
      %1238 = vmatpush1.bf16.msra.mxu0 0
      %1239 = vmatprep.subr.bf16.mxu0 0
      %1240 = vmatpush1.bf16.msra.mxu0 0
      %1241 = vmatprep.subr.bf16.mxu0 0
      %1242 = vmatpush1.bf16.msra.mxu0 0
      %1243 = vmatprep.subr.bf16.mxu0 0
      %1244 = vmatpush1.bf16.msra.mxu0 0
      %1245 = vmatprep.subr.bf16.mxu0 0
      %1246 = vmatpush1.bf16.msra.mxu0 0
      %1247 = vmatprep.mubr.bf16.mxu0 0
      %1248 = vmatmul.mubr.bf16.gmra.mrb[0].mxu0 %v1158
      %v1249 = vpop.f32.mrb[0].mxu0
      %v1250 = vadd.f32 0.0, %v1249
      %v1251 = vpop.f32.mrb[0].mxu0
      %v1252 = vadd.f32 0.0, %v1251
      %v1253 = vpop.f32.mrb[0].mxu0
      %v1254 = vadd.f32 0.0, %v1253
      %v1255 = vpop.f32.mrb[0].mxu0
      %v1256 = vadd.f32 0.0, %v1255
      %1257 = vdwg.mxu0
      %v1258 = vadd.f32 %v1100, %v1207
      %v1259 = vadd.f32 %v1101, %v1209
      %v1260 = vadd.f32 %v1102, %v1250
      %v1261 = vadd.f32 %v1103, %v1252
      %v1262 = vadd.f32 %v1104, %v1211
      %v1263 = vadd.f32 %v1105, %v1213
      %v1264 = vadd.f32 %v1106, %v1254
      %v1265 = vadd.f32 %v1107, %v1256
      %1266 = vrot.lane.b32.xlu0 %v347, 113
      %v1267 = vpop.permute.xlu0 %1266
      %1268 = vrot.lane.b32.xlu0 %v348, 113
      %v1269 = vpop.permute.xlu0 %1268
      %1270 = vrot.lane.b32.xlu0 %v349, 113
      %v1271 = vpop.permute.xlu0 %1270
      %1272 = vrot.lane.b32.xlu0 %v350, 113
      %v1273 = vpop.permute.xlu0 %1272
      %vm1274 = vcmp.lt.s32.totalorder %v380, 113
      %v1275 = vsel %vm1274, %v1271, %v1273
      %v1276 = vsel %vm1274, %v1269, %v1271
      %v1277 = vsel %vm1274, %v1267, %v1269
      %v1278 = vsel %vm1274, %v1273, %v1267
      %s1279 = scalar_lea.vmem %s0, 24
      %v1280 = vld [vmem:[%s1279] sm:$0xf]
      %v1282 = vlaneseq
      %v1283 = vshrl.u32 %v1282, 7
      %v1284 = vsub.s32 0, %v1283
      %v1285 = vrot.slane %v1280, %v1284
      %v1286 = vlaneseq
      %v1287 = vshrl.u32 %v1286, 7
      %v1288 = vsub.s32 1, %v1287
      %v1289 = vrot.slane %v1280, %v1288
      %v1290 = vlaneseq
      %v1291 = vshrl.u32 %v1290, 7
      %v1292 = vsub.s32 2, %v1291
      %v1293 = vrot.slane %v1280, %v1292
      %v1294 = vlaneseq
      %v1295 = vshrl.u32 %v1294, 7
      %v1296 = vsub.s32 3, %v1295
      %v1297 = vrot.slane %v1280, %v1296
      %v1302 = vmul.f32 %v1277, %v1285
      %v1303 = vmul.f32 %v1276, %v1289
      %v1304 = vmul.f32 %v1275, %v1293
      %v1305 = vmul.f32 %v1278, %v1297
      %v1306 = vpack.c.bf16 %v1302, %v1302
      %v1307 = vpack.c.bf16 %v1303, %v1303
      %v1308 = vpack.c.bf16 %v1304, %v1304
      %v1309 = vpack.c.bf16 %v1305, %v1305
      %v1312 = vunpack.c.l.b16 %v363
      %v1313 = vunpack.c.l.b16 %v364
      %v1314 = vpack.c.b16 %v1313, %v1312
      %v1316 = vsel %vm465, %v1314, 0
      %v1319 = vsel %vm469, %v1306, 0
      %v1322 = vsel %vm469, %v1307, 0
      %v1325 = vsel %vm469, %v1308, 0
      %v1328 = vsel %vm469, %v1309, 0
      %1330 = vmatprep.subr.bf16.mxu0 %v1322
      %1331 = vmatpush1.bf16.msra.mxu0 %v1319
      %1332 = vmatprep.subr.bf16.mxu0 0
      %1333 = vmatpush1.bf16.msra.mxu0 0
      %1334 = vmatprep.subr.bf16.mxu0 0
      %1335 = vmatpush1.bf16.msra.mxu0 0
      %1336 = vmatprep.subr.bf16.mxu0 0
      %1337 = vmatpush1.bf16.msra.mxu0 0
      %1338 = vmatprep.subr.bf16.mxu0 0
      %1339 = vmatpush1.bf16.msra.mxu0 0
      %1340 = vmatprep.subr.bf16.mxu0 0
      %1341 = vmatpush1.bf16.msra.mxu0 0
      %1342 = vmatprep.subr.bf16.mxu0 0
      %1343 = vmatpush1.bf16.msra.mxu0 0
      %1344 = vmatprep.subr.bf16.mxu0 0
      %1345 = vmatpush1.bf16.msra.mxu0 0
      %1346 = vmatprep.subr.bf16.mxu0 0
      %1347 = vmatpush1.bf16.msra.mxu0 0
      %1348 = vmatprep.subr.bf16.mxu0 0
      %1349 = vmatpush1.bf16.msra.mxu0 0
      %1350 = vmatprep.subr.bf16.mxu0 0
      %1351 = vmatpush1.bf16.msra.mxu0 0
      %1352 = vmatprep.subr.bf16.mxu0 0
      %1353 = vmatpush1.bf16.msra.mxu0 0
      %1354 = vmatprep.subr.bf16.mxu0 0
      %1355 = vmatpush1.bf16.msra.mxu0 0
      %1356 = vmatprep.subr.bf16.mxu0 0
      %1357 = vmatpush1.bf16.msra.mxu0 0
      %1358 = vmatprep.subr.bf16.mxu0 0
      %1359 = vmatpush1.bf16.msra.mxu0 0
      %1360 = vmatprep.subr.bf16.mxu0 0
      %1361 = vmatpush1.bf16.msra.mxu0 0
      %1362 = vmatprep.mubr.bf16.mxu0 0
      %1363 = vmatmul.mubr.bf16.gmra.mrb[0].mxu0 %v1316
      %v1364 = vpop.f32.mrb[0].mxu0
      %v1365 = vadd.f32 0.0, %v1364
      %v1366 = vpop.f32.mrb[0].mxu0
      %v1367 = vadd.f32 0.0, %v1366
      %v1368 = vpop.f32.mrb[0].mxu0
      %v1369 = vadd.f32 0.0, %v1368
      %v1370 = vpop.f32.mrb[0].mxu0
      %v1371 = vadd.f32 0.0, %v1370
      %1372 = vdwg.mxu0
      %1373 = vmatprep.subr.bf16.mxu0 %v1328
      %1374 = vmatpush1.bf16.msra.mxu0 %v1325
      %1375 = vmatprep.subr.bf16.mxu0 0
      %1376 = vmatpush1.bf16.msra.mxu0 0
      %1377 = vmatprep.subr.bf16.mxu0 0
      %1378 = vmatpush1.bf16.msra.mxu0 0
      %1379 = vmatprep.subr.bf16.mxu0 0
      %1380 = vmatpush1.bf16.msra.mxu0 0
      %1381 = vmatprep.subr.bf16.mxu0 0
      %1382 = vmatpush1.bf16.msra.mxu0 0
      %1383 = vmatprep.subr.bf16.mxu0 0
      %1384 = vmatpush1.bf16.msra.mxu0 0
      %1385 = vmatprep.subr.bf16.mxu0 0
      %1386 = vmatpush1.bf16.msra.mxu0 0
      %1387 = vmatprep.subr.bf16.mxu0 0
      %1388 = vmatpush1.bf16.msra.mxu0 0
      %1389 = vmatprep.subr.bf16.mxu0 0
      %1390 = vmatpush1.bf16.msra.mxu0 0
      %1391 = vmatprep.subr.bf16.mxu0 0
      %1392 = vmatpush1.bf16.msra.mxu0 0
      %1393 = vmatprep.subr.bf16.mxu0 0
      %1394 = vmatpush1.bf16.msra.mxu0 0
      %1395 = vmatprep.subr.bf16.mxu0 0
      %1396 = vmatpush1.bf16.msra.mxu0 0
      %1397 = vmatprep.subr.bf16.mxu0 0
      %1398 = vmatpush1.bf16.msra.mxu0 0
      %1399 = vmatprep.subr.bf16.mxu0 0
      %1400 = vmatpush1.bf16.msra.mxu0 0
      %1401 = vmatprep.subr.bf16.mxu0 0
      %1402 = vmatpush1.bf16.msra.mxu0 0
      %1403 = vmatprep.subr.bf16.mxu0 0
      %1404 = vmatpush1.bf16.msra.mxu0 0
      %1405 = vmatprep.mubr.bf16.mxu0 0
      %1406 = vmatmul.mubr.bf16.gmra.mrb[0].mxu0 %v1316
      %v1407 = vpop.f32.mrb[0].mxu0
      %v1408 = vadd.f32 0.0, %v1407
      %v1409 = vpop.f32.mrb[0].mxu0
      %v1410 = vadd.f32 0.0, %v1409
      %v1411 = vpop.f32.mrb[0].mxu0
      %v1412 = vadd.f32 0.0, %v1411
      %v1413 = vpop.f32.mrb[0].mxu0
      %v1414 = vadd.f32 0.0, %v1413
      %1415 = vdwg.mxu0
      %v1416 = vadd.f32 %v1258, %v1365
      %v1417 = vadd.f32 %v1259, %v1367
      %v1418 = vadd.f32 %v1260, %v1408
      %v1419 = vadd.f32 %v1261, %v1410
      %v1420 = vadd.f32 %v1262, %v1369
      %v1421 = vadd.f32 %v1263, %v1371
      %v1422 = vadd.f32 %v1264, %v1412
      %v1423 = vadd.f32 %v1265, %v1414
      %1424 = vrot.lane.b32.xlu0 %v347, 112
      %v1425 = vpop.permute.xlu0 %1424
      %1426 = vrot.lane.b32.xlu0 %v348, 112
      %v1427 = vpop.permute.xlu0 %1426
      %1428 = vrot.lane.b32.xlu0 %v349, 112
      %v1429 = vpop.permute.xlu0 %1428
      %1430 = vrot.lane.b32.xlu0 %v350, 112
      %v1431 = vpop.permute.xlu0 %1430
      %vm1432 = vcmp.lt.s32.totalorder %v380, 112
      %v1433 = vsel %vm1432, %v1429, %v1431
      %v1434 = vsel %vm1432, %v1427, %v1429
      %v1435 = vsel %vm1432, %v1425, %v1427
      %v1436 = vsel %vm1432, %v1431, %v1425
      %s1437 = scalar_lea.vmem %s0, 28
      %v1438 = vld [vmem:[%s1437] sm:$0xf]
      %v1440 = vlaneseq
      %v1441 = vshrl.u32 %v1440, 7
      %v1442 = vsub.s32 0, %v1441
      %v1443 = vrot.slane %v1438, %v1442
      %v1444 = vlaneseq
      %v1445 = vshrl.u32 %v1444, 7
      %v1446 = vsub.s32 1, %v1445
      %v1447 = vrot.slane %v1438, %v1446
      %v1448 = vlaneseq
      %v1449 = vshrl.u32 %v1448, 7
      %v1450 = vsub.s32 2, %v1449
      %v1451 = vrot.slane %v1438, %v1450
      %v1452 = vlaneseq
      %v1453 = vshrl.u32 %v1452, 7
      %v1454 = vsub.s32 3, %v1453
      %v1455 = vrot.slane %v1438, %v1454
      %v1460 = vmul.f32 %v1435, %v1443
      %v1461 = vmul.f32 %v1434, %v1447
      %v1462 = vmul.f32 %v1433, %v1451
      %v1463 = vmul.f32 %v1436, %v1455
      %v1464 = vpack.c.bf16 %v1460, %v1460
      %v1465 = vpack.c.bf16 %v1461, %v1461
      %v1466 = vpack.c.bf16 %v1462, %v1462
      %v1467 = vpack.c.bf16 %v1463, %v1463
      %v1470 = vunpack.c.l.b16 %v365
      %v1471 = vunpack.c.l.b16 %v366
      %v1472 = vpack.c.b16 %v1471, %v1470
      %v1474 = vsel %vm465, %v1472, 0
      %v1477 = vsel %vm469, %v1464, 0
      %v1480 = vsel %vm469, %v1465, 0
      %v1483 = vsel %vm469, %v1466, 0
      %v1486 = vsel %vm469, %v1467, 0
      %1488 = vmatprep.subr.bf16.mxu0 %v1480
      %1489 = vmatpush1.bf16.msra.mxu0 %v1477
      %1490 = vmatprep.subr.bf16.mxu0 0
      %1491 = vmatpush1.bf16.msra.mxu0 0
      %1492 = vmatprep.subr.bf16.mxu0 0
      %1493 = vmatpush1.bf16.msra.mxu0 0
      %1494 = vmatprep.subr.bf16.mxu0 0
      %1495 = vmatpush1.bf16.msra.mxu0 0
      %1496 = vmatprep.subr.bf16.mxu0 0
      %1497 = vmatpush1.bf16.msra.mxu0 0
      %1498 = vmatprep.subr.bf16.mxu0 0
      %1499 = vmatpush1.bf16.msra.mxu0 0
      %1500 = vmatprep.subr.bf16.mxu0 0
      %1501 = vmatpush1.bf16.msra.mxu0 0
      %1502 = vmatprep.subr.bf16.mxu0 0
      %1503 = vmatpush1.bf16.msra.mxu0 0
      %1504 = vmatprep.subr.bf16.mxu0 0
      %1505 = vmatpush1.bf16.msra.mxu0 0
      %1506 = vmatprep.subr.bf16.mxu0 0
      %1507 = vmatpush1.bf16.msra.mxu0 0
      %1508 = vmatprep.subr.bf16.mxu0 0
      %1509 = vmatpush1.bf16.msra.mxu0 0
      %1510 = vmatprep.subr.bf16.mxu0 0
      %1511 = vmatpush1.bf16.msra.mxu0 0
      %1512 = vmatprep.subr.bf16.mxu0 0
      %1513 = vmatpush1.bf16.msra.mxu0 0
      %1514 = vmatprep.subr.bf16.mxu0 0
      %1515 = vmatpush1.bf16.msra.mxu0 0
      %1516 = vmatprep.subr.bf16.mxu0 0
      %1517 = vmatpush1.bf16.msra.mxu0 0
      %1518 = vmatprep.subr.bf16.mxu0 0
      %1519 = vmatpush1.bf16.msra.mxu0 0
      %1520 = vmatprep.mubr.bf16.mxu0 0
      %1521 = vmatmul.mubr.bf16.gmra.mrb[0].mxu0 %v1474
      %v1522 = vpop.f32.mrb[0].mxu0
      %v1523 = vadd.f32 0.0, %v1522
      %v1524 = vpop.f32.mrb[0].mxu0
      %v1525 = vadd.f32 0.0, %v1524
      %v1526 = vpop.f32.mrb[0].mxu0
      %v1527 = vadd.f32 0.0, %v1526
      %v1528 = vpop.f32.mrb[0].mxu0
      %v1529 = vadd.f32 0.0, %v1528
      %1530 = vdwg.mxu0
      %1531 = vmatprep.subr.bf16.mxu0 %v1486
      %1532 = vmatpush1.bf16.msra.mxu0 %v1483
      %1533 = vmatprep.subr.bf16.mxu0 0
      %1534 = vmatpush1.bf16.msra.mxu0 0
      %1535 = vmatprep.subr.bf16.mxu0 0
      %1536 = vmatpush1.bf16.msra.mxu0 0
      %1537 = vmatprep.subr.bf16.mxu0 0
      %1538 = vmatpush1.bf16.msra.mxu0 0
      %1539 = vmatprep.subr.bf16.mxu0 0
      %1540 = vmatpush1.bf16.msra.mxu0 0
      %1541 = vmatprep.subr.bf16.mxu0 0
      %1542 = vmatpush1.bf16.msra.mxu0 0
      %1543 = vmatprep.subr.bf16.mxu0 0
      %1544 = vmatpush1.bf16.msra.mxu0 0
      %1545 = vmatprep.subr.bf16.mxu0 0
      %1546 = vmatpush1.bf16.msra.mxu0 0
      %1547 = vmatprep.subr.bf16.mxu0 0
      %1548 = vmatpush1.bf16.msra.mxu0 0
      %1549 = vmatprep.subr.bf16.mxu0 0
      %1550 = vmatpush1.bf16.msra.mxu0 0
      %1551 = vmatprep.subr.bf16.mxu0 0
      %1552 = vmatpush1.bf16.msra.mxu0 0
      %1553 = vmatprep.subr.bf16.mxu0 0
      %1554 = vmatpush1.bf16.msra.mxu0 0
      %1555 = vmatprep.subr.bf16.mxu0 0
      %1556 = vmatpush1.bf16.msra.mxu0 0
      %1557 = vmatprep.subr.bf16.mxu0 0
      %1558 = vmatpush1.bf16.msra.mxu0 0
      %1559 = vmatprep.subr.bf16.mxu0 0
      %1560 = vmatpush1.bf16.msra.mxu0 0
      %1561 = vmatprep.subr.bf16.mxu0 0
      %1562 = vmatpush1.bf16.msra.mxu0 0
      %1563 = vmatprep.mubr.bf16.mxu0 0
      %1564 = vmatmul.mubr.bf16.gmra.mrb[0].mxu0 %v1474
      %v1565 = vpop.f32.mrb[0].mxu0
      %v1566 = vadd.f32 0.0, %v1565
      %v1567 = vpop.f32.mrb[0].mxu0
      %v1568 = vadd.f32 0.0, %v1567
      %v1569 = vpop.f32.mrb[0].mxu0
      %v1570 = vadd.f32 0.0, %v1569
      %v1571 = vpop.f32.mrb[0].mxu0
      %v1572 = vadd.f32 0.0, %v1571
      %1573 = vdwg.mxu0
      %v1574 = vadd.f32 %v1416, %v1523
      %v1575 = vadd.f32 %v1417, %v1525
      %v1576 = vadd.f32 %v1418, %v1566
      %v1577 = vadd.f32 %v1419, %v1568
      %v1578 = vadd.f32 %v1420, %v1527
      %v1579 = vadd.f32 %v1421, %v1529
      %v1580 = vadd.f32 %v1422, %v1570
      %v1581 = vadd.f32 %v1423, %v1572
      %1582 = vrot.lane.b32.xlu0 %v347, 111
      %v1583 = vpop.permute.xlu0 %1582
      %1584 = vrot.lane.b32.xlu0 %v348, 111
      %v1585 = vpop.permute.xlu0 %1584
      %1586 = vrot.lane.b32.xlu0 %v349, 111
      %v1587 = vpop.permute.xlu0 %1586
      %1588 = vrot.lane.b32.xlu0 %v350, 111
      %v1589 = vpop.permute.xlu0 %1588
      %vm1590 = vcmp.lt.s32.totalorder %v380, 111
      %v1591 = vsel %vm1590, %v1587, %v1589
      %v1592 = vsel %vm1590, %v1585, %v1587
      %v1593 = vsel %vm1590, %v1583, %v1585
      %v1594 = vsel %vm1590, %v1589, %v1583
      %s1595 = scalar_lea.vmem %s0, 32
      %v1596 = vld [vmem:[%s1595] sm:$0xf]
      %v1598 = vlaneseq
      %v1599 = vshrl.u32 %v1598, 7
      %v1600 = vsub.s32 0, %v1599
      %v1601 = vrot.slane %v1596, %v1600
      %v1602 = vlaneseq
      %v1603 = vshrl.u32 %v1602, 7
      %v1604 = vsub.s32 1, %v1603
      %v1605 = vrot.slane %v1596, %v1604
      %v1606 = vlaneseq
      %v1607 = vshrl.u32 %v1606, 7
      %v1608 = vsub.s32 2, %v1607
      %v1609 = vrot.slane %v1596, %v1608
      %v1610 = vlaneseq
      %v1611 = vshrl.u32 %v1610, 7
      %v1612 = vsub.s32 3, %v1611
      %v1613 = vrot.slane %v1596, %v1612
      %v1618 = vmul.f32 %v1593, %v1601
      %v1619 = vmul.f32 %v1592, %v1605
      %v1620 = vmul.f32 %v1591, %v1609
      %v1621 = vmul.f32 %v1594, %v1613
      %v1622 = vpack.c.bf16 %v1618, %v1618
      %v1623 = vpack.c.bf16 %v1619, %v1619
      %v1624 = vpack.c.bf16 %v1620, %v1620
      %v1625 = vpack.c.bf16 %v1621, %v1621
      %v1628 = vunpack.c.l.b16 %v367
      %v1629 = vunpack.c.l.b16 %v368
      %v1630 = vpack.c.b16 %v1629, %v1628
      %v1632 = vsel %vm465, %v1630, 0
      %v1635 = vsel %vm469, %v1622, 0
      %v1638 = vsel %vm469, %v1623, 0
      %v1641 = vsel %vm469, %v1624, 0
      %v1644 = vsel %vm469, %v1625, 0
      %1646 = vmatprep.subr.bf16.mxu0 %v1638
      %1647 = vmatpush1.bf16.msra.mxu0 %v1635
      %1648 = vmatprep.subr.bf16.mxu0 0
      %1649 = vmatpush1.bf16.msra.mxu0 0
      %1650 = vmatprep.subr.bf16.mxu0 0
      %1651 = vmatpush1.bf16.msra.mxu0 0
      %1652 = vmatprep.subr.bf16.mxu0 0
      %1653 = vmatpush1.bf16.msra.mxu0 0
      %1654 = vmatprep.subr.bf16.mxu0 0
      %1655 = vmatpush1.bf16.msra.mxu0 0
      %1656 = vmatprep.subr.bf16.mxu0 0
      %1657 = vmatpush1.bf16.msra.mxu0 0
      %1658 = vmatprep.subr.bf16.mxu0 0
      %1659 = vmatpush1.bf16.msra.mxu0 0
      %1660 = vmatprep.subr.bf16.mxu0 0
      %1661 = vmatpush1.bf16.msra.mxu0 0
      %1662 = vmatprep.subr.bf16.mxu0 0
      %1663 = vmatpush1.bf16.msra.mxu0 0
      %1664 = vmatprep.subr.bf16.mxu0 0
      %1665 = vmatpush1.bf16.msra.mxu0 0
      %1666 = vmatprep.subr.bf16.mxu0 0
      %1667 = vmatpush1.bf16.msra.mxu0 0
      %1668 = vmatprep.subr.bf16.mxu0 0
      %1669 = vmatpush1.bf16.msra.mxu0 0
      %1670 = vmatprep.subr.bf16.mxu0 0
      %1671 = vmatpush1.bf16.msra.mxu0 0
      %1672 = vmatprep.subr.bf16.mxu0 0
      %1673 = vmatpush1.bf16.msra.mxu0 0
      %1674 = vmatprep.subr.bf16.mxu0 0
      %1675 = vmatpush1.bf16.msra.mxu0 0
      %1676 = vmatprep.subr.bf16.mxu0 0
      %1677 = vmatpush1.bf16.msra.mxu0 0
      %1678 = vmatprep.mubr.bf16.mxu0 0
      %1679 = vmatmul.mubr.bf16.gmra.mrb[0].mxu0 %v1632
      %v1680 = vpop.f32.mrb[0].mxu0
      %v1681 = vadd.f32 0.0, %v1680
      %v1682 = vpop.f32.mrb[0].mxu0
      %v1683 = vadd.f32 0.0, %v1682
      %v1684 = vpop.f32.mrb[0].mxu0
      %v1685 = vadd.f32 0.0, %v1684
      %v1686 = vpop.f32.mrb[0].mxu0
      %v1687 = vadd.f32 0.0, %v1686
      %1688 = vdwg.mxu0
      %1689 = vmatprep.subr.bf16.mxu0 %v1644
      %1690 = vmatpush1.bf16.msra.mxu0 %v1641
      %1691 = vmatprep.subr.bf16.mxu0 0
      %1692 = vmatpush1.bf16.msra.mxu0 0
      %1693 = vmatprep.subr.bf16.mxu0 0
      %1694 = vmatpush1.bf16.msra.mxu0 0
      %1695 = vmatprep.subr.bf16.mxu0 0
      %1696 = vmatpush1.bf16.msra.mxu0 0
      %1697 = vmatprep.subr.bf16.mxu0 0
      %1698 = vmatpush1.bf16.msra.mxu0 0
      %1699 = vmatprep.subr.bf16.mxu0 0
      %1700 = vmatpush1.bf16.msra.mxu0 0
      %1701 = vmatprep.subr.bf16.mxu0 0
      %1702 = vmatpush1.bf16.msra.mxu0 0
      %1703 = vmatprep.subr.bf16.mxu0 0
      %1704 = vmatpush1.bf16.msra.mxu0 0
      %1705 = vmatprep.subr.bf16.mxu0 0
      %1706 = vmatpush1.bf16.msra.mxu0 0
      %1707 = vmatprep.subr.bf16.mxu0 0
      %1708 = vmatpush1.bf16.msra.mxu0 0
      %1709 = vmatprep.subr.bf16.mxu0 0
      %1710 = vmatpush1.bf16.msra.mxu0 0
      %1711 = vmatprep.subr.bf16.mxu0 0
      %1712 = vmatpush1.bf16.msra.mxu0 0
      %1713 = vmatprep.subr.bf16.mxu0 0
      %1714 = vmatpush1.bf16.msra.mxu0 0
      %1715 = vmatprep.subr.bf16.mxu0 0
      %1716 = vmatpush1.bf16.msra.mxu0 0
      %1717 = vmatprep.subr.bf16.mxu0 0
      %1718 = vmatpush1.bf16.msra.mxu0 0
      %1719 = vmatprep.subr.bf16.mxu0 0
      %1720 = vmatpush1.bf16.msra.mxu0 0
      %1721 = vmatprep.mubr.bf16.mxu0 0
      %1722 = vmatmul.mubr.bf16.gmra.mrb[0].mxu0 %v1632
      %v1723 = vpop.f32.mrb[0].mxu0
      %v1724 = vadd.f32 0.0, %v1723
      %v1725 = vpop.f32.mrb[0].mxu0
      %v1726 = vadd.f32 0.0, %v1725
      %v1727 = vpop.f32.mrb[0].mxu0
      %v1728 = vadd.f32 0.0, %v1727
      %v1729 = vpop.f32.mrb[0].mxu0
      %v1730 = vadd.f32 0.0, %v1729
      %1731 = vdwg.mxu0
      %v1732 = vadd.f32 %v1574, %v1681
      %v1733 = vadd.f32 %v1575, %v1683
      %v1734 = vadd.f32 %v1576, %v1724
      %v1735 = vadd.f32 %v1577, %v1726
      %v1736 = vadd.f32 %v1578, %v1685
      %v1737 = vadd.f32 %v1579, %v1687
      %v1738 = vadd.f32 %v1580, %v1728
      %v1739 = vadd.f32 %v1581, %v1730
      %1741 = vset.pattern.permute.xlu0 0
      %1742 = vperm.xlu0 %1741, %v369
      %v1743 = vpop.permute.xlu0 %1742
      %1746 = vset.pattern.permute.xlu0 0
      %1747 = vperm.xlu0 %1746, %v370
      %v1748 = vpop.permute.xlu0 %1747
      %v1750 = vadd.f32 %v1732, %v1743
      %v1751 = vadd.f32 %v1733, %v1743
      %v1752 = vadd.f32 %v1734, %v1743
      %v1753 = vadd.f32 %v1735, %v1743
      %v1754 = vadd.f32 %v1736, %v1748
      %v1755 = vadd.f32 %v1737, %v1748
      %v1756 = vadd.f32 %v1738, %v1748
      %v1757 = vadd.f32 %v1739, %v1748
      %v1758 = vmax.f32 %v1750, 0.0
      %v1759 = vmax.f32 %v1751, 0.0
      %v1760 = vmax.f32 %v1752, 0.0
      %v1761 = vmax.f32 %v1753, 0.0
      %v1762 = vmax.f32 %v1754, 0.0
      %v1763 = vmax.f32 %v1755, 0.0
      %v1764 = vmax.f32 %v1756, 0.0
      %v1765 = vmax.f32 %v1757, 0.0
      loop: start=0, step=1, limit=2
      $region53: #{etds_forward.1} parent=51 // loop_pre_header
        _
      $region54: #{etds_forward.1} parent=51 // loop_header
        %s1767 = sphi 0, %s1771
        %p1768 = scmp.ge.s32.totalorder %s1767, 2
        %v1772 = vphi %v1758, %v3194
        %v1773 = vphi %v1759, %v3195
        %v1774 = vphi %v1760, %v3196
        %v1775 = vphi %v1761, %v3197
        %v1776 = vphi %v1762, %v3198
        %v1777 = vphi %v1763, %v3199
        %v1778 = vphi %v1764, %v3200
        %v1779 = vphi %v1765, %v3201
      $region55: #{etds_forward.1} parent=51 // loop_header_branch
        %1770 = sbr.rel (%p1768) target = $region59
      $region56: #{etds_forward.1} parent=51 // loop_body
        %s1780 = smul.u32 %s1767, 18
        %s1781 = smul.addr %s1780, 4
        %s1782 = scalar_lea.vmem %s4, %s1781
        %v1783 = vld [vmem:[%s1782] sm:$0xf]
        %v1784 = vld [vmem:[%s1782 + $0x4] sm:$0xf]
        %v1785 = vld [vmem:[%s1782 + $0x8] sm:$0xf]
        %v1786 = vld [vmem:[%s1782 + $0xc] sm:$0xf]
        %v1787 = vld [vmem:[%s1782 + $0x10] sm:$0xf]
        %v1788 = vld [vmem:[%s1782 + $0x14] sm:$0xf]
        %v1789 = vld [vmem:[%s1782 + $0x18] sm:$0xf]
        %v1790 = vld [vmem:[%s1782 + $0x1c] sm:$0xf]
        %v1791 = vld [vmem:[%s1782 + $0x20] sm:$0xf]
        %v1792 = vld [vmem:[%s1782 + $0x24] sm:$0xf]
        %v1793 = vld [vmem:[%s1782 + $0x28] sm:$0xf]
        %v1794 = vld [vmem:[%s1782 + $0x2c] sm:$0xf]
        %v1795 = vld [vmem:[%s1782 + $0x30] sm:$0xf]
        %v1796 = vld [vmem:[%s1782 + $0x34] sm:$0xf]
        %v1797 = vld [vmem:[%s1782 + $0x38] sm:$0xf]
        %v1798 = vld [vmem:[%s1782 + $0x3c] sm:$0xf]
        %v1799 = vld [vmem:[%s1782 + $0x40] sm:$0xf]
        %v1800 = vld [vmem:[%s1782 + $0x44] sm:$0xf]
        %s1801 = smul.u32 %s1767, 16
        %s1802 = scalar_lea.vmem %s5, %s1801
        %v1803 = vld [vmem:[%s1802] sm:$0xff]
        %v1804 = vld [vmem:[%s1802 + $0x8] sm:$0xff]
        %1805 = vrot.lane.b32.xlu0 %v1772, 17
        %v1806 = vpop.permute.xlu0 %1805
        %1807 = vrot.lane.b32.xlu0 %v1776, 17
        %v1808 = vpop.permute.xlu0 %1807
        %1809 = vrot.lane.b32.xlu0 %v1773, 17
        %v1810 = vpop.permute.xlu0 %1809
        %1811 = vrot.lane.b32.xlu0 %v1777, 17
        %v1812 = vpop.permute.xlu0 %1811
        %1813 = vrot.lane.b32.xlu0 %v1774, 17
        %v1814 = vpop.permute.xlu0 %1813
        %1815 = vrot.lane.b32.xlu0 %v1778, 17
        %v1816 = vpop.permute.xlu0 %1815
        %1817 = vrot.lane.b32.xlu0 %v1775, 17
        %v1818 = vpop.permute.xlu0 %1817
        %1819 = vrot.lane.b32.xlu0 %v1779, 17
        %v1820 = vpop.permute.xlu0 %1819
        %v1821 = vsel %vm381, %v1814, %v1818
        %v1822 = vsel %vm381, %v1816, %v1820
        %v1823 = vsel %vm381, %v1810, %v1814
        %v1824 = vsel %vm381, %v1812, %v1816
        %v1825 = vsel %vm381, %v1806, %v1810
        %v1826 = vsel %vm381, %v1808, %v1812
        %v1827 = vsel %vm381, %v1818, %v1806
        %v1828 = vsel %vm381, %v1820, %v1808
        %v1829 = vld [vmem:[%s0] sm:$0xf]
        %v1831 = vlaneseq
        %v1832 = vshrl.u32 %v1831, 7
        %v1833 = vsub.s32 0, %v1832
        %v1834 = vrot.slane %v1829, %v1833
        %v1835 = vlaneseq
        %v1836 = vshrl.u32 %v1835, 7
        %v1837 = vsub.s32 1, %v1836
        %v1838 = vrot.slane %v1829, %v1837
        %v1839 = vlaneseq
        %v1840 = vshrl.u32 %v1839, 7
        %v1841 = vsub.s32 2, %v1840
        %v1842 = vrot.slane %v1829, %v1841
        %v1843 = vlaneseq
        %v1844 = vshrl.u32 %v1843, 7
        %v1845 = vsub.s32 3, %v1844
        %v1846 = vrot.slane %v1829, %v1845
        %v1851 = vmul.f32 %v1827, %v1834
        %v1852 = vmul.f32 %v1825, %v1838
        %v1853 = vmul.f32 %v1823, %v1842
        %v1854 = vmul.f32 %v1821, %v1846
        %v1855 = vmul.f32 %v1828, %v1834
        %v1856 = vmul.f32 %v1826, %v1838
        %v1857 = vmul.f32 %v1824, %v1842
        %v1858 = vmul.f32 %v1822, %v1846
        %v1859 = vpack.c.bf16 %v1855, %v1851
        %v1860 = vpack.c.bf16 %v1856, %v1852
        %v1861 = vpack.c.bf16 %v1857, %v1853
        %v1862 = vpack.c.bf16 %v1858, %v1854
        %1863 = vrot.lane.b32.xlu0 %v1772, 16
        %v1864 = vpop.permute.xlu0 %1863
        %1865 = vrot.lane.b32.xlu0 %v1776, 16
        %v1866 = vpop.permute.xlu0 %1865
        %1867 = vrot.lane.b32.xlu0 %v1773, 16
        %v1868 = vpop.permute.xlu0 %1867
        %1869 = vrot.lane.b32.xlu0 %v1777, 16
        %v1870 = vpop.permute.xlu0 %1869
        %1871 = vrot.lane.b32.xlu0 %v1774, 16
        %v1872 = vpop.permute.xlu0 %1871
        %1873 = vrot.lane.b32.xlu0 %v1778, 16
        %v1874 = vpop.permute.xlu0 %1873
        %1875 = vrot.lane.b32.xlu0 %v1775, 16
        %v1876 = vpop.permute.xlu0 %1875
        %1877 = vrot.lane.b32.xlu0 %v1779, 16
        %v1878 = vpop.permute.xlu0 %1877
        %v1879 = vsel %vm424, %v1872, %v1876
        %v1880 = vsel %vm424, %v1874, %v1878
        %v1881 = vsel %vm424, %v1868, %v1872
        %v1882 = vsel %vm424, %v1870, %v1874
        %v1883 = vsel %vm424, %v1864, %v1868
        %v1884 = vsel %vm424, %v1866, %v1870
        %v1885 = vsel %vm424, %v1876, %v1864
        %v1886 = vsel %vm424, %v1878, %v1866
        %v1887 = vld [vmem:[%s429] sm:$0xf]
        %v1889 = vlaneseq
        %v1890 = vshrl.u32 %v1889, 7
        %v1891 = vsub.s32 0, %v1890
        %v1892 = vrot.slane %v1887, %v1891
        %v1893 = vlaneseq
        %v1894 = vshrl.u32 %v1893, 7
        %v1895 = vsub.s32 1, %v1894
        %v1896 = vrot.slane %v1887, %v1895
        %v1897 = vlaneseq
        %v1898 = vshrl.u32 %v1897, 7
        %v1899 = vsub.s32 2, %v1898
        %v1900 = vrot.slane %v1887, %v1899
        %v1901 = vlaneseq
        %v1902 = vshrl.u32 %v1901, 7
        %v1903 = vsub.s32 3, %v1902
        %v1904 = vrot.slane %v1887, %v1903
        %v1909 = vmul.f32 %v1885, %v1892
        %v1910 = vmul.f32 %v1883, %v1896
        %v1911 = vmul.f32 %v1881, %v1900
        %v1912 = vmul.f32 %v1879, %v1904
        %v1913 = vmul.f32 %v1886, %v1892
        %v1914 = vmul.f32 %v1884, %v1896
        %v1915 = vmul.f32 %v1882, %v1900
        %v1916 = vmul.f32 %v1880, %v1904
        %v1917 = vpack.c.bf16 %v1913, %v1909
        %v1918 = vpack.c.bf16 %v1914, %v1910
        %v1919 = vpack.c.bf16 %v1915, %v1911
        %v1920 = vpack.c.bf16 %v1916, %v1912
        %v1923 = vunpack.c.l.b16 %v1785
        %v1924 = vunpack.c.l.b16 %v1786
        %v1925 = vpack.c.b16 %v1924, %v1923
        %vm1926 = vcmask 130048
        %v1928 = vsel %vm1926, %v1925, 0
        %1930 = vmatprep.subr.bf16.mxu0 %v1918
        %1931 = vmatpush1.bf16.msra.mxu0 %v1917
        %1932 = vmatprep.subr.bf16.mxu0 0
        %1933 = vmatpush1.bf16.msra.mxu0 0
        %1934 = vmatprep.subr.bf16.mxu0 0
        %1935 = vmatpush1.bf16.msra.mxu0 0
        %1936 = vmatprep.subr.bf16.mxu0 0
        %1937 = vmatpush1.bf16.msra.mxu0 0
        %1938 = vmatprep.subr.bf16.mxu0 0
        %1939 = vmatpush1.bf16.msra.mxu0 0
        %1940 = vmatprep.subr.bf16.mxu0 0
        %1941 = vmatpush1.bf16.msra.mxu0 0
        %1942 = vmatprep.subr.bf16.mxu0 0
        %1943 = vmatpush1.bf16.msra.mxu0 0
        %1944 = vmatprep.subr.bf16.mxu0 0
        %1945 = vmatpush1.bf16.msra.mxu0 0
        %1946 = vmatprep.subr.bf16.mxu0 0
        %1947 = vmatpush1.bf16.msra.mxu0 0
        %1948 = vmatprep.subr.bf16.mxu0 0
        %1949 = vmatpush1.bf16.msra.mxu0 0
        %1950 = vmatprep.subr.bf16.mxu0 0
        %1951 = vmatpush1.bf16.msra.mxu0 0
        %1952 = vmatprep.subr.bf16.mxu0 0
        %1953 = vmatpush1.bf16.msra.mxu0 0
        %1954 = vmatprep.subr.bf16.mxu0 0
        %1955 = vmatpush1.bf16.msra.mxu0 0
        %1956 = vmatprep.subr.bf16.mxu0 0
        %1957 = vmatpush1.bf16.msra.mxu0 0
        %1958 = vmatprep.subr.bf16.mxu0 0
        %1959 = vmatpush1.bf16.msra.mxu0 0
        %1960 = vmatprep.subr.bf16.mxu0 0
        %1961 = vmatpush1.bf16.msra.mxu0 0
        %1962 = vmatprep.mubr.bf16.mxu0 0
        %1963 = vmatmul.mubr.bf16.gmra.mrb[0].mxu0 %v1928
        %v1964 = vpop.f32.mrb[0].mxu0
        %v1965 = vadd.f32 0.0, %v1964
        %v1966 = vpop.f32.mrb[0].mxu0
        %v1967 = vadd.f32 0.0, %v1966
        %v1968 = vpop.f32.mrb[0].mxu0
        %v1969 = vadd.f32 0.0, %v1968
        %v1970 = vpop.f32.mrb[0].mxu0
        %v1971 = vadd.f32 0.0, %v1970
        %1972 = vdwg.mxu0
        %1973 = vmatprep.subr.bf16.mxu0 %v1920
        %1974 = vmatpush1.bf16.msra.mxu0 %v1919
        %1975 = vmatprep.subr.bf16.mxu0 0
        %1976 = vmatpush1.bf16.msra.mxu0 0
        %1977 = vmatprep.subr.bf16.mxu0 0
        %1978 = vmatpush1.bf16.msra.mxu0 0
        %1979 = vmatprep.subr.bf16.mxu0 0
        %1980 = vmatpush1.bf16.msra.mxu0 0
        %1981 = vmatprep.subr.bf16.mxu0 0
        %1982 = vmatpush1.bf16.msra.mxu0 0
        %1983 = vmatprep.subr.bf16.mxu0 0
        %1984 = vmatpush1.bf16.msra.mxu0 0
        %1985 = vmatprep.subr.bf16.mxu0 0
        %1986 = vmatpush1.bf16.msra.mxu0 0
        %1987 = vmatprep.subr.bf16.mxu0 0
        %1988 = vmatpush1.bf16.msra.mxu0 0
        %1989 = vmatprep.subr.bf16.mxu0 0
        %1990 = vmatpush1.bf16.msra.mxu0 0
        %1991 = vmatprep.subr.bf16.mxu0 0
        %1992 = vmatpush1.bf16.msra.mxu0 0
        %1993 = vmatprep.subr.bf16.mxu0 0
        %1994 = vmatpush1.bf16.msra.mxu0 0
        %1995 = vmatprep.subr.bf16.mxu0 0
        %1996 = vmatpush1.bf16.msra.mxu0 0
        %1997 = vmatprep.subr.bf16.mxu0 0
        %1998 = vmatpush1.bf16.msra.mxu0 0
        %1999 = vmatprep.subr.bf16.mxu0 0
        %2000 = vmatpush1.bf16.msra.mxu0 0
        %2001 = vmatprep.subr.bf16.mxu0 0
        %2002 = vmatpush1.bf16.msra.mxu0 0
        %2003 = vmatprep.subr.bf16.mxu0 0
        %2004 = vmatpush1.bf16.msra.mxu0 0
        %2005 = vmatprep.mubr.bf16.mxu0 0
        %2006 = vmatmul.mubr.bf16.gmra.mrb[0].mxu0 %v1928
        %v2007 = vpop.f32.mrb[0].mxu0
        %v2008 = vadd.f32 0.0, %v2007
        %v2009 = vpop.f32.mrb[0].mxu0
        %v2010 = vadd.f32 0.0, %v2009
        %v2011 = vpop.f32.mrb[0].mxu0
        %v2012 = vadd.f32 0.0, %v2011
        %v2013 = vpop.f32.mrb[0].mxu0
        %v2014 = vadd.f32 0.0, %v2013
        %2015 = vdwg.mxu0
        %v2018 = vunpack.c.l.b16 %v1783
        %v2019 = vunpack.c.l.b16 %v1784
        %v2020 = vpack.c.b16 %v2019, %v2018
        %v2022 = vsel %vm1926, %v2020, 0
        %2024 = vmatprep.subr.bf16.mxu0 %v1860
        %2025 = vmatpush1.bf16.msra.mxu0 %v1859
        %2026 = vmatprep.subr.bf16.mxu0 0
        %2027 = vmatpush1.bf16.msra.mxu0 0
        %2028 = vmatprep.subr.bf16.mxu0 0
        %2029 = vmatpush1.bf16.msra.mxu0 0
        %2030 = vmatprep.subr.bf16.mxu0 0
        %2031 = vmatpush1.bf16.msra.mxu0 0
        %2032 = vmatprep.subr.bf16.mxu0 0
        %2033 = vmatpush1.bf16.msra.mxu0 0
        %2034 = vmatprep.subr.bf16.mxu0 0
        %2035 = vmatpush1.bf16.msra.mxu0 0
        %2036 = vmatprep.subr.bf16.mxu0 0
        %2037 = vmatpush1.bf16.msra.mxu0 0
        %2038 = vmatprep.subr.bf16.mxu0 0
        %2039 = vmatpush1.bf16.msra.mxu0 0
        %2040 = vmatprep.subr.bf16.mxu0 0
        %2041 = vmatpush1.bf16.msra.mxu0 0
        %2042 = vmatprep.subr.bf16.mxu0 0
        %2043 = vmatpush1.bf16.msra.mxu0 0
        %2044 = vmatprep.subr.bf16.mxu0 0
        %2045 = vmatpush1.bf16.msra.mxu0 0
        %2046 = vmatprep.subr.bf16.mxu0 0
        %2047 = vmatpush1.bf16.msra.mxu0 0
        %2048 = vmatprep.subr.bf16.mxu0 0
        %2049 = vmatpush1.bf16.msra.mxu0 0
        %2050 = vmatprep.subr.bf16.mxu0 0
        %2051 = vmatpush1.bf16.msra.mxu0 0
        %2052 = vmatprep.subr.bf16.mxu0 0
        %2053 = vmatpush1.bf16.msra.mxu0 0
        %2054 = vmatprep.subr.bf16.mxu0 0
        %2055 = vmatpush1.bf16.msra.mxu0 0
        %2056 = vmatprep.mubr.bf16.mxu0 0
        %2057 = vmatmul.mubr.bf16.gmra.mrb[0].mxu0 %v2022
        %v2058 = vpop.f32.mrb[0].mxu0
        %v2059 = vadd.f32 %v1965, %v2058
        %v2060 = vpop.f32.mrb[0].mxu0
        %v2061 = vadd.f32 %v1967, %v2060
        %v2062 = vpop.f32.mrb[0].mxu0
        %v2063 = vadd.f32 %v1969, %v2062
        %v2064 = vpop.f32.mrb[0].mxu0
        %v2065 = vadd.f32 %v1971, %v2064
        %2066 = vdwg.mxu0
        %2067 = vmatprep.subr.bf16.mxu0 %v1862
        %2068 = vmatpush1.bf16.msra.mxu0 %v1861
        %2069 = vmatprep.subr.bf16.mxu0 0
        %2070 = vmatpush1.bf16.msra.mxu0 0
        %2071 = vmatprep.subr.bf16.mxu0 0
        %2072 = vmatpush1.bf16.msra.mxu0 0
        %2073 = vmatprep.subr.bf16.mxu0 0
        %2074 = vmatpush1.bf16.msra.mxu0 0
        %2075 = vmatprep.subr.bf16.mxu0 0
        %2076 = vmatpush1.bf16.msra.mxu0 0
        %2077 = vmatprep.subr.bf16.mxu0 0
        %2078 = vmatpush1.bf16.msra.mxu0 0
        %2079 = vmatprep.subr.bf16.mxu0 0
        %2080 = vmatpush1.bf16.msra.mxu0 0
        %2081 = vmatprep.subr.bf16.mxu0 0
        %2082 = vmatpush1.bf16.msra.mxu0 0
        %2083 = vmatprep.subr.bf16.mxu0 0
        %2084 = vmatpush1.bf16.msra.mxu0 0
        %2085 = vmatprep.subr.bf16.mxu0 0
        %2086 = vmatpush1.bf16.msra.mxu0 0
        %2087 = vmatprep.subr.bf16.mxu0 0
        %2088 = vmatpush1.bf16.msra.mxu0 0
        %2089 = vmatprep.subr.bf16.mxu0 0
        %2090 = vmatpush1.bf16.msra.mxu0 0
        %2091 = vmatprep.subr.bf16.mxu0 0
        %2092 = vmatpush1.bf16.msra.mxu0 0
        %2093 = vmatprep.subr.bf16.mxu0 0
        %2094 = vmatpush1.bf16.msra.mxu0 0
        %2095 = vmatprep.subr.bf16.mxu0 0
        %2096 = vmatpush1.bf16.msra.mxu0 0
        %2097 = vmatprep.subr.bf16.mxu0 0
        %2098 = vmatpush1.bf16.msra.mxu0 0
        %2099 = vmatprep.mubr.bf16.mxu0 0
        %2100 = vmatmul.mubr.bf16.gmra.mrb[0].mxu0 %v2022
        %v2101 = vpop.f32.mrb[0].mxu0
        %v2102 = vadd.f32 %v2008, %v2101
        %v2103 = vpop.f32.mrb[0].mxu0
        %v2104 = vadd.f32 %v2010, %v2103
        %v2105 = vpop.f32.mrb[0].mxu0
        %v2106 = vadd.f32 %v2012, %v2105
        %v2107 = vpop.f32.mrb[0].mxu0
        %v2108 = vadd.f32 %v2014, %v2107
        %2109 = vdwg.mxu0
        %2110 = vrot.lane.b32.xlu0 %v1772, 15
        %v2111 = vpop.permute.xlu0 %2110
        %2112 = vrot.lane.b32.xlu0 %v1776, 15
        %v2113 = vpop.permute.xlu0 %2112
        %2114 = vrot.lane.b32.xlu0 %v1773, 15
        %v2115 = vpop.permute.xlu0 %2114
        %2116 = vrot.lane.b32.xlu0 %v1777, 15
        %v2117 = vpop.permute.xlu0 %2116
        %2118 = vrot.lane.b32.xlu0 %v1774, 15
        %v2119 = vpop.permute.xlu0 %2118
        %2120 = vrot.lane.b32.xlu0 %v1778, 15
        %v2121 = vpop.permute.xlu0 %2120
        %2122 = vrot.lane.b32.xlu0 %v1775, 15
        %v2123 = vpop.permute.xlu0 %2122
        %2124 = vrot.lane.b32.xlu0 %v1779, 15
        %v2125 = vpop.permute.xlu0 %2124
        %v2126 = vsel %vm682, %v2119, %v2123
        %v2127 = vsel %vm682, %v2121, %v2125
        %v2128 = vsel %vm682, %v2115, %v2119
        %v2129 = vsel %vm682, %v2117, %v2121
        %v2130 = vsel %vm682, %v2111, %v2115
        %v2131 = vsel %vm682, %v2113, %v2117
        %v2132 = vsel %vm682, %v2123, %v2111
        %v2133 = vsel %vm682, %v2125, %v2113
        %v2134 = vld [vmem:[%s687] sm:$0xf]
        %v2136 = vlaneseq
        %v2137 = vshrl.u32 %v2136, 7
        %v2138 = vsub.s32 0, %v2137
        %v2139 = vrot.slane %v2134, %v2138
        %v2140 = vlaneseq
        %v2141 = vshrl.u32 %v2140, 7
        %v2142 = vsub.s32 1, %v2141
        %v2143 = vrot.slane %v2134, %v2142
        %v2144 = vlaneseq
        %v2145 = vshrl.u32 %v2144, 7
        %v2146 = vsub.s32 2, %v2145
        %v2147 = vrot.slane %v2134, %v2146
        %v2148 = vlaneseq
        %v2149 = vshrl.u32 %v2148, 7
        %v2150 = vsub.s32 3, %v2149
        %v2151 = vrot.slane %v2134, %v2150
        %v2156 = vmul.f32 %v2132, %v2139
        %v2157 = vmul.f32 %v2130, %v2143
        %v2158 = vmul.f32 %v2128, %v2147
        %v2159 = vmul.f32 %v2126, %v2151
        %v2160 = vmul.f32 %v2133, %v2139
        %v2161 = vmul.f32 %v2131, %v2143
        %v2162 = vmul.f32 %v2129, %v2147
        %v2163 = vmul.f32 %v2127, %v2151
        %v2164 = vpack.c.bf16 %v2160, %v2156
        %v2165 = vpack.c.bf16 %v2161, %v2157
        %v2166 = vpack.c.bf16 %v2162, %v2158
        %v2167 = vpack.c.bf16 %v2163, %v2159
        %v2170 = vunpack.c.l.b16 %v1787
        %v2171 = vunpack.c.l.b16 %v1788
        %v2172 = vpack.c.b16 %v2171, %v2170
        %v2174 = vsel %vm1926, %v2172, 0
        %2176 = vmatprep.subr.bf16.mxu0 %v2165
        %2177 = vmatpush1.bf16.msra.mxu0 %v2164
        %2178 = vmatprep.subr.bf16.mxu0 0
        %2179 = vmatpush1.bf16.msra.mxu0 0
        %2180 = vmatprep.subr.bf16.mxu0 0
        %2181 = vmatpush1.bf16.msra.mxu0 0
        %2182 = vmatprep.subr.bf16.mxu0 0
        %2183 = vmatpush1.bf16.msra.mxu0 0
        %2184 = vmatprep.subr.bf16.mxu0 0
        %2185 = vmatpush1.bf16.msra.mxu0 0
        %2186 = vmatprep.subr.bf16.mxu0 0
        %2187 = vmatpush1.bf16.msra.mxu0 0
        %2188 = vmatprep.subr.bf16.mxu0 0
        %2189 = vmatpush1.bf16.msra.mxu0 0
        %2190 = vmatprep.subr.bf16.mxu0 0
        %2191 = vmatpush1.bf16.msra.mxu0 0
        %2192 = vmatprep.subr.bf16.mxu0 0
        %2193 = vmatpush1.bf16.msra.mxu0 0
        %2194 = vmatprep.subr.bf16.mxu0 0
        %2195 = vmatpush1.bf16.msra.mxu0 0
        %2196 = vmatprep.subr.bf16.mxu0 0
        %2197 = vmatpush1.bf16.msra.mxu0 0
        %2198 = vmatprep.subr.bf16.mxu0 0
        %2199 = vmatpush1.bf16.msra.mxu0 0
        %2200 = vmatprep.subr.bf16.mxu0 0
        %2201 = vmatpush1.bf16.msra.mxu0 0
        %2202 = vmatprep.subr.bf16.mxu0 0
        %2203 = vmatpush1.bf16.msra.mxu0 0
        %2204 = vmatprep.subr.bf16.mxu0 0
        %2205 = vmatpush1.bf16.msra.mxu0 0
        %2206 = vmatprep.subr.bf16.mxu0 0
        %2207 = vmatpush1.bf16.msra.mxu0 0
        %2208 = vmatprep.mubr.bf16.mxu0 0
        %2209 = vmatmul.mubr.bf16.gmra.mrb[0].mxu0 %v2174
        %v2210 = vpop.f32.mrb[0].mxu0
        %v2211 = vadd.f32 0.0, %v2210
        %v2212 = vpop.f32.mrb[0].mxu0
        %v2213 = vadd.f32 0.0, %v2212
        %v2214 = vpop.f32.mrb[0].mxu0
        %v2215 = vadd.f32 0.0, %v2214
        %v2216 = vpop.f32.mrb[0].mxu0
        %v2217 = vadd.f32 0.0, %v2216
        %2218 = vdwg.mxu0
        %2219 = vmatprep.subr.bf16.mxu0 %v2167
        %2220 = vmatpush1.bf16.msra.mxu0 %v2166
        %2221 = vmatprep.subr.bf16.mxu0 0
        %2222 = vmatpush1.bf16.msra.mxu0 0
        %2223 = vmatprep.subr.bf16.mxu0 0
        %2224 = vmatpush1.bf16.msra.mxu0 0
        %2225 = vmatprep.subr.bf16.mxu0 0
        %2226 = vmatpush1.bf16.msra.mxu0 0
        %2227 = vmatprep.subr.bf16.mxu0 0
        %2228 = vmatpush1.bf16.msra.mxu0 0
        %2229 = vmatprep.subr.bf16.mxu0 0
        %2230 = vmatpush1.bf16.msra.mxu0 0
        %2231 = vmatprep.subr.bf16.mxu0 0
        %2232 = vmatpush1.bf16.msra.mxu0 0
        %2233 = vmatprep.subr.bf16.mxu0 0
        %2234 = vmatpush1.bf16.msra.mxu0 0
        %2235 = vmatprep.subr.bf16.mxu0 0
        %2236 = vmatpush1.bf16.msra.mxu0 0
        %2237 = vmatprep.subr.bf16.mxu0 0
        %2238 = vmatpush1.bf16.msra.mxu0 0
        %2239 = vmatprep.subr.bf16.mxu0 0
        %2240 = vmatpush1.bf16.msra.mxu0 0
        %2241 = vmatprep.subr.bf16.mxu0 0
        %2242 = vmatpush1.bf16.msra.mxu0 0
        %2243 = vmatprep.subr.bf16.mxu0 0
        %2244 = vmatpush1.bf16.msra.mxu0 0
        %2245 = vmatprep.subr.bf16.mxu0 0
        %2246 = vmatpush1.bf16.msra.mxu0 0
        %2247 = vmatprep.subr.bf16.mxu0 0
        %2248 = vmatpush1.bf16.msra.mxu0 0
        %2249 = vmatprep.subr.bf16.mxu0 0
        %2250 = vmatpush1.bf16.msra.mxu0 0
        %2251 = vmatprep.mubr.bf16.mxu0 0
        %2252 = vmatmul.mubr.bf16.gmra.mrb[0].mxu0 %v2174
        %v2253 = vpop.f32.mrb[0].mxu0
        %v2254 = vadd.f32 0.0, %v2253
        %v2255 = vpop.f32.mrb[0].mxu0
        %v2256 = vadd.f32 0.0, %v2255
        %v2257 = vpop.f32.mrb[0].mxu0
        %v2258 = vadd.f32 0.0, %v2257
        %v2259 = vpop.f32.mrb[0].mxu0
        %v2260 = vadd.f32 0.0, %v2259
        %2261 = vdwg.mxu0
        %v2262 = vadd.f32 %v2059, %v2211
        %v2263 = vadd.f32 %v2061, %v2213
        %v2264 = vadd.f32 %v2102, %v2254
        %v2265 = vadd.f32 %v2104, %v2256
        %v2266 = vadd.f32 %v2063, %v2215
        %v2267 = vadd.f32 %v2065, %v2217
        %v2268 = vadd.f32 %v2106, %v2258
        %v2269 = vadd.f32 %v2108, %v2260
        %2270 = vrot.lane.b32.xlu0 %v1772, 1
        %v2271 = vpop.permute.xlu0 %2270
        %2272 = vrot.lane.b32.xlu0 %v1776, 1
        %v2273 = vpop.permute.xlu0 %2272
        %2274 = vrot.lane.b32.xlu0 %v1773, 1
        %v2275 = vpop.permute.xlu0 %2274
        %2276 = vrot.lane.b32.xlu0 %v1777, 1
        %v2277 = vpop.permute.xlu0 %2276
        %2278 = vrot.lane.b32.xlu0 %v1774, 1
        %v2279 = vpop.permute.xlu0 %2278
        %2280 = vrot.lane.b32.xlu0 %v1778, 1
        %v2281 = vpop.permute.xlu0 %2280
        %2282 = vrot.lane.b32.xlu0 %v1775, 1
        %v2283 = vpop.permute.xlu0 %2282
        %2284 = vrot.lane.b32.xlu0 %v1779, 1
        %v2285 = vpop.permute.xlu0 %2284
        %v2286 = vsel %vm840, %v2279, %v2283
        %v2287 = vsel %vm840, %v2281, %v2285
        %v2288 = vsel %vm840, %v2275, %v2279
        %v2289 = vsel %vm840, %v2277, %v2281
        %v2290 = vsel %vm840, %v2271, %v2275
        %v2291 = vsel %vm840, %v2273, %v2277
        %v2292 = vsel %vm840, %v2283, %v2271
        %v2293 = vsel %vm840, %v2285, %v2273
        %v2294 = vld [vmem:[%s845] sm:$0xf]
        %v2296 = vlaneseq
        %v2297 = vshrl.u32 %v2296, 7
        %v2298 = vsub.s32 0, %v2297
        %v2299 = vrot.slane %v2294, %v2298
        %v2300 = vlaneseq
        %v2301 = vshrl.u32 %v2300, 7
        %v2302 = vsub.s32 1, %v2301
        %v2303 = vrot.slane %v2294, %v2302
        %v2304 = vlaneseq
        %v2305 = vshrl.u32 %v2304, 7
        %v2306 = vsub.s32 2, %v2305
        %v2307 = vrot.slane %v2294, %v2306
        %v2308 = vlaneseq
        %v2309 = vshrl.u32 %v2308, 7
        %v2310 = vsub.s32 3, %v2309
        %v2311 = vrot.slane %v2294, %v2310
        %v2316 = vmul.f32 %v2292, %v2299
        %v2317 = vmul.f32 %v2290, %v2303
        %v2318 = vmul.f32 %v2288, %v2307
        %v2319 = vmul.f32 %v2286, %v2311
        %v2320 = vmul.f32 %v2293, %v2299
        %v2321 = vmul.f32 %v2291, %v2303
        %v2322 = vmul.f32 %v2289, %v2307
        %v2323 = vmul.f32 %v2287, %v2311
        %v2324 = vpack.c.bf16 %v2320, %v2316
        %v2325 = vpack.c.bf16 %v2321, %v2317
        %v2326 = vpack.c.bf16 %v2322, %v2318
        %v2327 = vpack.c.bf16 %v2323, %v2319
        %v2330 = vunpack.c.l.b16 %v1789
        %v2331 = vunpack.c.l.b16 %v1790
        %v2332 = vpack.c.b16 %v2331, %v2330
        %v2334 = vsel %vm1926, %v2332, 0
        %2336 = vmatprep.subr.bf16.mxu0 %v2325
        %2337 = vmatpush1.bf16.msra.mxu0 %v2324
        %2338 = vmatprep.subr.bf16.mxu0 0
        %2339 = vmatpush1.bf16.msra.mxu0 0
        %2340 = vmatprep.subr.bf16.mxu0 0
        %2341 = vmatpush1.bf16.msra.mxu0 0
        %2342 = vmatprep.subr.bf16.mxu0 0
        %2343 = vmatpush1.bf16.msra.mxu0 0
        %2344 = vmatprep.subr.bf16.mxu0 0
        %2345 = vmatpush1.bf16.msra.mxu0 0
        %2346 = vmatprep.subr.bf16.mxu0 0
        %2347 = vmatpush1.bf16.msra.mxu0 0
        %2348 = vmatprep.subr.bf16.mxu0 0
        %2349 = vmatpush1.bf16.msra.mxu0 0
        %2350 = vmatprep.subr.bf16.mxu0 0
        %2351 = vmatpush1.bf16.msra.mxu0 0
        %2352 = vmatprep.subr.bf16.mxu0 0
        %2353 = vmatpush1.bf16.msra.mxu0 0
        %2354 = vmatprep.subr.bf16.mxu0 0
        %2355 = vmatpush1.bf16.msra.mxu0 0
        %2356 = vmatprep.subr.bf16.mxu0 0
        %2357 = vmatpush1.bf16.msra.mxu0 0
        %2358 = vmatprep.subr.bf16.mxu0 0
        %2359 = vmatpush1.bf16.msra.mxu0 0
        %2360 = vmatprep.subr.bf16.mxu0 0
        %2361 = vmatpush1.bf16.msra.mxu0 0
        %2362 = vmatprep.subr.bf16.mxu0 0
        %2363 = vmatpush1.bf16.msra.mxu0 0
        %2364 = vmatprep.subr.bf16.mxu0 0
        %2365 = vmatpush1.bf16.msra.mxu0 0
        %2366 = vmatprep.subr.bf16.mxu0 0
        %2367 = vmatpush1.bf16.msra.mxu0 0
        %2368 = vmatprep.mubr.bf16.mxu0 0
        %2369 = vmatmul.mubr.bf16.gmra.mrb[0].mxu0 %v2334
        %v2370 = vpop.f32.mrb[0].mxu0
        %v2371 = vadd.f32 0.0, %v2370
        %v2372 = vpop.f32.mrb[0].mxu0
        %v2373 = vadd.f32 0.0, %v2372
        %v2374 = vpop.f32.mrb[0].mxu0
        %v2375 = vadd.f32 0.0, %v2374
        %v2376 = vpop.f32.mrb[0].mxu0
        %v2377 = vadd.f32 0.0, %v2376
        %2378 = vdwg.mxu0
        %2379 = vmatprep.subr.bf16.mxu0 %v2327
        %2380 = vmatpush1.bf16.msra.mxu0 %v2326
        %2381 = vmatprep.subr.bf16.mxu0 0
        %2382 = vmatpush1.bf16.msra.mxu0 0
        %2383 = vmatprep.subr.bf16.mxu0 0
        %2384 = vmatpush1.bf16.msra.mxu0 0
        %2385 = vmatprep.subr.bf16.mxu0 0
        %2386 = vmatpush1.bf16.msra.mxu0 0
        %2387 = vmatprep.subr.bf16.mxu0 0
        %2388 = vmatpush1.bf16.msra.mxu0 0
        %2389 = vmatprep.subr.bf16.mxu0 0
        %2390 = vmatpush1.bf16.msra.mxu0 0
        %2391 = vmatprep.subr.bf16.mxu0 0
        %2392 = vmatpush1.bf16.msra.mxu0 0
        %2393 = vmatprep.subr.bf16.mxu0 0
        %2394 = vmatpush1.bf16.msra.mxu0 0
        %2395 = vmatprep.subr.bf16.mxu0 0
        %2396 = vmatpush1.bf16.msra.mxu0 0
        %2397 = vmatprep.subr.bf16.mxu0 0
        %2398 = vmatpush1.bf16.msra.mxu0 0
        %2399 = vmatprep.subr.bf16.mxu0 0
        %2400 = vmatpush1.bf16.msra.mxu0 0
        %2401 = vmatprep.subr.bf16.mxu0 0
        %2402 = vmatpush1.bf16.msra.mxu0 0
        %2403 = vmatprep.subr.bf16.mxu0 0
        %2404 = vmatpush1.bf16.msra.mxu0 0
        %2405 = vmatprep.subr.bf16.mxu0 0
        %2406 = vmatpush1.bf16.msra.mxu0 0
        %2407 = vmatprep.subr.bf16.mxu0 0
        %2408 = vmatpush1.bf16.msra.mxu0 0
        %2409 = vmatprep.subr.bf16.mxu0 0
        %2410 = vmatpush1.bf16.msra.mxu0 0
        %2411 = vmatprep.mubr.bf16.mxu0 0
        %2412 = vmatmul.mubr.bf16.gmra.mrb[0].mxu0 %v2334
        %v2413 = vpop.f32.mrb[0].mxu0
        %v2414 = vadd.f32 0.0, %v2413
        %v2415 = vpop.f32.mrb[0].mxu0
        %v2416 = vadd.f32 0.0, %v2415
        %v2417 = vpop.f32.mrb[0].mxu0
        %v2418 = vadd.f32 0.0, %v2417
        %v2419 = vpop.f32.mrb[0].mxu0
        %v2420 = vadd.f32 0.0, %v2419
        %2421 = vdwg.mxu0
        %v2422 = vadd.f32 %v2262, %v2371
        %v2423 = vadd.f32 %v2263, %v2373
        %v2424 = vadd.f32 %v2264, %v2414
        %v2425 = vadd.f32 %v2265, %v2416
        %v2426 = vadd.f32 %v2266, %v2375
        %v2427 = vadd.f32 %v2267, %v2377
        %v2428 = vadd.f32 %v2268, %v2418
        %v2429 = vadd.f32 %v2269, %v2420
        %v2430 = vpack.c.bf16 %v1776, %v1772
        %v2431 = vpack.c.bf16 %v1777, %v1773
        %v2432 = vpack.c.bf16 %v1778, %v1774
        %v2433 = vpack.c.bf16 %v1779, %v1775
        %v2436 = vunpack.c.l.b16 %v1791
        %v2437 = vunpack.c.l.b16 %v1792
        %v2438 = vpack.c.b16 %v2437, %v2436
        %v2440 = vsel %vm1926, %v2438, 0
        %2442 = vmatprep.subr.bf16.mxu0 %v2431
        %2443 = vmatpush1.bf16.msra.mxu0 %v2430
        %2444 = vmatprep.subr.bf16.mxu0 0
        %2445 = vmatpush1.bf16.msra.mxu0 0
        %2446 = vmatprep.subr.bf16.mxu0 0
        %2447 = vmatpush1.bf16.msra.mxu0 0
        %2448 = vmatprep.subr.bf16.mxu0 0
        %2449 = vmatpush1.bf16.msra.mxu0 0
        %2450 = vmatprep.subr.bf16.mxu0 0
        %2451 = vmatpush1.bf16.msra.mxu0 0
        %2452 = vmatprep.subr.bf16.mxu0 0
        %2453 = vmatpush1.bf16.msra.mxu0 0
        %2454 = vmatprep.subr.bf16.mxu0 0
        %2455 = vmatpush1.bf16.msra.mxu0 0
        %2456 = vmatprep.subr.bf16.mxu0 0
        %2457 = vmatpush1.bf16.msra.mxu0 0
        %2458 = vmatprep.subr.bf16.mxu0 0
        %2459 = vmatpush1.bf16.msra.mxu0 0
        %2460 = vmatprep.subr.bf16.mxu0 0
        %2461 = vmatpush1.bf16.msra.mxu0 0
        %2462 = vmatprep.subr.bf16.mxu0 0
        %2463 = vmatpush1.bf16.msra.mxu0 0
        %2464 = vmatprep.subr.bf16.mxu0 0
        %2465 = vmatpush1.bf16.msra.mxu0 0
        %2466 = vmatprep.subr.bf16.mxu0 0
        %2467 = vmatpush1.bf16.msra.mxu0 0
        %2468 = vmatprep.subr.bf16.mxu0 0
        %2469 = vmatpush1.bf16.msra.mxu0 0
        %2470 = vmatprep.subr.bf16.mxu0 0
        %2471 = vmatpush1.bf16.msra.mxu0 0
        %2472 = vmatprep.subr.bf16.mxu0 0
        %2473 = vmatpush1.bf16.msra.mxu0 0
        %2474 = vmatprep.mubr.bf16.mxu0 0
        %2475 = vmatmul.mubr.bf16.gmra.mrb[0].mxu0 %v2440
        %v2476 = vpop.f32.mrb[0].mxu0
        %v2477 = vadd.f32 0.0, %v2476
        %v2478 = vpop.f32.mrb[0].mxu0
        %v2479 = vadd.f32 0.0, %v2478
        %v2480 = vpop.f32.mrb[0].mxu0
        %v2481 = vadd.f32 0.0, %v2480
        %v2482 = vpop.f32.mrb[0].mxu0
        %v2483 = vadd.f32 0.0, %v2482
        %2484 = vdwg.mxu0
        %2485 = vmatprep.subr.bf16.mxu0 %v2433
        %2486 = vmatpush1.bf16.msra.mxu0 %v2432
        %2487 = vmatprep.subr.bf16.mxu0 0
        %2488 = vmatpush1.bf16.msra.mxu0 0
        %2489 = vmatprep.subr.bf16.mxu0 0
        %2490 = vmatpush1.bf16.msra.mxu0 0
        %2491 = vmatprep.subr.bf16.mxu0 0
        %2492 = vmatpush1.bf16.msra.mxu0 0
        %2493 = vmatprep.subr.bf16.mxu0 0
        %2494 = vmatpush1.bf16.msra.mxu0 0
        %2495 = vmatprep.subr.bf16.mxu0 0
        %2496 = vmatpush1.bf16.msra.mxu0 0
        %2497 = vmatprep.subr.bf16.mxu0 0
        %2498 = vmatpush1.bf16.msra.mxu0 0
        %2499 = vmatprep.subr.bf16.mxu0 0
        %2500 = vmatpush1.bf16.msra.mxu0 0
        %2501 = vmatprep.subr.bf16.mxu0 0
        %2502 = vmatpush1.bf16.msra.mxu0 0
        %2503 = vmatprep.subr.bf16.mxu0 0
        %2504 = vmatpush1.bf16.msra.mxu0 0
        %2505 = vmatprep.subr.bf16.mxu0 0
        %2506 = vmatpush1.bf16.msra.mxu0 0
        %2507 = vmatprep.subr.bf16.mxu0 0
        %2508 = vmatpush1.bf16.msra.mxu0 0
        %2509 = vmatprep.subr.bf16.mxu0 0
        %2510 = vmatpush1.bf16.msra.mxu0 0
        %2511 = vmatprep.subr.bf16.mxu0 0
        %2512 = vmatpush1.bf16.msra.mxu0 0
        %2513 = vmatprep.subr.bf16.mxu0 0
        %2514 = vmatpush1.bf16.msra.mxu0 0
        %2515 = vmatprep.subr.bf16.mxu0 0
        %2516 = vmatpush1.bf16.msra.mxu0 0
        %2517 = vmatprep.mubr.bf16.mxu0 0
        %2518 = vmatmul.mubr.bf16.gmra.mrb[0].mxu0 %v2440
        %v2519 = vpop.f32.mrb[0].mxu0
        %v2520 = vadd.f32 0.0, %v2519
        %v2521 = vpop.f32.mrb[0].mxu0
        %v2522 = vadd.f32 0.0, %v2521
        %v2523 = vpop.f32.mrb[0].mxu0
        %v2524 = vadd.f32 0.0, %v2523
        %v2525 = vpop.f32.mrb[0].mxu0
        %v2526 = vadd.f32 0.0, %v2525
        %2527 = vdwg.mxu0
        %v2528 = vadd.f32 %v2422, %v2477
        %v2529 = vadd.f32 %v2423, %v2479
        %v2530 = vadd.f32 %v2424, %v2520
        %v2531 = vadd.f32 %v2425, %v2522
        %v2532 = vadd.f32 %v2426, %v2481
        %v2533 = vadd.f32 %v2427, %v2483
        %v2534 = vadd.f32 %v2428, %v2524
        %v2535 = vadd.f32 %v2429, %v2526
        %2536 = vrot.lane.b32.xlu0 %v1772, 127
        %v2537 = vpop.permute.xlu0 %2536
        %2538 = vrot.lane.b32.xlu0 %v1776, 127
        %v2539 = vpop.permute.xlu0 %2538
        %2540 = vrot.lane.b32.xlu0 %v1773, 127
        %v2541 = vpop.permute.xlu0 %2540
        %2542 = vrot.lane.b32.xlu0 %v1777, 127
        %v2543 = vpop.permute.xlu0 %2542
        %2544 = vrot.lane.b32.xlu0 %v1774, 127
        %v2545 = vpop.permute.xlu0 %2544
        %2546 = vrot.lane.b32.xlu0 %v1778, 127
        %v2547 = vpop.permute.xlu0 %2546
        %2548 = vrot.lane.b32.xlu0 %v1775, 127
        %v2549 = vpop.permute.xlu0 %2548
        %2550 = vrot.lane.b32.xlu0 %v1779, 127
        %v2551 = vpop.permute.xlu0 %2550
        %v2552 = vsel %vm1116, %v2545, %v2549
        %v2553 = vsel %vm1116, %v2547, %v2551
        %v2554 = vsel %vm1116, %v2541, %v2545
        %v2555 = vsel %vm1116, %v2543, %v2547
        %v2556 = vsel %vm1116, %v2537, %v2541
        %v2557 = vsel %vm1116, %v2539, %v2543
        %v2558 = vsel %vm1116, %v2549, %v2537
        %v2559 = vsel %vm1116, %v2551, %v2539
        %v2560 = vld [vmem:[%s1121] sm:$0xf]
        %v2562 = vlaneseq
        %v2563 = vshrl.u32 %v2562, 7
        %v2564 = vsub.s32 0, %v2563
        %v2565 = vrot.slane %v2560, %v2564
        %v2566 = vlaneseq
        %v2567 = vshrl.u32 %v2566, 7
        %v2568 = vsub.s32 1, %v2567
        %v2569 = vrot.slane %v2560, %v2568
        %v2570 = vlaneseq
        %v2571 = vshrl.u32 %v2570, 7
        %v2572 = vsub.s32 2, %v2571
        %v2573 = vrot.slane %v2560, %v2572
        %v2574 = vlaneseq
        %v2575 = vshrl.u32 %v2574, 7
        %v2576 = vsub.s32 3, %v2575
        %v2577 = vrot.slane %v2560, %v2576
        %v2582 = vmul.f32 %v2556, %v2565
        %v2583 = vmul.f32 %v2554, %v2569
        %v2584 = vmul.f32 %v2552, %v2573
        %v2585 = vmul.f32 %v2558, %v2577
        %v2586 = vmul.f32 %v2557, %v2565
        %v2587 = vmul.f32 %v2555, %v2569
        %v2588 = vmul.f32 %v2553, %v2573
        %v2589 = vmul.f32 %v2559, %v2577
        %v2590 = vpack.c.bf16 %v2586, %v2582
        %v2591 = vpack.c.bf16 %v2587, %v2583
        %v2592 = vpack.c.bf16 %v2588, %v2584
        %v2593 = vpack.c.bf16 %v2589, %v2585
        %v2596 = vunpack.c.l.b16 %v1793
        %v2597 = vunpack.c.l.b16 %v1794
        %v2598 = vpack.c.b16 %v2597, %v2596
        %v2600 = vsel %vm1926, %v2598, 0
        %2602 = vmatprep.subr.bf16.mxu0 %v2591
        %2603 = vmatpush1.bf16.msra.mxu0 %v2590
        %2604 = vmatprep.subr.bf16.mxu0 0
        %2605 = vmatpush1.bf16.msra.mxu0 0
        %2606 = vmatprep.subr.bf16.mxu0 0
        %2607 = vmatpush1.bf16.msra.mxu0 0
        %2608 = vmatprep.subr.bf16.mxu0 0
        %2609 = vmatpush1.bf16.msra.mxu0 0
        %2610 = vmatprep.subr.bf16.mxu0 0
        %2611 = vmatpush1.bf16.msra.mxu0 0
        %2612 = vmatprep.subr.bf16.mxu0 0
        %2613 = vmatpush1.bf16.msra.mxu0 0
        %2614 = vmatprep.subr.bf16.mxu0 0
        %2615 = vmatpush1.bf16.msra.mxu0 0
        %2616 = vmatprep.subr.bf16.mxu0 0
        %2617 = vmatpush1.bf16.msra.mxu0 0
        %2618 = vmatprep.subr.bf16.mxu0 0
        %2619 = vmatpush1.bf16.msra.mxu0 0
        %2620 = vmatprep.subr.bf16.mxu0 0
        %2621 = vmatpush1.bf16.msra.mxu0 0
        %2622 = vmatprep.subr.bf16.mxu0 0
        %2623 = vmatpush1.bf16.msra.mxu0 0
        %2624 = vmatprep.subr.bf16.mxu0 0
        %2625 = vmatpush1.bf16.msra.mxu0 0
        %2626 = vmatprep.subr.bf16.mxu0 0
        %2627 = vmatpush1.bf16.msra.mxu0 0
        %2628 = vmatprep.subr.bf16.mxu0 0
        %2629 = vmatpush1.bf16.msra.mxu0 0
        %2630 = vmatprep.subr.bf16.mxu0 0
        %2631 = vmatpush1.bf16.msra.mxu0 0
        %2632 = vmatprep.subr.bf16.mxu0 0
        %2633 = vmatpush1.bf16.msra.mxu0 0
        %2634 = vmatprep.mubr.bf16.mxu0 0
        %2635 = vmatmul.mubr.bf16.gmra.mrb[0].mxu0 %v2600
        %v2636 = vpop.f32.mrb[0].mxu0
        %v2637 = vadd.f32 0.0, %v2636
        %v2638 = vpop.f32.mrb[0].mxu0
        %v2639 = vadd.f32 0.0, %v2638
        %v2640 = vpop.f32.mrb[0].mxu0
        %v2641 = vadd.f32 0.0, %v2640
        %v2642 = vpop.f32.mrb[0].mxu0
        %v2643 = vadd.f32 0.0, %v2642
        %2644 = vdwg.mxu0
        %2645 = vmatprep.subr.bf16.mxu0 %v2593
        %2646 = vmatpush1.bf16.msra.mxu0 %v2592
        %2647 = vmatprep.subr.bf16.mxu0 0
        %2648 = vmatpush1.bf16.msra.mxu0 0
        %2649 = vmatprep.subr.bf16.mxu0 0
        %2650 = vmatpush1.bf16.msra.mxu0 0
        %2651 = vmatprep.subr.bf16.mxu0 0
        %2652 = vmatpush1.bf16.msra.mxu0 0
        %2653 = vmatprep.subr.bf16.mxu0 0
        %2654 = vmatpush1.bf16.msra.mxu0 0
        %2655 = vmatprep.subr.bf16.mxu0 0
        %2656 = vmatpush1.bf16.msra.mxu0 0
        %2657 = vmatprep.subr.bf16.mxu0 0
        %2658 = vmatpush1.bf16.msra.mxu0 0
        %2659 = vmatprep.subr.bf16.mxu0 0
        %2660 = vmatpush1.bf16.msra.mxu0 0
        %2661 = vmatprep.subr.bf16.mxu0 0
        %2662 = vmatpush1.bf16.msra.mxu0 0
        %2663 = vmatprep.subr.bf16.mxu0 0
        %2664 = vmatpush1.bf16.msra.mxu0 0
        %2665 = vmatprep.subr.bf16.mxu0 0
        %2666 = vmatpush1.bf16.msra.mxu0 0
        %2667 = vmatprep.subr.bf16.mxu0 0
        %2668 = vmatpush1.bf16.msra.mxu0 0
        %2669 = vmatprep.subr.bf16.mxu0 0
        %2670 = vmatpush1.bf16.msra.mxu0 0
        %2671 = vmatprep.subr.bf16.mxu0 0
        %2672 = vmatpush1.bf16.msra.mxu0 0
        %2673 = vmatprep.subr.bf16.mxu0 0
        %2674 = vmatpush1.bf16.msra.mxu0 0
        %2675 = vmatprep.subr.bf16.mxu0 0
        %2676 = vmatpush1.bf16.msra.mxu0 0
        %2677 = vmatprep.mubr.bf16.mxu0 0
        %2678 = vmatmul.mubr.bf16.gmra.mrb[0].mxu0 %v2600
        %v2679 = vpop.f32.mrb[0].mxu0
        %v2680 = vadd.f32 0.0, %v2679
        %v2681 = vpop.f32.mrb[0].mxu0
        %v2682 = vadd.f32 0.0, %v2681
        %v2683 = vpop.f32.mrb[0].mxu0
        %v2684 = vadd.f32 0.0, %v2683
        %v2685 = vpop.f32.mrb[0].mxu0
        %v2686 = vadd.f32 0.0, %v2685
        %2687 = vdwg.mxu0
        %v2688 = vadd.f32 %v2528, %v2637
        %v2689 = vadd.f32 %v2529, %v2639
        %v2690 = vadd.f32 %v2530, %v2680
        %v2691 = vadd.f32 %v2531, %v2682
        %v2692 = vadd.f32 %v2532, %v2641
        %v2693 = vadd.f32 %v2533, %v2643
        %v2694 = vadd.f32 %v2534, %v2684
        %v2695 = vadd.f32 %v2535, %v2686
        %2696 = vrot.lane.b32.xlu0 %v1772, 113
        %v2697 = vpop.permute.xlu0 %2696
        %2698 = vrot.lane.b32.xlu0 %v1776, 113
        %v2699 = vpop.permute.xlu0 %2698
        %2700 = vrot.lane.b32.xlu0 %v1773, 113
        %v2701 = vpop.permute.xlu0 %2700
        %2702 = vrot.lane.b32.xlu0 %v1777, 113
        %v2703 = vpop.permute.xlu0 %2702
        %2704 = vrot.lane.b32.xlu0 %v1774, 113
        %v2705 = vpop.permute.xlu0 %2704
        %2706 = vrot.lane.b32.xlu0 %v1778, 113
        %v2707 = vpop.permute.xlu0 %2706
        %2708 = vrot.lane.b32.xlu0 %v1775, 113
        %v2709 = vpop.permute.xlu0 %2708
        %2710 = vrot.lane.b32.xlu0 %v1779, 113
        %v2711 = vpop.permute.xlu0 %2710
        %v2712 = vsel %vm1274, %v2705, %v2709
        %v2713 = vsel %vm1274, %v2707, %v2711
        %v2714 = vsel %vm1274, %v2701, %v2705
        %v2715 = vsel %vm1274, %v2703, %v2707
        %v2716 = vsel %vm1274, %v2697, %v2701
        %v2717 = vsel %vm1274, %v2699, %v2703
        %v2718 = vsel %vm1274, %v2709, %v2697
        %v2719 = vsel %vm1274, %v2711, %v2699
        %v2720 = vld [vmem:[%s1279] sm:$0xf]
        %v2722 = vlaneseq
        %v2723 = vshrl.u32 %v2722, 7
        %v2724 = vsub.s32 0, %v2723
        %v2725 = vrot.slane %v2720, %v2724
        %v2726 = vlaneseq
        %v2727 = vshrl.u32 %v2726, 7
        %v2728 = vsub.s32 1, %v2727
        %v2729 = vrot.slane %v2720, %v2728
        %v2730 = vlaneseq
        %v2731 = vshrl.u32 %v2730, 7
        %v2732 = vsub.s32 2, %v2731
        %v2733 = vrot.slane %v2720, %v2732
        %v2734 = vlaneseq
        %v2735 = vshrl.u32 %v2734, 7
        %v2736 = vsub.s32 3, %v2735
        %v2737 = vrot.slane %v2720, %v2736
        %v2742 = vmul.f32 %v2716, %v2725
        %v2743 = vmul.f32 %v2714, %v2729
        %v2744 = vmul.f32 %v2712, %v2733
        %v2745 = vmul.f32 %v2718, %v2737
        %v2746 = vmul.f32 %v2717, %v2725
        %v2747 = vmul.f32 %v2715, %v2729
        %v2748 = vmul.f32 %v2713, %v2733
        %v2749 = vmul.f32 %v2719, %v2737
        %v2750 = vpack.c.bf16 %v2746, %v2742
        %v2751 = vpack.c.bf16 %v2747, %v2743
        %v2752 = vpack.c.bf16 %v2748, %v2744
        %v2753 = vpack.c.bf16 %v2749, %v2745
        %v2756 = vunpack.c.l.b16 %v1795
        %v2757 = vunpack.c.l.b16 %v1796
        %v2758 = vpack.c.b16 %v2757, %v2756
        %v2760 = vsel %vm1926, %v2758, 0
        %2762 = vmatprep.subr.bf16.mxu0 %v2751
        %2763 = vmatpush1.bf16.msra.mxu0 %v2750
        %2764 = vmatprep.subr.bf16.mxu0 0
        %2765 = vmatpush1.bf16.msra.mxu0 0
        %2766 = vmatprep.subr.bf16.mxu0 0
        %2767 = vmatpush1.bf16.msra.mxu0 0
        %2768 = vmatprep.subr.bf16.mxu0 0
        %2769 = vmatpush1.bf16.msra.mxu0 0
        %2770 = vmatprep.subr.bf16.mxu0 0
        %2771 = vmatpush1.bf16.msra.mxu0 0
        %2772 = vmatprep.subr.bf16.mxu0 0
        %2773 = vmatpush1.bf16.msra.mxu0 0
        %2774 = vmatprep.subr.bf16.mxu0 0
        %2775 = vmatpush1.bf16.msra.mxu0 0
        %2776 = vmatprep.subr.bf16.mxu0 0
        %2777 = vmatpush1.bf16.msra.mxu0 0
        %2778 = vmatprep.subr.bf16.mxu0 0
        %2779 = vmatpush1.bf16.msra.mxu0 0
        %2780 = vmatprep.subr.bf16.mxu0 0
        %2781 = vmatpush1.bf16.msra.mxu0 0
        %2782 = vmatprep.subr.bf16.mxu0 0
        %2783 = vmatpush1.bf16.msra.mxu0 0
        %2784 = vmatprep.subr.bf16.mxu0 0
        %2785 = vmatpush1.bf16.msra.mxu0 0
        %2786 = vmatprep.subr.bf16.mxu0 0
        %2787 = vmatpush1.bf16.msra.mxu0 0
        %2788 = vmatprep.subr.bf16.mxu0 0
        %2789 = vmatpush1.bf16.msra.mxu0 0
        %2790 = vmatprep.subr.bf16.mxu0 0
        %2791 = vmatpush1.bf16.msra.mxu0 0
        %2792 = vmatprep.subr.bf16.mxu0 0
        %2793 = vmatpush1.bf16.msra.mxu0 0
        %2794 = vmatprep.mubr.bf16.mxu0 0
        %2795 = vmatmul.mubr.bf16.gmra.mrb[0].mxu0 %v2760
        %v2796 = vpop.f32.mrb[0].mxu0
        %v2797 = vadd.f32 0.0, %v2796
        %v2798 = vpop.f32.mrb[0].mxu0
        %v2799 = vadd.f32 0.0, %v2798
        %v2800 = vpop.f32.mrb[0].mxu0
        %v2801 = vadd.f32 0.0, %v2800
        %v2802 = vpop.f32.mrb[0].mxu0
        %v2803 = vadd.f32 0.0, %v2802
        %2804 = vdwg.mxu0
        %2805 = vmatprep.subr.bf16.mxu0 %v2753
        %2806 = vmatpush1.bf16.msra.mxu0 %v2752
        %2807 = vmatprep.subr.bf16.mxu0 0
        %2808 = vmatpush1.bf16.msra.mxu0 0
        %2809 = vmatprep.subr.bf16.mxu0 0
        %2810 = vmatpush1.bf16.msra.mxu0 0
        %2811 = vmatprep.subr.bf16.mxu0 0
        %2812 = vmatpush1.bf16.msra.mxu0 0
        %2813 = vmatprep.subr.bf16.mxu0 0
        %2814 = vmatpush1.bf16.msra.mxu0 0
        %2815 = vmatprep.subr.bf16.mxu0 0
        %2816 = vmatpush1.bf16.msra.mxu0 0
        %2817 = vmatprep.subr.bf16.mxu0 0
        %2818 = vmatpush1.bf16.msra.mxu0 0
        %2819 = vmatprep.subr.bf16.mxu0 0
        %2820 = vmatpush1.bf16.msra.mxu0 0
        %2821 = vmatprep.subr.bf16.mxu0 0
        %2822 = vmatpush1.bf16.msra.mxu0 0
        %2823 = vmatprep.subr.bf16.mxu0 0
        %2824 = vmatpush1.bf16.msra.mxu0 0
        %2825 = vmatprep.subr.bf16.mxu0 0
        %2826 = vmatpush1.bf16.msra.mxu0 0
        %2827 = vmatprep.subr.bf16.mxu0 0
        %2828 = vmatpush1.bf16.msra.mxu0 0
        %2829 = vmatprep.subr.bf16.mxu0 0
        %2830 = vmatpush1.bf16.msra.mxu0 0
        %2831 = vmatprep.subr.bf16.mxu0 0
        %2832 = vmatpush1.bf16.msra.mxu0 0
        %2833 = vmatprep.subr.bf16.mxu0 0
        %2834 = vmatpush1.bf16.msra.mxu0 0
        %2835 = vmatprep.subr.bf16.mxu0 0
        %2836 = vmatpush1.bf16.msra.mxu0 0
        %2837 = vmatprep.mubr.bf16.mxu0 0
        %2838 = vmatmul.mubr.bf16.gmra.mrb[0].mxu0 %v2760
        %v2839 = vpop.f32.mrb[0].mxu0
        %v2840 = vadd.f32 0.0, %v2839
        %v2841 = vpop.f32.mrb[0].mxu0
        %v2842 = vadd.f32 0.0, %v2841
        %v2843 = vpop.f32.mrb[0].mxu0
        %v2844 = vadd.f32 0.0, %v2843
        %v2845 = vpop.f32.mrb[0].mxu0
        %v2846 = vadd.f32 0.0, %v2845
        %2847 = vdwg.mxu0
        %v2848 = vadd.f32 %v2688, %v2797
        %v2849 = vadd.f32 %v2689, %v2799
        %v2850 = vadd.f32 %v2690, %v2840
        %v2851 = vadd.f32 %v2691, %v2842
        %v2852 = vadd.f32 %v2692, %v2801
        %v2853 = vadd.f32 %v2693, %v2803
        %v2854 = vadd.f32 %v2694, %v2844
        %v2855 = vadd.f32 %v2695, %v2846
        %2856 = vrot.lane.b32.xlu0 %v1772, 112
        %v2857 = vpop.permute.xlu0 %2856
        %2858 = vrot.lane.b32.xlu0 %v1776, 112
        %v2859 = vpop.permute.xlu0 %2858
        %2860 = vrot.lane.b32.xlu0 %v1773, 112
        %v2861 = vpop.permute.xlu0 %2860
        %2862 = vrot.lane.b32.xlu0 %v1777, 112
        %v2863 = vpop.permute.xlu0 %2862
        %2864 = vrot.lane.b32.xlu0 %v1774, 112
        %v2865 = vpop.permute.xlu0 %2864
        %2866 = vrot.lane.b32.xlu0 %v1778, 112
        %v2867 = vpop.permute.xlu0 %2866
        %2868 = vrot.lane.b32.xlu0 %v1775, 112
        %v2869 = vpop.permute.xlu0 %2868
        %2870 = vrot.lane.b32.xlu0 %v1779, 112
        %v2871 = vpop.permute.xlu0 %2870
        %v2872 = vsel %vm1432, %v2865, %v2869
        %v2873 = vsel %vm1432, %v2867, %v2871
        %v2874 = vsel %vm1432, %v2861, %v2865
        %v2875 = vsel %vm1432, %v2863, %v2867
        %v2876 = vsel %vm1432, %v2857, %v2861
        %v2877 = vsel %vm1432, %v2859, %v2863
        %v2878 = vsel %vm1432, %v2869, %v2857
        %v2879 = vsel %vm1432, %v2871, %v2859
        %v2880 = vld [vmem:[%s1437] sm:$0xf]
        %v2882 = vlaneseq
        %v2883 = vshrl.u32 %v2882, 7
        %v2884 = vsub.s32 0, %v2883
        %v2885 = vrot.slane %v2880, %v2884
        %v2886 = vlaneseq
        %v2887 = vshrl.u32 %v2886, 7
        %v2888 = vsub.s32 1, %v2887
        %v2889 = vrot.slane %v2880, %v2888
        %v2890 = vlaneseq
        %v2891 = vshrl.u32 %v2890, 7
        %v2892 = vsub.s32 2, %v2891
        %v2893 = vrot.slane %v2880, %v2892
        %v2894 = vlaneseq
        %v2895 = vshrl.u32 %v2894, 7
        %v2896 = vsub.s32 3, %v2895
        %v2897 = vrot.slane %v2880, %v2896
        %v2902 = vmul.f32 %v2876, %v2885
        %v2903 = vmul.f32 %v2874, %v2889
        %v2904 = vmul.f32 %v2872, %v2893
        %v2905 = vmul.f32 %v2878, %v2897
        %v2906 = vmul.f32 %v2877, %v2885
        %v2907 = vmul.f32 %v2875, %v2889
        %v2908 = vmul.f32 %v2873, %v2893
        %v2909 = vmul.f32 %v2879, %v2897
        %v2910 = vpack.c.bf16 %v2906, %v2902
        %v2911 = vpack.c.bf16 %v2907, %v2903
        %v2912 = vpack.c.bf16 %v2908, %v2904
        %v2913 = vpack.c.bf16 %v2909, %v2905
        %v2916 = vunpack.c.l.b16 %v1797
        %v2917 = vunpack.c.l.b16 %v1798
        %v2918 = vpack.c.b16 %v2917, %v2916
        %v2920 = vsel %vm1926, %v2918, 0
        %2922 = vmatprep.subr.bf16.mxu0 %v2911
        %2923 = vmatpush1.bf16.msra.mxu0 %v2910
        %2924 = vmatprep.subr.bf16.mxu0 0
        %2925 = vmatpush1.bf16.msra.mxu0 0
        %2926 = vmatprep.subr.bf16.mxu0 0
        %2927 = vmatpush1.bf16.msra.mxu0 0
        %2928 = vmatprep.subr.bf16.mxu0 0
        %2929 = vmatpush1.bf16.msra.mxu0 0
        %2930 = vmatprep.subr.bf16.mxu0 0
        %2931 = vmatpush1.bf16.msra.mxu0 0
        %2932 = vmatprep.subr.bf16.mxu0 0
        %2933 = vmatpush1.bf16.msra.mxu0 0
        %2934 = vmatprep.subr.bf16.mxu0 0
        %2935 = vmatpush1.bf16.msra.mxu0 0
        %2936 = vmatprep.subr.bf16.mxu0 0
        %2937 = vmatpush1.bf16.msra.mxu0 0
        %2938 = vmatprep.subr.bf16.mxu0 0
        %2939 = vmatpush1.bf16.msra.mxu0 0
        %2940 = vmatprep.subr.bf16.mxu0 0
        %2941 = vmatpush1.bf16.msra.mxu0 0
        %2942 = vmatprep.subr.bf16.mxu0 0
        %2943 = vmatpush1.bf16.msra.mxu0 0
        %2944 = vmatprep.subr.bf16.mxu0 0
        %2945 = vmatpush1.bf16.msra.mxu0 0
        %2946 = vmatprep.subr.bf16.mxu0 0
        %2947 = vmatpush1.bf16.msra.mxu0 0
        %2948 = vmatprep.subr.bf16.mxu0 0
        %2949 = vmatpush1.bf16.msra.mxu0 0
        %2950 = vmatprep.subr.bf16.mxu0 0
        %2951 = vmatpush1.bf16.msra.mxu0 0
        %2952 = vmatprep.subr.bf16.mxu0 0
        %2953 = vmatpush1.bf16.msra.mxu0 0
        %2954 = vmatprep.mubr.bf16.mxu0 0
        %2955 = vmatmul.mubr.bf16.gmra.mrb[0].mxu0 %v2920
        %v2956 = vpop.f32.mrb[0].mxu0
        %v2957 = vadd.f32 0.0, %v2956
        %v2958 = vpop.f32.mrb[0].mxu0
        %v2959 = vadd.f32 0.0, %v2958
        %v2960 = vpop.f32.mrb[0].mxu0
        %v2961 = vadd.f32 0.0, %v2960
        %v2962 = vpop.f32.mrb[0].mxu0
        %v2963 = vadd.f32 0.0, %v2962
        %2964 = vdwg.mxu0
        %2965 = vmatprep.subr.bf16.mxu0 %v2913
        %2966 = vmatpush1.bf16.msra.mxu0 %v2912
        %2967 = vmatprep.subr.bf16.mxu0 0
        %2968 = vmatpush1.bf16.msra.mxu0 0
        %2969 = vmatprep.subr.bf16.mxu0 0
        %2970 = vmatpush1.bf16.msra.mxu0 0
        %2971 = vmatprep.subr.bf16.mxu0 0
        %2972 = vmatpush1.bf16.msra.mxu0 0
        %2973 = vmatprep.subr.bf16.mxu0 0
        %2974 = vmatpush1.bf16.msra.mxu0 0
        %2975 = vmatprep.subr.bf16.mxu0 0
        %2976 = vmatpush1.bf16.msra.mxu0 0
        %2977 = vmatprep.subr.bf16.mxu0 0
        %2978 = vmatpush1.bf16.msra.mxu0 0
        %2979 = vmatprep.subr.bf16.mxu0 0
        %2980 = vmatpush1.bf16.msra.mxu0 0
        %2981 = vmatprep.subr.bf16.mxu0 0
        %2982 = vmatpush1.bf16.msra.mxu0 0
        %2983 = vmatprep.subr.bf16.mxu0 0
        %2984 = vmatpush1.bf16.msra.mxu0 0
        %2985 = vmatprep.subr.bf16.mxu0 0
        %2986 = vmatpush1.bf16.msra.mxu0 0
        %2987 = vmatprep.subr.bf16.mxu0 0
        %2988 = vmatpush1.bf16.msra.mxu0 0
        %2989 = vmatprep.subr.bf16.mxu0 0
        %2990 = vmatpush1.bf16.msra.mxu0 0
        %2991 = vmatprep.subr.bf16.mxu0 0
        %2992 = vmatpush1.bf16.msra.mxu0 0
        %2993 = vmatprep.subr.bf16.mxu0 0
        %2994 = vmatpush1.bf16.msra.mxu0 0
        %2995 = vmatprep.subr.bf16.mxu0 0
        %2996 = vmatpush1.bf16.msra.mxu0 0
        %2997 = vmatprep.mubr.bf16.mxu0 0
        %2998 = vmatmul.mubr.bf16.gmra.mrb[0].mxu0 %v2920
        %v2999 = vpop.f32.mrb[0].mxu0
        %v3000 = vadd.f32 0.0, %v2999
        %v3001 = vpop.f32.mrb[0].mxu0
        %v3002 = vadd.f32 0.0, %v3001
        %v3003 = vpop.f32.mrb[0].mxu0
        %v3004 = vadd.f32 0.0, %v3003
        %v3005 = vpop.f32.mrb[0].mxu0
        %v3006 = vadd.f32 0.0, %v3005
        %3007 = vdwg.mxu0
        %v3008 = vadd.f32 %v2848, %v2957
        %v3009 = vadd.f32 %v2849, %v2959
        %v3010 = vadd.f32 %v2850, %v3000
        %v3011 = vadd.f32 %v2851, %v3002
        %v3012 = vadd.f32 %v2852, %v2961
        %v3013 = vadd.f32 %v2853, %v2963
        %v3014 = vadd.f32 %v2854, %v3004
        %v3015 = vadd.f32 %v2855, %v3006
        %3016 = vrot.lane.b32.xlu0 %v1772, 111
        %v3017 = vpop.permute.xlu0 %3016
        %3018 = vrot.lane.b32.xlu0 %v1776, 111
        %v3019 = vpop.permute.xlu0 %3018
        %3020 = vrot.lane.b32.xlu0 %v1773, 111
        %v3021 = vpop.permute.xlu0 %3020
        %3022 = vrot.lane.b32.xlu0 %v1777, 111
        %v3023 = vpop.permute.xlu0 %3022
        %3024 = vrot.lane.b32.xlu0 %v1774, 111
        %v3025 = vpop.permute.xlu0 %3024
        %3026 = vrot.lane.b32.xlu0 %v1778, 111
        %v3027 = vpop.permute.xlu0 %3026
        %3028 = vrot.lane.b32.xlu0 %v1775, 111
        %v3029 = vpop.permute.xlu0 %3028
        %3030 = vrot.lane.b32.xlu0 %v1779, 111
        %v3031 = vpop.permute.xlu0 %3030
        %v3032 = vsel %vm1590, %v3025, %v3029
        %v3033 = vsel %vm1590, %v3027, %v3031
        %v3034 = vsel %vm1590, %v3021, %v3025
        %v3035 = vsel %vm1590, %v3023, %v3027
        %v3036 = vsel %vm1590, %v3017, %v3021
        %v3037 = vsel %vm1590, %v3019, %v3023
        %v3038 = vsel %vm1590, %v3029, %v3017
        %v3039 = vsel %vm1590, %v3031, %v3019
        %v3040 = vld [vmem:[%s1595] sm:$0xf]
        %v3042 = vlaneseq
        %v3043 = vshrl.u32 %v3042, 7
        %v3044 = vsub.s32 0, %v3043
        %v3045 = vrot.slane %v3040, %v3044
        %v3046 = vlaneseq
        %v3047 = vshrl.u32 %v3046, 7
        %v3048 = vsub.s32 1, %v3047
        %v3049 = vrot.slane %v3040, %v3048
        %v3050 = vlaneseq
        %v3051 = vshrl.u32 %v3050, 7
        %v3052 = vsub.s32 2, %v3051
        %v3053 = vrot.slane %v3040, %v3052
        %v3054 = vlaneseq
        %v3055 = vshrl.u32 %v3054, 7
        %v3056 = vsub.s32 3, %v3055
        %v3057 = vrot.slane %v3040, %v3056
        %v3062 = vmul.f32 %v3036, %v3045
        %v3063 = vmul.f32 %v3034, %v3049
        %v3064 = vmul.f32 %v3032, %v3053
        %v3065 = vmul.f32 %v3038, %v3057
        %v3066 = vmul.f32 %v3037, %v3045
        %v3067 = vmul.f32 %v3035, %v3049
        %v3068 = vmul.f32 %v3033, %v3053
        %v3069 = vmul.f32 %v3039, %v3057
        %v3070 = vpack.c.bf16 %v3066, %v3062
        %v3071 = vpack.c.bf16 %v3067, %v3063
        %v3072 = vpack.c.bf16 %v3068, %v3064
        %v3073 = vpack.c.bf16 %v3069, %v3065
        %v3076 = vunpack.c.l.b16 %v1799
        %v3077 = vunpack.c.l.b16 %v1800
        %v3078 = vpack.c.b16 %v3077, %v3076
        %v3080 = vsel %vm1926, %v3078, 0
        %3082 = vmatprep.subr.bf16.mxu0 %v3071
        %3083 = vmatpush1.bf16.msra.mxu0 %v3070
        %3084 = vmatprep.subr.bf16.mxu0 0
        %3085 = vmatpush1.bf16.msra.mxu0 0
        %3086 = vmatprep.subr.bf16.mxu0 0
        %3087 = vmatpush1.bf16.msra.mxu0 0
        %3088 = vmatprep.subr.bf16.mxu0 0
        %3089 = vmatpush1.bf16.msra.mxu0 0
        %3090 = vmatprep.subr.bf16.mxu0 0
        %3091 = vmatpush1.bf16.msra.mxu0 0
        %3092 = vmatprep.subr.bf16.mxu0 0
        %3093 = vmatpush1.bf16.msra.mxu0 0
        %3094 = vmatprep.subr.bf16.mxu0 0
        %3095 = vmatpush1.bf16.msra.mxu0 0
        %3096 = vmatprep.subr.bf16.mxu0 0
        %3097 = vmatpush1.bf16.msra.mxu0 0
        %3098 = vmatprep.subr.bf16.mxu0 0
        %3099 = vmatpush1.bf16.msra.mxu0 0
        %3100 = vmatprep.subr.bf16.mxu0 0
        %3101 = vmatpush1.bf16.msra.mxu0 0
        %3102 = vmatprep.subr.bf16.mxu0 0
        %3103 = vmatpush1.bf16.msra.mxu0 0
        %3104 = vmatprep.subr.bf16.mxu0 0
        %3105 = vmatpush1.bf16.msra.mxu0 0
        %3106 = vmatprep.subr.bf16.mxu0 0
        %3107 = vmatpush1.bf16.msra.mxu0 0
        %3108 = vmatprep.subr.bf16.mxu0 0
        %3109 = vmatpush1.bf16.msra.mxu0 0
        %3110 = vmatprep.subr.bf16.mxu0 0
        %3111 = vmatpush1.bf16.msra.mxu0 0
        %3112 = vmatprep.subr.bf16.mxu0 0
        %3113 = vmatpush1.bf16.msra.mxu0 0
        %3114 = vmatprep.mubr.bf16.mxu0 0
        %3115 = vmatmul.mubr.bf16.gmra.mrb[0].mxu0 %v3080
        %v3116 = vpop.f32.mrb[0].mxu0
        %v3117 = vadd.f32 0.0, %v3116
        %v3118 = vpop.f32.mrb[0].mxu0
        %v3119 = vadd.f32 0.0, %v3118
        %v3120 = vpop.f32.mrb[0].mxu0
        %v3121 = vadd.f32 0.0, %v3120
        %v3122 = vpop.f32.mrb[0].mxu0
        %v3123 = vadd.f32 0.0, %v3122
        %3124 = vdwg.mxu0
        %3125 = vmatprep.subr.bf16.mxu0 %v3073
        %3126 = vmatpush1.bf16.msra.mxu0 %v3072
        %3127 = vmatprep.subr.bf16.mxu0 0
        %3128 = vmatpush1.bf16.msra.mxu0 0
        %3129 = vmatprep.subr.bf16.mxu0 0
        %3130 = vmatpush1.bf16.msra.mxu0 0
        %3131 = vmatprep.subr.bf16.mxu0 0
        %3132 = vmatpush1.bf16.msra.mxu0 0
        %3133 = vmatprep.subr.bf16.mxu0 0
        %3134 = vmatpush1.bf16.msra.mxu0 0
        %3135 = vmatprep.subr.bf16.mxu0 0
        %3136 = vmatpush1.bf16.msra.mxu0 0
        %3137 = vmatprep.subr.bf16.mxu0 0
        %3138 = vmatpush1.bf16.msra.mxu0 0
        %3139 = vmatprep.subr.bf16.mxu0 0
        %3140 = vmatpush1.bf16.msra.mxu0 0
        %3141 = vmatprep.subr.bf16.mxu0 0
        %3142 = vmatpush1.bf16.msra.mxu0 0
        %3143 = vmatprep.subr.bf16.mxu0 0
        %3144 = vmatpush1.bf16.msra.mxu0 0
        %3145 = vmatprep.subr.bf16.mxu0 0
        %3146 = vmatpush1.bf16.msra.mxu0 0
        %3147 = vmatprep.subr.bf16.mxu0 0
        %3148 = vmatpush1.bf16.msra.mxu0 0
        %3149 = vmatprep.subr.bf16.mxu0 0
        %3150 = vmatpush1.bf16.msra.mxu0 0
        %3151 = vmatprep.subr.bf16.mxu0 0
        %3152 = vmatpush1.bf16.msra.mxu0 0
        %3153 = vmatprep.subr.bf16.mxu0 0
        %3154 = vmatpush1.bf16.msra.mxu0 0
        %3155 = vmatprep.subr.bf16.mxu0 0
        %3156 = vmatpush1.bf16.msra.mxu0 0
        %3157 = vmatprep.mubr.bf16.mxu0 0
        %3158 = vmatmul.mubr.bf16.gmra.mrb[0].mxu0 %v3080
        %v3159 = vpop.f32.mrb[0].mxu0
        %v3160 = vadd.f32 0.0, %v3159
        %v3161 = vpop.f32.mrb[0].mxu0
        %v3162 = vadd.f32 0.0, %v3161
        %v3163 = vpop.f32.mrb[0].mxu0
        %v3164 = vadd.f32 0.0, %v3163
        %v3165 = vpop.f32.mrb[0].mxu0
        %v3166 = vadd.f32 0.0, %v3165
        %3167 = vdwg.mxu0
        %v3168 = vadd.f32 %v3008, %v3117
        %v3169 = vadd.f32 %v3009, %v3119
        %v3170 = vadd.f32 %v3010, %v3160
        %v3171 = vadd.f32 %v3011, %v3162
        %v3172 = vadd.f32 %v3012, %v3121
        %v3173 = vadd.f32 %v3013, %v3123
        %v3174 = vadd.f32 %v3014, %v3164
        %v3175 = vadd.f32 %v3015, %v3166
        %3177 = vset.pattern.permute.xlu0 0
        %3178 = vperm.xlu0 %3177, %v1803
        %v3179 = vpop.permute.xlu0 %3178
        %3182 = vset.pattern.permute.xlu0 0
        %3183 = vperm.xlu0 %3182, %v1804
        %v3184 = vpop.permute.xlu0 %3183
        %v3186 = vadd.f32 %v3168, %v3179
        %v3187 = vadd.f32 %v3169, %v3179
        %v3188 = vadd.f32 %v3170, %v3179
        %v3189 = vadd.f32 %v3171, %v3179
        %v3190 = vadd.f32 %v3172, %v3184
        %v3191 = vadd.f32 %v3173, %v3184
        %v3192 = vadd.f32 %v3174, %v3184
        %v3193 = vadd.f32 %v3175, %v3184
        %v3194 = vmax.f32 %v3186, 0.0
        %v3195 = vmax.f32 %v3187, 0.0
        %v3196 = vmax.f32 %v3188, 0.0
        %v3197 = vmax.f32 %v3189, 0.0
        %v3198 = vmax.f32 %v3190, 0.0
        %v3199 = vmax.f32 %v3191, 0.0
        %v3200 = vmax.f32 %v3192, 0.0
        %v3201 = vmax.f32 %v3193, 0.0
      $region57: #{etds_forward.1} parent=51 // loop_footer
        %s1771 = sadd.s32 1, %s1767
      $region58: #{etds_forward.1} parent=51 // loop_footer_branch
        %1766 = sbr.rel target = $region54
      $region59: #{etds_forward.1} parent=51 // loop_exit
        _
      %v3202 = vld [vmem:[%s6] sm:$0xf]
      %v3203 = vld [vmem:[%s6 + $0x4] sm:$0xf]
      %v3204 = vld [vmem:[%s6 + $0x8] sm:$0xf]
      %v3205 = vld [vmem:[%s6 + $0xc] sm:$0xf]
      %v3206 = vld [vmem:[%s6 + $0x10] sm:$0xf]
      %v3207 = vld [vmem:[%s6 + $0x14] sm:$0xf]
      %v3208 = vld [vmem:[%s6 + $0x18] sm:$0xf]
      %v3209 = vld [vmem:[%s6 + $0x1c] sm:$0xf]
      %v3210 = vld [vmem:[%s6 + $0x20] sm:$0xf]
      %v3211 = vld [vmem:[%s6 + $0x24] sm:$0xf]
      %v3212 = vld [vmem:[%s6 + $0x28] sm:$0xf]
      %v3213 = vld [vmem:[%s6 + $0x2c] sm:$0xf]
      %v3214 = vld [vmem:[%s6 + $0x30] sm:$0xf]
      %v3215 = vld [vmem:[%s6 + $0x34] sm:$0xf]
      %v3216 = vld [vmem:[%s6 + $0x38] sm:$0xf]
      %v3217 = vld [vmem:[%s6 + $0x3c] sm:$0xf]
      %v3218 = vld [vmem:[%s6 + $0x40] sm:$0xf]
      %v3219 = vld [vmem:[%s6 + $0x44] sm:$0xf]
      %v3220 = vld [vmem:[%s6 + $0x48] sm:$0xf]
      %v3221 = vld [vmem:[%s6 + $0x4c] sm:$0xf]
      %v3222 = vld [vmem:[%s6 + $0x50] sm:$0xf]
      %v3223 = vld [vmem:[%s6 + $0x54] sm:$0xf]
      %v3224 = vld [vmem:[%s6 + $0x58] sm:$0xf]
      %v3225 = vld [vmem:[%s6 + $0x5c] sm:$0xf]
      %v3226 = vld [vmem:[%s6 + $0x60] sm:$0xf]
      %v3227 = vld [vmem:[%s6 + $0x64] sm:$0xf]
      %v3228 = vld [vmem:[%s6 + $0x68] sm:$0xf]
      %v3229 = vld [vmem:[%s6 + $0x6c] sm:$0xf]
      %v3230 = vld [vmem:[%s6 + $0x70] sm:$0xf]
      %v3231 = vld [vmem:[%s6 + $0x74] sm:$0xf]
      %v3232 = vld [vmem:[%s6 + $0x78] sm:$0xf]
      %v3233 = vld [vmem:[%s6 + $0x7c] sm:$0xf]
      %v3234 = vld [vmem:[%s6 + $0x80] sm:$0xf]
      %v3235 = vld [vmem:[%s6 + $0x84] sm:$0xf]
      %v3236 = vld [vmem:[%s6 + $0x88] sm:$0xf]
      %v3237 = vld [vmem:[%s6 + $0x8c] sm:$0xf]
      %v3238 = vld [vmem:[%s7] sm:$0xff]
      %v3239 = vld [vmem:[%s7 + $0x8] sm:$0xff]
      %v3240 = vld [vmem:[%s7 + $0x10] sm:$0xff]
      %v3241 = vld [vmem:[%s7 + $0x18] sm:$0xff]
      %3242 = vrot.lane.b32.xlu0 %v1772, 17
      %v3243 = vpop.permute.xlu0 %3242
      %3244 = vrot.lane.b32.xlu0 %v1776, 17
      %v3245 = vpop.permute.xlu0 %3244
      %3246 = vrot.lane.b32.xlu0 %v1773, 17
      %v3247 = vpop.permute.xlu0 %3246
      %3248 = vrot.lane.b32.xlu0 %v1777, 17
      %v3249 = vpop.permute.xlu0 %3248
      %3250 = vrot.lane.b32.xlu0 %v1774, 17
      %v3251 = vpop.permute.xlu0 %3250
      %3252 = vrot.lane.b32.xlu0 %v1778, 17
      %v3253 = vpop.permute.xlu0 %3252
      %3254 = vrot.lane.b32.xlu0 %v1775, 17
      %v3255 = vpop.permute.xlu0 %3254
      %3256 = vrot.lane.b32.xlu0 %v1779, 17
      %v3257 = vpop.permute.xlu0 %3256
      %v3258 = vsel %vm381, %v3251, %v3255
      %v3259 = vsel %vm381, %v3253, %v3257
      %v3260 = vsel %vm381, %v3247, %v3251
      %v3261 = vsel %vm381, %v3249, %v3253
      %v3262 = vsel %vm381, %v3243, %v3247
      %v3263 = vsel %vm381, %v3245, %v3249
      %v3264 = vsel %vm381, %v3255, %v3243
      %v3265 = vsel %vm381, %v3257, %v3245
      %v3266 = vmul.f32 %v3264, %v391
      %v3267 = vmul.f32 %v3262, %v395
      %v3268 = vmul.f32 %v3260, %v399
      %v3269 = vmul.f32 %v3258, %v403
      %v3270 = vmul.f32 %v3265, %v391
      %v3271 = vmul.f32 %v3263, %v395
      %v3272 = vmul.f32 %v3261, %v399
      %v3273 = vmul.f32 %v3259, %v403
      %v3274 = vpack.c.bf16 %v3270, %v3266
      %v3275 = vpack.c.bf16 %v3271, %v3267
      %v3276 = vpack.c.bf16 %v3272, %v3268
      %v3277 = vpack.c.bf16 %v3273, %v3269
      %3278 = vrot.lane.b32.xlu0 %v1772, 16
      %v3279 = vpop.permute.xlu0 %3278
      %3280 = vrot.lane.b32.xlu0 %v1776, 16
      %v3281 = vpop.permute.xlu0 %3280
      %3282 = vrot.lane.b32.xlu0 %v1773, 16
      %v3283 = vpop.permute.xlu0 %3282
      %3284 = vrot.lane.b32.xlu0 %v1777, 16
      %v3285 = vpop.permute.xlu0 %3284
      %3286 = vrot.lane.b32.xlu0 %v1774, 16
      %v3287 = vpop.permute.xlu0 %3286
      %3288 = vrot.lane.b32.xlu0 %v1778, 16
      %v3289 = vpop.permute.xlu0 %3288
      %3290 = vrot.lane.b32.xlu0 %v1775, 16
      %v3291 = vpop.permute.xlu0 %3290
      %3292 = vrot.lane.b32.xlu0 %v1779, 16
      %v3293 = vpop.permute.xlu0 %3292
      %v3294 = vsel %vm424, %v3287, %v3291
      %v3295 = vsel %vm424, %v3289, %v3293
      %v3296 = vsel %vm424, %v3283, %v3287
      %v3297 = vsel %vm424, %v3285, %v3289
      %v3298 = vsel %vm424, %v3279, %v3283
      %v3299 = vsel %vm424, %v3281, %v3285
      %v3300 = vsel %vm424, %v3291, %v3279
      %v3301 = vsel %vm424, %v3293, %v3281
      %v3302 = vmul.f32 %v3300, %v435
      %v3303 = vmul.f32 %v3298, %v439
      %v3304 = vmul.f32 %v3296, %v443
      %v3305 = vmul.f32 %v3294, %v447
      %v3306 = vmul.f32 %v3301, %v435
      %v3307 = vmul.f32 %v3299, %v439
      %v3308 = vmul.f32 %v3297, %v443
      %v3309 = vmul.f32 %v3295, %v447
      %v3310 = vpack.c.bf16 %v3306, %v3302
      %v3311 = vpack.c.bf16 %v3307, %v3303
      %v3312 = vpack.c.bf16 %v3308, %v3304
      %v3313 = vpack.c.bf16 %v3309, %v3305
      %v3318 = vunpack.c.l.b16 %v3206
      %v3319 = vunpack.c.l.b16 %v3207
      %v3320 = vunpack.c.l.b16 %v3208
      %v3321 = vunpack.c.l.b16 %v3209
      %v3322 = vpack.c.b16 %v3319, %v3318
      %v3323 = vpack.c.b16 %v3321, %v3320
      %vm3324 = vcmask 130048
      %v3326 = vsel %vm3324, %v3322, 0
      %v3329 = vsel %vm3324, %v3323, 0
      %3331 = vmatprep.subr.bf16.mxu0 %v3311
      %3332 = vmatpush1.bf16.msra.mxu0 %v3310
      %3333 = vmatprep.subr.bf16.mxu0 0
      %3334 = vmatpush1.bf16.msra.mxu0 0
      %3335 = vmatprep.subr.bf16.mxu0 0
      %3336 = vmatpush1.bf16.msra.mxu0 0
      %3337 = vmatprep.subr.bf16.mxu0 0
      %3338 = vmatpush1.bf16.msra.mxu0 0
      %3339 = vmatprep.subr.bf16.mxu0 0
      %3340 = vmatpush1.bf16.msra.mxu0 0
      %3341 = vmatprep.subr.bf16.mxu0 0
      %3342 = vmatpush1.bf16.msra.mxu0 0
      %3343 = vmatprep.subr.bf16.mxu0 0
      %3344 = vmatpush1.bf16.msra.mxu0 0
      %3345 = vmatprep.subr.bf16.mxu0 0
      %3346 = vmatpush1.bf16.msra.mxu0 0
      %3347 = vmatprep.subr.bf16.mxu0 0
      %3348 = vmatpush1.bf16.msra.mxu0 0
      %3349 = vmatprep.subr.bf16.mxu0 0
      %3350 = vmatpush1.bf16.msra.mxu0 0
      %3351 = vmatprep.subr.bf16.mxu0 0
      %3352 = vmatpush1.bf16.msra.mxu0 0
      %3353 = vmatprep.subr.bf16.mxu0 0
      %3354 = vmatpush1.bf16.msra.mxu0 0
      %3355 = vmatprep.subr.bf16.mxu0 0
      %3356 = vmatpush1.bf16.msra.mxu0 0
      %3357 = vmatprep.subr.bf16.mxu0 0
      %3358 = vmatpush1.bf16.msra.mxu0 0
      %3359 = vmatprep.subr.bf16.mxu0 0
      %3360 = vmatpush1.bf16.msra.mxu0 0
      %3361 = vmatprep.subr.bf16.mxu0 0
      %3362 = vmatpush1.bf16.msra.mxu0 0
      %3363 = vmatprep.mubr.bf16.mxu0 0
      %3364 = vmatmul.mubr.bf16.gmra.mrb[0].mxu0 %v3326
      %v3365 = vpop.f32.mrb[0].mxu0
      %v3366 = vadd.f32 0.0, %v3365
      %v3367 = vpop.f32.mrb[0].mxu0
      %v3368 = vadd.f32 0.0, %v3367
      %v3369 = vpop.f32.mrb[0].mxu0
      %v3370 = vadd.f32 0.0, %v3369
      %v3371 = vpop.f32.mrb[0].mxu0
      %v3372 = vadd.f32 0.0, %v3371
      %3373 = vmatprep.mubr.bf16.mxu0 0
      %3374 = vmatmul.mubr.bf16.gmra.mrb[0].mxu0 %v3329
      %v3375 = vpop.f32.mrb[0].mxu0
      %v3376 = vadd.f32 0.0, %v3375
      %v3377 = vpop.f32.mrb[0].mxu0
      %v3378 = vadd.f32 0.0, %v3377
      %v3379 = vpop.f32.mrb[0].mxu0
      %v3380 = vadd.f32 0.0, %v3379
      %v3381 = vpop.f32.mrb[0].mxu0
      %v3382 = vadd.f32 0.0, %v3381
      %3383 = vdwg.mxu0
      %3384 = vmatprep.subr.bf16.mxu0 %v3313
      %3385 = vmatpush1.bf16.msra.mxu0 %v3312
      %3386 = vmatprep.subr.bf16.mxu0 0
      %3387 = vmatpush1.bf16.msra.mxu0 0
      %3388 = vmatprep.subr.bf16.mxu0 0
      %3389 = vmatpush1.bf16.msra.mxu0 0
      %3390 = vmatprep.subr.bf16.mxu0 0
      %3391 = vmatpush1.bf16.msra.mxu0 0
      %3392 = vmatprep.subr.bf16.mxu0 0
      %3393 = vmatpush1.bf16.msra.mxu0 0
      %3394 = vmatprep.subr.bf16.mxu0 0
      %3395 = vmatpush1.bf16.msra.mxu0 0
      %3396 = vmatprep.subr.bf16.mxu0 0
      %3397 = vmatpush1.bf16.msra.mxu0 0
      %3398 = vmatprep.subr.bf16.mxu0 0
      %3399 = vmatpush1.bf16.msra.mxu0 0
      %3400 = vmatprep.subr.bf16.mxu0 0
      %3401 = vmatpush1.bf16.msra.mxu0 0
      %3402 = vmatprep.subr.bf16.mxu0 0
      %3403 = vmatpush1.bf16.msra.mxu0 0
      %3404 = vmatprep.subr.bf16.mxu0 0
      %3405 = vmatpush1.bf16.msra.mxu0 0
      %3406 = vmatprep.subr.bf16.mxu0 0
      %3407 = vmatpush1.bf16.msra.mxu0 0
      %3408 = vmatprep.subr.bf16.mxu0 0
      %3409 = vmatpush1.bf16.msra.mxu0 0
      %3410 = vmatprep.subr.bf16.mxu0 0
      %3411 = vmatpush1.bf16.msra.mxu0 0
      %3412 = vmatprep.subr.bf16.mxu0 0
      %3413 = vmatpush1.bf16.msra.mxu0 0
      %3414 = vmatprep.subr.bf16.mxu0 0
      %3415 = vmatpush1.bf16.msra.mxu0 0
      %3416 = vmatprep.mubr.bf16.mxu0 0
      %3417 = vmatmul.mubr.bf16.gmra.mrb[0].mxu0 %v3326
      %v3418 = vpop.f32.mrb[0].mxu0
      %v3419 = vadd.f32 0.0, %v3418
      %v3420 = vpop.f32.mrb[0].mxu0
      %v3421 = vadd.f32 0.0, %v3420
      %v3422 = vpop.f32.mrb[0].mxu0
      %v3423 = vadd.f32 0.0, %v3422
      %v3424 = vpop.f32.mrb[0].mxu0
      %v3425 = vadd.f32 0.0, %v3424
      %3426 = vmatprep.mubr.bf16.mxu0 0
      %3427 = vmatmul.mubr.bf16.gmra.mrb[0].mxu0 %v3329
      %v3428 = vpop.f32.mrb[0].mxu0
      %v3429 = vadd.f32 0.0, %v3428
      %v3430 = vpop.f32.mrb[0].mxu0
      %v3431 = vadd.f32 0.0, %v3430
      %v3432 = vpop.f32.mrb[0].mxu0
      %v3433 = vadd.f32 0.0, %v3432
      %v3434 = vpop.f32.mrb[0].mxu0
      %v3435 = vadd.f32 0.0, %v3434
      %3436 = vdwg.mxu0
      %v3441 = vunpack.c.l.b16 %v3202
      %v3442 = vunpack.c.l.b16 %v3203
      %v3443 = vunpack.c.l.b16 %v3204
      %v3444 = vunpack.c.l.b16 %v3205
      %v3445 = vpack.c.b16 %v3442, %v3441
      %v3446 = vpack.c.b16 %v3444, %v3443
      %v3448 = vsel %vm3324, %v3445, 0
      %v3451 = vsel %vm3324, %v3446, 0
      %3453 = vmatprep.subr.bf16.mxu0 %v3275
      %3454 = vmatpush1.bf16.msra.mxu0 %v3274
      %3455 = vmatprep.subr.bf16.mxu0 0
      %3456 = vmatpush1.bf16.msra.mxu0 0
      %3457 = vmatprep.subr.bf16.mxu0 0
      %3458 = vmatpush1.bf16.msra.mxu0 0
      %3459 = vmatprep.subr.bf16.mxu0 0
      %3460 = vmatpush1.bf16.msra.mxu0 0
      %3461 = vmatprep.subr.bf16.mxu0 0
      %3462 = vmatpush1.bf16.msra.mxu0 0
      %3463 = vmatprep.subr.bf16.mxu0 0
      %3464 = vmatpush1.bf16.msra.mxu0 0
      %3465 = vmatprep.subr.bf16.mxu0 0
      %3466 = vmatpush1.bf16.msra.mxu0 0
      %3467 = vmatprep.subr.bf16.mxu0 0
      %3468 = vmatpush1.bf16.msra.mxu0 0
      %3469 = vmatprep.subr.bf16.mxu0 0
      %3470 = vmatpush1.bf16.msra.mxu0 0
      %3471 = vmatprep.subr.bf16.mxu0 0
      %3472 = vmatpush1.bf16.msra.mxu0 0
      %3473 = vmatprep.subr.bf16.mxu0 0
      %3474 = vmatpush1.bf16.msra.mxu0 0
      %3475 = vmatprep.subr.bf16.mxu0 0
      %3476 = vmatpush1.bf16.msra.mxu0 0
      %3477 = vmatprep.subr.bf16.mxu0 0
      %3478 = vmatpush1.bf16.msra.mxu0 0
      %3479 = vmatprep.subr.bf16.mxu0 0
      %3480 = vmatpush1.bf16.msra.mxu0 0
      %3481 = vmatprep.subr.bf16.mxu0 0
      %3482 = vmatpush1.bf16.msra.mxu0 0
      %3483 = vmatprep.subr.bf16.mxu0 0
      %3484 = vmatpush1.bf16.msra.mxu0 0
      %3485 = vmatprep.mubr.bf16.mxu0 0
      %3486 = vmatmul.mubr.bf16.gmra.mrb[0].mxu0 %v3448
      %v3487 = vpop.f32.mrb[0].mxu0
      %v3488 = vadd.f32 %v3366, %v3487
      %v3489 = vpop.f32.mrb[0].mxu0
      %v3490 = vadd.f32 %v3368, %v3489
      %v3491 = vpop.f32.mrb[0].mxu0
      %v3492 = vadd.f32 %v3370, %v3491
      %v3493 = vpop.f32.mrb[0].mxu0
      %v3494 = vadd.f32 %v3372, %v3493
      %3495 = vmatprep.mubr.bf16.mxu0 0
      %3496 = vmatmul.mubr.bf16.gmra.mrb[0].mxu0 %v3451
      %v3497 = vpop.f32.mrb[0].mxu0
      %v3498 = vadd.f32 %v3376, %v3497
      %v3499 = vpop.f32.mrb[0].mxu0
      %v3500 = vadd.f32 %v3378, %v3499
      %v3501 = vpop.f32.mrb[0].mxu0
      %v3502 = vadd.f32 %v3380, %v3501
      %v3503 = vpop.f32.mrb[0].mxu0
      %v3504 = vadd.f32 %v3382, %v3503
      %3505 = vdwg.mxu0
      %3506 = vmatprep.subr.bf16.mxu0 %v3277
      %3507 = vmatpush1.bf16.msra.mxu0 %v3276
      %3508 = vmatprep.subr.bf16.mxu0 0
      %3509 = vmatpush1.bf16.msra.mxu0 0
      %3510 = vmatprep.subr.bf16.mxu0 0
      %3511 = vmatpush1.bf16.msra.mxu0 0
      %3512 = vmatprep.subr.bf16.mxu0 0
      %3513 = vmatpush1.bf16.msra.mxu0 0
      %3514 = vmatprep.subr.bf16.mxu0 0
      %3515 = vmatpush1.bf16.msra.mxu0 0
      %3516 = vmatprep.subr.bf16.mxu0 0
      %3517 = vmatpush1.bf16.msra.mxu0 0
      %3518 = vmatprep.subr.bf16.mxu0 0
      %3519 = vmatpush1.bf16.msra.mxu0 0
      %3520 = vmatprep.subr.bf16.mxu0 0
      %3521 = vmatpush1.bf16.msra.mxu0 0
      %3522 = vmatprep.subr.bf16.mxu0 0
      %3523 = vmatpush1.bf16.msra.mxu0 0
      %3524 = vmatprep.subr.bf16.mxu0 0
      %3525 = vmatpush1.bf16.msra.mxu0 0
      %3526 = vmatprep.subr.bf16.mxu0 0
      %3527 = vmatpush1.bf16.msra.mxu0 0
      %3528 = vmatprep.subr.bf16.mxu0 0
      %3529 = vmatpush1.bf16.msra.mxu0 0
      %3530 = vmatprep.subr.bf16.mxu0 0
      %3531 = vmatpush1.bf16.msra.mxu0 0
      %3532 = vmatprep.subr.bf16.mxu0 0
      %3533 = vmatpush1.bf16.msra.mxu0 0
      %3534 = vmatprep.subr.bf16.mxu0 0
      %3535 = vmatpush1.bf16.msra.mxu0 0
      %3536 = vmatprep.subr.bf16.mxu0 0
      %3537 = vmatpush1.bf16.msra.mxu0 0
      %3538 = vmatprep.mubr.bf16.mxu0 0
      %3539 = vmatmul.mubr.bf16.gmra.mrb[0].mxu0 %v3448
      %v3540 = vpop.f32.mrb[0].mxu0
      %v3541 = vadd.f32 %v3419, %v3540
      %v3542 = vpop.f32.mrb[0].mxu0
      %v3543 = vadd.f32 %v3421, %v3542
      %v3544 = vpop.f32.mrb[0].mxu0
      %v3545 = vadd.f32 %v3423, %v3544
      %v3546 = vpop.f32.mrb[0].mxu0
      %v3547 = vadd.f32 %v3425, %v3546
      %3548 = vmatprep.mubr.bf16.mxu0 0
      %3549 = vmatmul.mubr.bf16.gmra.mrb[0].mxu0 %v3451
      %v3550 = vpop.f32.mrb[0].mxu0
      %v3551 = vadd.f32 %v3429, %v3550
      %v3552 = vpop.f32.mrb[0].mxu0
      %v3553 = vadd.f32 %v3431, %v3552
      %v3554 = vpop.f32.mrb[0].mxu0
      %v3555 = vadd.f32 %v3433, %v3554
      %v3556 = vpop.f32.mrb[0].mxu0
      %v3557 = vadd.f32 %v3435, %v3556
      %3558 = vdwg.mxu0
      %3559 = vrot.lane.b32.xlu0 %v1772, 15
      %v3560 = vpop.permute.xlu0 %3559
      %3561 = vrot.lane.b32.xlu0 %v1776, 15
      %v3562 = vpop.permute.xlu0 %3561
      %3563 = vrot.lane.b32.xlu0 %v1773, 15
      %v3564 = vpop.permute.xlu0 %3563
      %3565 = vrot.lane.b32.xlu0 %v1777, 15
      %v3566 = vpop.permute.xlu0 %3565
      %3567 = vrot.lane.b32.xlu0 %v1774, 15
      %v3568 = vpop.permute.xlu0 %3567
      %3569 = vrot.lane.b32.xlu0 %v1778, 15
      %v3570 = vpop.permute.xlu0 %3569
      %3571 = vrot.lane.b32.xlu0 %v1775, 15
      %v3572 = vpop.permute.xlu0 %3571
      %3573 = vrot.lane.b32.xlu0 %v1779, 15
      %v3574 = vpop.permute.xlu0 %3573
      %v3575 = vsel %vm682, %v3568, %v3572
      %v3576 = vsel %vm682, %v3570, %v3574
      %v3577 = vsel %vm682, %v3564, %v3568
      %v3578 = vsel %vm682, %v3566, %v3570
      %v3579 = vsel %vm682, %v3560, %v3564
      %v3580 = vsel %vm682, %v3562, %v3566
      %v3581 = vsel %vm682, %v3572, %v3560
      %v3582 = vsel %vm682, %v3574, %v3562
      %v3583 = vmul.f32 %v3581, %v693
      %v3584 = vmul.f32 %v3579, %v697
      %v3585 = vmul.f32 %v3577, %v701
      %v3586 = vmul.f32 %v3575, %v705
      %v3587 = vmul.f32 %v3582, %v693
      %v3588 = vmul.f32 %v3580, %v697
      %v3589 = vmul.f32 %v3578, %v701
      %v3590 = vmul.f32 %v3576, %v705
      %v3591 = vpack.c.bf16 %v3587, %v3583
      %v3592 = vpack.c.bf16 %v3588, %v3584
      %v3593 = vpack.c.bf16 %v3589, %v3585
      %v3594 = vpack.c.bf16 %v3590, %v3586
      %v3599 = vunpack.c.l.b16 %v3210
      %v3600 = vunpack.c.l.b16 %v3211
      %v3601 = vunpack.c.l.b16 %v3212
      %v3602 = vunpack.c.l.b16 %v3213
      %v3603 = vpack.c.b16 %v3600, %v3599
      %v3604 = vpack.c.b16 %v3602, %v3601
      %v3606 = vsel %vm3324, %v3603, 0
      %v3609 = vsel %vm3324, %v3604, 0
      %3611 = vmatprep.subr.bf16.mxu0 %v3592
      %3612 = vmatpush1.bf16.msra.mxu0 %v3591
      %3613 = vmatprep.subr.bf16.mxu0 0
      %3614 = vmatpush1.bf16.msra.mxu0 0
      %3615 = vmatprep.subr.bf16.mxu0 0
      %3616 = vmatpush1.bf16.msra.mxu0 0
      %3617 = vmatprep.subr.bf16.mxu0 0
      %3618 = vmatpush1.bf16.msra.mxu0 0
      %3619 = vmatprep.subr.bf16.mxu0 0
      %3620 = vmatpush1.bf16.msra.mxu0 0
      %3621 = vmatprep.subr.bf16.mxu0 0
      %3622 = vmatpush1.bf16.msra.mxu0 0
      %3623 = vmatprep.subr.bf16.mxu0 0
      %3624 = vmatpush1.bf16.msra.mxu0 0
      %3625 = vmatprep.subr.bf16.mxu0 0
      %3626 = vmatpush1.bf16.msra.mxu0 0
      %3627 = vmatprep.subr.bf16.mxu0 0
      %3628 = vmatpush1.bf16.msra.mxu0 0
      %3629 = vmatprep.subr.bf16.mxu0 0
      %3630 = vmatpush1.bf16.msra.mxu0 0
      %3631 = vmatprep.subr.bf16.mxu0 0
      %3632 = vmatpush1.bf16.msra.mxu0 0
      %3633 = vmatprep.subr.bf16.mxu0 0
      %3634 = vmatpush1.bf16.msra.mxu0 0
      %3635 = vmatprep.subr.bf16.mxu0 0
      %3636 = vmatpush1.bf16.msra.mxu0 0
      %3637 = vmatprep.subr.bf16.mxu0 0
      %3638 = vmatpush1.bf16.msra.mxu0 0
      %3639 = vmatprep.subr.bf16.mxu0 0
      %3640 = vmatpush1.bf16.msra.mxu0 0
      %3641 = vmatprep.subr.bf16.mxu0 0
      %3642 = vmatpush1.bf16.msra.mxu0 0
      %3643 = vmatprep.mubr.bf16.mxu0 0
      %3644 = vmatmul.mubr.bf16.gmra.mrb[0].mxu0 %v3606
      %v3645 = vpop.f32.mrb[0].mxu0
      %v3646 = vadd.f32 0.0, %v3645
      %v3647 = vpop.f32.mrb[0].mxu0
      %v3648 = vadd.f32 0.0, %v3647
      %v3649 = vpop.f32.mrb[0].mxu0
      %v3650 = vadd.f32 0.0, %v3649
      %v3651 = vpop.f32.mrb[0].mxu0
      %v3652 = vadd.f32 0.0, %v3651
      %3653 = vmatprep.mubr.bf16.mxu0 0
      %3654 = vmatmul.mubr.bf16.gmra.mrb[0].mxu0 %v3609
      %v3655 = vpop.f32.mrb[0].mxu0
      %v3656 = vadd.f32 0.0, %v3655
      %v3657 = vpop.f32.mrb[0].mxu0
      %v3658 = vadd.f32 0.0, %v3657
      %v3659 = vpop.f32.mrb[0].mxu0
      %v3660 = vadd.f32 0.0, %v3659
      %v3661 = vpop.f32.mrb[0].mxu0
      %v3662 = vadd.f32 0.0, %v3661
      %3663 = vdwg.mxu0
      %3664 = vmatprep.subr.bf16.mxu0 %v3594
      %3665 = vmatpush1.bf16.msra.mxu0 %v3593
      %3666 = vmatprep.subr.bf16.mxu0 0
      %3667 = vmatpush1.bf16.msra.mxu0 0
      %3668 = vmatprep.subr.bf16.mxu0 0
      %3669 = vmatpush1.bf16.msra.mxu0 0
      %3670 = vmatprep.subr.bf16.mxu0 0
      %3671 = vmatpush1.bf16.msra.mxu0 0
      %3672 = vmatprep.subr.bf16.mxu0 0
      %3673 = vmatpush1.bf16.msra.mxu0 0
      %3674 = vmatprep.subr.bf16.mxu0 0
      %3675 = vmatpush1.bf16.msra.mxu0 0
      %3676 = vmatprep.subr.bf16.mxu0 0
      %3677 = vmatpush1.bf16.msra.mxu0 0
      %3678 = vmatprep.subr.bf16.mxu0 0
      %3679 = vmatpush1.bf16.msra.mxu0 0
      %3680 = vmatprep.subr.bf16.mxu0 0
      %3681 = vmatpush1.bf16.msra.mxu0 0
      %3682 = vmatprep.subr.bf16.mxu0 0
      %3683 = vmatpush1.bf16.msra.mxu0 0
      %3684 = vmatprep.subr.bf16.mxu0 0
      %3685 = vmatpush1.bf16.msra.mxu0 0
      %3686 = vmatprep.subr.bf16.mxu0 0
      %3687 = vmatpush1.bf16.msra.mxu0 0
      %3688 = vmatprep.subr.bf16.mxu0 0
      %3689 = vmatpush1.bf16.msra.mxu0 0
      %3690 = vmatprep.subr.bf16.mxu0 0
      %3691 = vmatpush1.bf16.msra.mxu0 0
      %3692 = vmatprep.subr.bf16.mxu0 0
      %3693 = vmatpush1.bf16.msra.mxu0 0
      %3694 = vmatprep.subr.bf16.mxu0 0
      %3695 = vmatpush1.bf16.msra.mxu0 0
      %3696 = vmatprep.mubr.bf16.mxu0 0
      %3697 = vmatmul.mubr.bf16.gmra.mrb[0].mxu0 %v3606
      %v3698 = vpop.f32.mrb[0].mxu0
      %v3699 = vadd.f32 0.0, %v3698
      %v3700 = vpop.f32.mrb[0].mxu0
      %v3701 = vadd.f32 0.0, %v3700
      %v3702 = vpop.f32.mrb[0].mxu0
      %v3703 = vadd.f32 0.0, %v3702
      %v3704 = vpop.f32.mrb[0].mxu0
      %v3705 = vadd.f32 0.0, %v3704
      %3706 = vmatprep.mubr.bf16.mxu0 0
      %3707 = vmatmul.mubr.bf16.gmra.mrb[0].mxu0 %v3609
      %v3708 = vpop.f32.mrb[0].mxu0
      %v3709 = vadd.f32 0.0, %v3708
      %v3710 = vpop.f32.mrb[0].mxu0
      %v3711 = vadd.f32 0.0, %v3710
      %v3712 = vpop.f32.mrb[0].mxu0
      %v3713 = vadd.f32 0.0, %v3712
      %v3714 = vpop.f32.mrb[0].mxu0
      %v3715 = vadd.f32 0.0, %v3714
      %3716 = vdwg.mxu0
      %v3717 = vadd.f32 %v3488, %v3646
      %v3718 = vadd.f32 %v3490, %v3648
      %v3719 = vadd.f32 %v3541, %v3699
      %v3720 = vadd.f32 %v3543, %v3701
      %v3721 = vadd.f32 %v3492, %v3650
      %v3722 = vadd.f32 %v3494, %v3652
      %v3723 = vadd.f32 %v3545, %v3703
      %v3724 = vadd.f32 %v3547, %v3705
      %v3725 = vadd.f32 %v3498, %v3656
      %v3726 = vadd.f32 %v3500, %v3658
      %v3727 = vadd.f32 %v3551, %v3709
      %v3728 = vadd.f32 %v3553, %v3711
      %v3729 = vadd.f32 %v3502, %v3660
      %v3730 = vadd.f32 %v3504, %v3662
      %v3731 = vadd.f32 %v3555, %v3713
      %v3732 = vadd.f32 %v3557, %v3715
      %3733 = vrot.lane.b32.xlu0 %v1772, 1
      %v3734 = vpop.permute.xlu0 %3733
      %3735 = vrot.lane.b32.xlu0 %v1776, 1
      %v3736 = vpop.permute.xlu0 %3735
      %3737 = vrot.lane.b32.xlu0 %v1773, 1
      %v3738 = vpop.permute.xlu0 %3737
      %3739 = vrot.lane.b32.xlu0 %v1777, 1
      %v3740 = vpop.permute.xlu0 %3739
      %3741 = vrot.lane.b32.xlu0 %v1774, 1
      %v3742 = vpop.permute.xlu0 %3741
      %3743 = vrot.lane.b32.xlu0 %v1778, 1
      %v3744 = vpop.permute.xlu0 %3743
      %3745 = vrot.lane.b32.xlu0 %v1775, 1
      %v3746 = vpop.permute.xlu0 %3745
      %3747 = vrot.lane.b32.xlu0 %v1779, 1
      %v3748 = vpop.permute.xlu0 %3747
      %v3749 = vsel %vm840, %v3742, %v3746
      %v3750 = vsel %vm840, %v3744, %v3748
      %v3751 = vsel %vm840, %v3738, %v3742
      %v3752 = vsel %vm840, %v3740, %v3744
      %v3753 = vsel %vm840, %v3734, %v3738
      %v3754 = vsel %vm840, %v3736, %v3740
      %v3755 = vsel %vm840, %v3746, %v3734
      %v3756 = vsel %vm840, %v3748, %v3736
      %v3757 = vmul.f32 %v3755, %v851
      %v3758 = vmul.f32 %v3753, %v855
      %v3759 = vmul.f32 %v3751, %v859
      %v3760 = vmul.f32 %v3749, %v863
      %v3761 = vmul.f32 %v3756, %v851
      %v3762 = vmul.f32 %v3754, %v855
      %v3763 = vmul.f32 %v3752, %v859
      %v3764 = vmul.f32 %v3750, %v863
      %v3765 = vpack.c.bf16 %v3761, %v3757
      %v3766 = vpack.c.bf16 %v3762, %v3758
      %v3767 = vpack.c.bf16 %v3763, %v3759
      %v3768 = vpack.c.bf16 %v3764, %v3760
      %v3773 = vunpack.c.l.b16 %v3214
      %v3774 = vunpack.c.l.b16 %v3215
      %v3775 = vunpack.c.l.b16 %v3216
      %v3776 = vunpack.c.l.b16 %v3217
      %v3777 = vpack.c.b16 %v3774, %v3773
      %v3778 = vpack.c.b16 %v3776, %v3775
      %v3780 = vsel %vm3324, %v3777, 0
      %v3783 = vsel %vm3324, %v3778, 0
      %3785 = vmatprep.subr.bf16.mxu0 %v3766
      %3786 = vmatpush1.bf16.msra.mxu0 %v3765
      %3787 = vmatprep.subr.bf16.mxu0 0
      %3788 = vmatpush1.bf16.msra.mxu0 0
      %3789 = vmatprep.subr.bf16.mxu0 0
      %3790 = vmatpush1.bf16.msra.mxu0 0
      %3791 = vmatprep.subr.bf16.mxu0 0
      %3792 = vmatpush1.bf16.msra.mxu0 0
      %3793 = vmatprep.subr.bf16.mxu0 0
      %3794 = vmatpush1.bf16.msra.mxu0 0
      %3795 = vmatprep.subr.bf16.mxu0 0
      %3796 = vmatpush1.bf16.msra.mxu0 0
      %3797 = vmatprep.subr.bf16.mxu0 0
      %3798 = vmatpush1.bf16.msra.mxu0 0
      %3799 = vmatprep.subr.bf16.mxu0 0
      %3800 = vmatpush1.bf16.msra.mxu0 0
      %3801 = vmatprep.subr.bf16.mxu0 0
      %3802 = vmatpush1.bf16.msra.mxu0 0
      %3803 = vmatprep.subr.bf16.mxu0 0
      %3804 = vmatpush1.bf16.msra.mxu0 0
      %3805 = vmatprep.subr.bf16.mxu0 0
      %3806 = vmatpush1.bf16.msra.mxu0 0
      %3807 = vmatprep.subr.bf16.mxu0 0
      %3808 = vmatpush1.bf16.msra.mxu0 0
      %3809 = vmatprep.subr.bf16.mxu0 0
      %3810 = vmatpush1.bf16.msra.mxu0 0
      %3811 = vmatprep.subr.bf16.mxu0 0
      %3812 = vmatpush1.bf16.msra.mxu0 0
      %3813 = vmatprep.subr.bf16.mxu0 0
      %3814 = vmatpush1.bf16.msra.mxu0 0
      %3815 = vmatprep.subr.bf16.mxu0 0
      %3816 = vmatpush1.bf16.msra.mxu0 0
      %3817 = vmatprep.mubr.bf16.mxu0 0
      %3818 = vmatmul.mubr.bf16.gmra.mrb[0].mxu0 %v3780
      %v3819 = vpop.f32.mrb[0].mxu0
      %v3820 = vadd.f32 0.0, %v3819
      %v3821 = vpop.f32.mrb[0].mxu0
      %v3822 = vadd.f32 0.0, %v3821
      %v3823 = vpop.f32.mrb[0].mxu0
      %v3824 = vadd.f32 0.0, %v3823
      %v3825 = vpop.f32.mrb[0].mxu0
      %v3826 = vadd.f32 0.0, %v3825
      %3827 = vmatprep.mubr.bf16.mxu0 0
      %3828 = vmatmul.mubr.bf16.gmra.mrb[0].mxu0 %v3783
      %v3829 = vpop.f32.mrb[0].mxu0
      %v3830 = vadd.f32 0.0, %v3829
      %v3831 = vpop.f32.mrb[0].mxu0
      %v3832 = vadd.f32 0.0, %v3831
      %v3833 = vpop.f32.mrb[0].mxu0
      %v3834 = vadd.f32 0.0, %v3833
      %v3835 = vpop.f32.mrb[0].mxu0
      %v3836 = vadd.f32 0.0, %v3835
      %3837 = vdwg.mxu0
      %3838 = vmatprep.subr.bf16.mxu0 %v3768
      %3839 = vmatpush1.bf16.msra.mxu0 %v3767
      %3840 = vmatprep.subr.bf16.mxu0 0
      %3841 = vmatpush1.bf16.msra.mxu0 0
      %3842 = vmatprep.subr.bf16.mxu0 0
      %3843 = vmatpush1.bf16.msra.mxu0 0
      %3844 = vmatprep.subr.bf16.mxu0 0
      %3845 = vmatpush1.bf16.msra.mxu0 0
      %3846 = vmatprep.subr.bf16.mxu0 0
      %3847 = vmatpush1.bf16.msra.mxu0 0
      %3848 = vmatprep.subr.bf16.mxu0 0
      %3849 = vmatpush1.bf16.msra.mxu0 0
      %3850 = vmatprep.subr.bf16.mxu0 0
      %3851 = vmatpush1.bf16.msra.mxu0 0
      %3852 = vmatprep.subr.bf16.mxu0 0
      %3853 = vmatpush1.bf16.msra.mxu0 0
      %3854 = vmatprep.subr.bf16.mxu0 0
      %3855 = vmatpush1.bf16.msra.mxu0 0
      %3856 = vmatprep.subr.bf16.mxu0 0
      %3857 = vmatpush1.bf16.msra.mxu0 0
      %3858 = vmatprep.subr.bf16.mxu0 0
      %3859 = vmatpush1.bf16.msra.mxu0 0
      %3860 = vmatprep.subr.bf16.mxu0 0
      %3861 = vmatpush1.bf16.msra.mxu0 0
      %3862 = vmatprep.subr.bf16.mxu0 0
      %3863 = vmatpush1.bf16.msra.mxu0 0
      %3864 = vmatprep.subr.bf16.mxu0 0
      %3865 = vmatpush1.bf16.msra.mxu0 0
      %3866 = vmatprep.subr.bf16.mxu0 0
      %3867 = vmatpush1.bf16.msra.mxu0 0
      %3868 = vmatprep.subr.bf16.mxu0 0
      %3869 = vmatpush1.bf16.msra.mxu0 0
      %3870 = vmatprep.mubr.bf16.mxu0 0
      %3871 = vmatmul.mubr.bf16.gmra.mrb[0].mxu0 %v3780
      %v3872 = vpop.f32.mrb[0].mxu0
      %v3873 = vadd.f32 0.0, %v3872
      %v3874 = vpop.f32.mrb[0].mxu0
      %v3875 = vadd.f32 0.0, %v3874
      %v3876 = vpop.f32.mrb[0].mxu0
      %v3877 = vadd.f32 0.0, %v3876
      %v3878 = vpop.f32.mrb[0].mxu0
      %v3879 = vadd.f32 0.0, %v3878
      %3880 = vmatprep.mubr.bf16.mxu0 0
      %3881 = vmatmul.mubr.bf16.gmra.mrb[0].mxu0 %v3783
      %v3882 = vpop.f32.mrb[0].mxu0
      %v3883 = vadd.f32 0.0, %v3882
      %v3884 = vpop.f32.mrb[0].mxu0
      %v3885 = vadd.f32 0.0, %v3884
      %v3886 = vpop.f32.mrb[0].mxu0
      %v3887 = vadd.f32 0.0, %v3886
      %v3888 = vpop.f32.mrb[0].mxu0
      %v3889 = vadd.f32 0.0, %v3888
      %3890 = vdwg.mxu0
      %v3891 = vadd.f32 %v3717, %v3820
      %v3892 = vadd.f32 %v3718, %v3822
      %v3893 = vadd.f32 %v3719, %v3873
      %v3894 = vadd.f32 %v3720, %v3875
      %v3895 = vadd.f32 %v3721, %v3824
      %v3896 = vadd.f32 %v3722, %v3826
      %v3897 = vadd.f32 %v3723, %v3877
      %v3898 = vadd.f32 %v3724, %v3879
      %v3899 = vadd.f32 %v3725, %v3830
      %v3900 = vadd.f32 %v3726, %v3832
      %v3901 = vadd.f32 %v3727, %v3883
      %v3902 = vadd.f32 %v3728, %v3885
      %v3903 = vadd.f32 %v3729, %v3834
      %v3904 = vadd.f32 %v3730, %v3836
      %v3905 = vadd.f32 %v3731, %v3887
      %v3906 = vadd.f32 %v3732, %v3889
      %v3907 = vpack.c.bf16 %v1776, %v1772
      %v3908 = vpack.c.bf16 %v1777, %v1773
      %v3909 = vpack.c.bf16 %v1778, %v1774
      %v3910 = vpack.c.bf16 %v1779, %v1775
      %v3915 = vunpack.c.l.b16 %v3218
      %v3916 = vunpack.c.l.b16 %v3219
      %v3917 = vunpack.c.l.b16 %v3220
      %v3918 = vunpack.c.l.b16 %v3221
      %v3919 = vpack.c.b16 %v3916, %v3915
      %v3920 = vpack.c.b16 %v3918, %v3917
      %v3922 = vsel %vm3324, %v3919, 0
      %v3925 = vsel %vm3324, %v3920, 0
      %3927 = vmatprep.subr.bf16.mxu0 %v3908
      %3928 = vmatpush1.bf16.msra.mxu0 %v3907
      %3929 = vmatprep.subr.bf16.mxu0 0
      %3930 = vmatpush1.bf16.msra.mxu0 0
      %3931 = vmatprep.subr.bf16.mxu0 0
      %3932 = vmatpush1.bf16.msra.mxu0 0
      %3933 = vmatprep.subr.bf16.mxu0 0
      %3934 = vmatpush1.bf16.msra.mxu0 0
      %3935 = vmatprep.subr.bf16.mxu0 0
      %3936 = vmatpush1.bf16.msra.mxu0 0
      %3937 = vmatprep.subr.bf16.mxu0 0
      %3938 = vmatpush1.bf16.msra.mxu0 0
      %3939 = vmatprep.subr.bf16.mxu0 0
      %3940 = vmatpush1.bf16.msra.mxu0 0
      %3941 = vmatprep.subr.bf16.mxu0 0
      %3942 = vmatpush1.bf16.msra.mxu0 0
      %3943 = vmatprep.subr.bf16.mxu0 0
      %3944 = vmatpush1.bf16.msra.mxu0 0
      %3945 = vmatprep.subr.bf16.mxu0 0
      %3946 = vmatpush1.bf16.msra.mxu0 0
      %3947 = vmatprep.subr.bf16.mxu0 0
      %3948 = vmatpush1.bf16.msra.mxu0 0
      %3949 = vmatprep.subr.bf16.mxu0 0
      %3950 = vmatpush1.bf16.msra.mxu0 0
      %3951 = vmatprep.subr.bf16.mxu0 0
      %3952 = vmatpush1.bf16.msra.mxu0 0
      %3953 = vmatprep.subr.bf16.mxu0 0
      %3954 = vmatpush1.bf16.msra.mxu0 0
      %3955 = vmatprep.subr.bf16.mxu0 0
      %3956 = vmatpush1.bf16.msra.mxu0 0
      %3957 = vmatprep.subr.bf16.mxu0 0
      %3958 = vmatpush1.bf16.msra.mxu0 0
      %3959 = vmatprep.mubr.bf16.mxu0 0
      %3960 = vmatmul.mubr.bf16.gmra.mrb[0].mxu0 %v3922
      %v3961 = vpop.f32.mrb[0].mxu0
      %v3962 = vadd.f32 0.0, %v3961
      %v3963 = vpop.f32.mrb[0].mxu0
      %v3964 = vadd.f32 0.0, %v3963
      %v3965 = vpop.f32.mrb[0].mxu0
      %v3966 = vadd.f32 0.0, %v3965
      %v3967 = vpop.f32.mrb[0].mxu0
      %v3968 = vadd.f32 0.0, %v3967
      %3969 = vmatprep.mubr.bf16.mxu0 0
      %3970 = vmatmul.mubr.bf16.gmra.mrb[0].mxu0 %v3925
      %v3971 = vpop.f32.mrb[0].mxu0
      %v3972 = vadd.f32 0.0, %v3971
      %v3973 = vpop.f32.mrb[0].mxu0
      %v3974 = vadd.f32 0.0, %v3973
      %v3975 = vpop.f32.mrb[0].mxu0
      %v3976 = vadd.f32 0.0, %v3975
      %v3977 = vpop.f32.mrb[0].mxu0
      %v3978 = vadd.f32 0.0, %v3977
      %3979 = vdwg.mxu0
      %3980 = vmatprep.subr.bf16.mxu0 %v3910
      %3981 = vmatpush1.bf16.msra.mxu0 %v3909
      %3982 = vmatprep.subr.bf16.mxu0 0
      %3983 = vmatpush1.bf16.msra.mxu0 0
      %3984 = vmatprep.subr.bf16.mxu0 0
      %3985 = vmatpush1.bf16.msra.mxu0 0
      %3986 = vmatprep.subr.bf16.mxu0 0
      %3987 = vmatpush1.bf16.msra.mxu0 0
      %3988 = vmatprep.subr.bf16.mxu0 0
      %3989 = vmatpush1.bf16.msra.mxu0 0
      %3990 = vmatprep.subr.bf16.mxu0 0
      %3991 = vmatpush1.bf16.msra.mxu0 0
      %3992 = vmatprep.subr.bf16.mxu0 0
      %3993 = vmatpush1.bf16.msra.mxu0 0
      %3994 = vmatprep.subr.bf16.mxu0 0
      %3995 = vmatpush1.bf16.msra.mxu0 0
      %3996 = vmatprep.subr.bf16.mxu0 0
      %3997 = vmatpush1.bf16.msra.mxu0 0
      %3998 = vmatprep.subr.bf16.mxu0 0
      %3999 = vmatpush1.bf16.msra.mxu0 0
      %4000 = vmatprep.subr.bf16.mxu0 0
      %4001 = vmatpush1.bf16.msra.mxu0 0
      %4002 = vmatprep.subr.bf16.mxu0 0
      %4003 = vmatpush1.bf16.msra.mxu0 0
      %4004 = vmatprep.subr.bf16.mxu0 0
      %4005 = vmatpush1.bf16.msra.mxu0 0
      %4006 = vmatprep.subr.bf16.mxu0 0
      %4007 = vmatpush1.bf16.msra.mxu0 0
      %4008 = vmatprep.subr.bf16.mxu0 0
      %4009 = vmatpush1.bf16.msra.mxu0 0
      %4010 = vmatprep.subr.bf16.mxu0 0
      %4011 = vmatpush1.bf16.msra.mxu0 0
      %4012 = vmatprep.mubr.bf16.mxu0 0
      %4013 = vmatmul.mubr.bf16.gmra.mrb[0].mxu0 %v3922
      %v4014 = vpop.f32.mrb[0].mxu0
      %v4015 = vadd.f32 0.0, %v4014
      %v4016 = vpop.f32.mrb[0].mxu0
      %v4017 = vadd.f32 0.0, %v4016
      %v4018 = vpop.f32.mrb[0].mxu0
      %v4019 = vadd.f32 0.0, %v4018
      %v4020 = vpop.f32.mrb[0].mxu0
      %v4021 = vadd.f32 0.0, %v4020
      %4022 = vmatprep.mubr.bf16.mxu0 0
      %4023 = vmatmul.mubr.bf16.gmra.mrb[0].mxu0 %v3925
      %v4024 = vpop.f32.mrb[0].mxu0
      %v4025 = vadd.f32 0.0, %v4024
      %v4026 = vpop.f32.mrb[0].mxu0
      %v4027 = vadd.f32 0.0, %v4026
      %v4028 = vpop.f32.mrb[0].mxu0
      %v4029 = vadd.f32 0.0, %v4028
      %v4030 = vpop.f32.mrb[0].mxu0
      %v4031 = vadd.f32 0.0, %v4030
      %4032 = vdwg.mxu0
      %v4033 = vadd.f32 %v3891, %v3962
      %v4034 = vadd.f32 %v3892, %v3964
      %v4035 = vadd.f32 %v3893, %v4015
      %v4036 = vadd.f32 %v3894, %v4017
      %v4037 = vadd.f32 %v3895, %v3966
      %v4038 = vadd.f32 %v3896, %v3968
      %v4039 = vadd.f32 %v3897, %v4019
      %v4040 = vadd.f32 %v3898, %v4021
      %v4041 = vadd.f32 %v3899, %v3972
      %v4042 = vadd.f32 %v3900, %v3974
      %v4043 = vadd.f32 %v3901, %v4025
      %v4044 = vadd.f32 %v3902, %v4027
      %v4045 = vadd.f32 %v3903, %v3976
      %v4046 = vadd.f32 %v3904, %v3978
      %v4047 = vadd.f32 %v3905, %v4029
      %v4048 = vadd.f32 %v3906, %v4031
      %4049 = vrot.lane.b32.xlu0 %v1772, 127
      %v4050 = vpop.permute.xlu0 %4049
      %4051 = vrot.lane.b32.xlu0 %v1776, 127
      %v4052 = vpop.permute.xlu0 %4051
      %4053 = vrot.lane.b32.xlu0 %v1773, 127
      %v4054 = vpop.permute.xlu0 %4053
      %4055 = vrot.lane.b32.xlu0 %v1777, 127
      %v4056 = vpop.permute.xlu0 %4055
      %4057 = vrot.lane.b32.xlu0 %v1774, 127
      %v4058 = vpop.permute.xlu0 %4057
      %4059 = vrot.lane.b32.xlu0 %v1778, 127
      %v4060 = vpop.permute.xlu0 %4059
      %4061 = vrot.lane.b32.xlu0 %v1775, 127
      %v4062 = vpop.permute.xlu0 %4061
      %4063 = vrot.lane.b32.xlu0 %v1779, 127
      %v4064 = vpop.permute.xlu0 %4063
      %v4065 = vsel %vm1116, %v4058, %v4062
      %v4066 = vsel %vm1116, %v4060, %v4064
      %v4067 = vsel %vm1116, %v4054, %v4058
      %v4068 = vsel %vm1116, %v4056, %v4060
      %v4069 = vsel %vm1116, %v4050, %v4054
      %v4070 = vsel %vm1116, %v4052, %v4056
      %v4071 = vsel %vm1116, %v4062, %v4050
      %v4072 = vsel %vm1116, %v4064, %v4052
      %v4073 = vmul.f32 %v4069, %v1127
      %v4074 = vmul.f32 %v4067, %v1131
      %v4075 = vmul.f32 %v4065, %v1135
      %v4076 = vmul.f32 %v4071, %v1139
      %v4077 = vmul.f32 %v4070, %v1127
      %v4078 = vmul.f32 %v4068, %v1131
      %v4079 = vmul.f32 %v4066, %v1135
      %v4080 = vmul.f32 %v4072, %v1139
      %v4081 = vpack.c.bf16 %v4077, %v4073
      %v4082 = vpack.c.bf16 %v4078, %v4074
      %v4083 = vpack.c.bf16 %v4079, %v4075
      %v4084 = vpack.c.bf16 %v4080, %v4076
      %v4089 = vunpack.c.l.b16 %v3222
      %v4090 = vunpack.c.l.b16 %v3223
      %v4091 = vunpack.c.l.b16 %v3224
      %v4092 = vunpack.c.l.b16 %v3225
      %v4093 = vpack.c.b16 %v4090, %v4089
      %v4094 = vpack.c.b16 %v4092, %v4091
      %v4096 = vsel %vm3324, %v4093, 0
      %v4099 = vsel %vm3324, %v4094, 0
      %4101 = vmatprep.subr.bf16.mxu0 %v4082
      %4102 = vmatpush1.bf16.msra.mxu0 %v4081
      %4103 = vmatprep.subr.bf16.mxu0 0
      %4104 = vmatpush1.bf16.msra.mxu0 0
      %4105 = vmatprep.subr.bf16.mxu0 0
      %4106 = vmatpush1.bf16.msra.mxu0 0
      %4107 = vmatprep.subr.bf16.mxu0 0
      %4108 = vmatpush1.bf16.msra.mxu0 0
      %4109 = vmatprep.subr.bf16.mxu0 0
      %4110 = vmatpush1.bf16.msra.mxu0 0
      %4111 = vmatprep.subr.bf16.mxu0 0
      %4112 = vmatpush1.bf16.msra.mxu0 0
      %4113 = vmatprep.subr.bf16.mxu0 0
      %4114 = vmatpush1.bf16.msra.mxu0 0
      %4115 = vmatprep.subr.bf16.mxu0 0
      %4116 = vmatpush1.bf16.msra.mxu0 0
      %4117 = vmatprep.subr.bf16.mxu0 0
      %4118 = vmatpush1.bf16.msra.mxu0 0
      %4119 = vmatprep.subr.bf16.mxu0 0
      %4120 = vmatpush1.bf16.msra.mxu0 0
      %4121 = vmatprep.subr.bf16.mxu0 0
      %4122 = vmatpush1.bf16.msra.mxu0 0
      %4123 = vmatprep.subr.bf16.mxu0 0
      %4124 = vmatpush1.bf16.msra.mxu0 0
      %4125 = vmatprep.subr.bf16.mxu0 0
      %4126 = vmatpush1.bf16.msra.mxu0 0
      %4127 = vmatprep.subr.bf16.mxu0 0
      %4128 = vmatpush1.bf16.msra.mxu0 0
      %4129 = vmatprep.subr.bf16.mxu0 0
      %4130 = vmatpush1.bf16.msra.mxu0 0
      %4131 = vmatprep.subr.bf16.mxu0 0
      %4132 = vmatpush1.bf16.msra.mxu0 0
      %4133 = vmatprep.mubr.bf16.mxu0 0
      %4134 = vmatmul.mubr.bf16.gmra.mrb[0].mxu0 %v4096
      %v4135 = vpop.f32.mrb[0].mxu0
      %v4136 = vadd.f32 0.0, %v4135
      %v4137 = vpop.f32.mrb[0].mxu0
      %v4138 = vadd.f32 0.0, %v4137
      %v4139 = vpop.f32.mrb[0].mxu0
      %v4140 = vadd.f32 0.0, %v4139
      %v4141 = vpop.f32.mrb[0].mxu0
      %v4142 = vadd.f32 0.0, %v4141
      %4143 = vmatprep.mubr.bf16.mxu0 0
      %4144 = vmatmul.mubr.bf16.gmra.mrb[0].mxu0 %v4099
      %v4145 = vpop.f32.mrb[0].mxu0
      %v4146 = vadd.f32 0.0, %v4145
      %v4147 = vpop.f32.mrb[0].mxu0
      %v4148 = vadd.f32 0.0, %v4147
      %v4149 = vpop.f32.mrb[0].mxu0
      %v4150 = vadd.f32 0.0, %v4149
      %v4151 = vpop.f32.mrb[0].mxu0
      %v4152 = vadd.f32 0.0, %v4151
      %4153 = vdwg.mxu0
      %4154 = vmatprep.subr.bf16.mxu0 %v4084
      %4155 = vmatpush1.bf16.msra.mxu0 %v4083
      %4156 = vmatprep.subr.bf16.mxu0 0
      %4157 = vmatpush1.bf16.msra.mxu0 0
      %4158 = vmatprep.subr.bf16.mxu0 0
      %4159 = vmatpush1.bf16.msra.mxu0 0
      %4160 = vmatprep.subr.bf16.mxu0 0
      %4161 = vmatpush1.bf16.msra.mxu0 0
      %4162 = vmatprep.subr.bf16.mxu0 0
      %4163 = vmatpush1.bf16.msra.mxu0 0
      %4164 = vmatprep.subr.bf16.mxu0 0
      %4165 = vmatpush1.bf16.msra.mxu0 0
      %4166 = vmatprep.subr.bf16.mxu0 0
      %4167 = vmatpush1.bf16.msra.mxu0 0
      %4168 = vmatprep.subr.bf16.mxu0 0
      %4169 = vmatpush1.bf16.msra.mxu0 0
      %4170 = vmatprep.subr.bf16.mxu0 0
      %4171 = vmatpush1.bf16.msra.mxu0 0
      %4172 = vmatprep.subr.bf16.mxu0 0
      %4173 = vmatpush1.bf16.msra.mxu0 0
      %4174 = vmatprep.subr.bf16.mxu0 0
      %4175 = vmatpush1.bf16.msra.mxu0 0
      %4176 = vmatprep.subr.bf16.mxu0 0
      %4177 = vmatpush1.bf16.msra.mxu0 0
      %4178 = vmatprep.subr.bf16.mxu0 0
      %4179 = vmatpush1.bf16.msra.mxu0 0
      %4180 = vmatprep.subr.bf16.mxu0 0
      %4181 = vmatpush1.bf16.msra.mxu0 0
      %4182 = vmatprep.subr.bf16.mxu0 0
      %4183 = vmatpush1.bf16.msra.mxu0 0
      %4184 = vmatprep.subr.bf16.mxu0 0
      %4185 = vmatpush1.bf16.msra.mxu0 0
      %4186 = vmatprep.mubr.bf16.mxu0 0
      %4187 = vmatmul.mubr.bf16.gmra.mrb[0].mxu0 %v4096
      %v4188 = vpop.f32.mrb[0].mxu0
      %v4189 = vadd.f32 0.0, %v4188
      %v4190 = vpop.f32.mrb[0].mxu0
      %v4191 = vadd.f32 0.0, %v4190
      %v4192 = vpop.f32.mrb[0].mxu0
      %v4193 = vadd.f32 0.0, %v4192
      %v4194 = vpop.f32.mrb[0].mxu0
      %v4195 = vadd.f32 0.0, %v4194
      %4196 = vmatprep.mubr.bf16.mxu0 0
      %4197 = vmatmul.mubr.bf16.gmra.mrb[0].mxu0 %v4099
      %v4198 = vpop.f32.mrb[0].mxu0
      %v4199 = vadd.f32 0.0, %v4198
      %v4200 = vpop.f32.mrb[0].mxu0
      %v4201 = vadd.f32 0.0, %v4200
      %v4202 = vpop.f32.mrb[0].mxu0
      %v4203 = vadd.f32 0.0, %v4202
      %v4204 = vpop.f32.mrb[0].mxu0
      %v4205 = vadd.f32 0.0, %v4204
      %4206 = vdwg.mxu0
      %v4207 = vadd.f32 %v4033, %v4136
      %v4208 = vadd.f32 %v4034, %v4138
      %v4209 = vadd.f32 %v4035, %v4189
      %v4210 = vadd.f32 %v4036, %v4191
      %v4211 = vadd.f32 %v4037, %v4140
      %v4212 = vadd.f32 %v4038, %v4142
      %v4213 = vadd.f32 %v4039, %v4193
      %v4214 = vadd.f32 %v4040, %v4195
      %v4215 = vadd.f32 %v4041, %v4146
      %v4216 = vadd.f32 %v4042, %v4148
      %v4217 = vadd.f32 %v4043, %v4199
      %v4218 = vadd.f32 %v4044, %v4201
      %v4219 = vadd.f32 %v4045, %v4150
      %v4220 = vadd.f32 %v4046, %v4152
      %v4221 = vadd.f32 %v4047, %v4203
      %v4222 = vadd.f32 %v4048, %v4205
      %4223 = vrot.lane.b32.xlu0 %v1772, 113
      %v4224 = vpop.permute.xlu0 %4223
      %4225 = vrot.lane.b32.xlu0 %v1776, 113
      %v4226 = vpop.permute.xlu0 %4225
      %4227 = vrot.lane.b32.xlu0 %v1773, 113
      %v4228 = vpop.permute.xlu0 %4227
      %4229 = vrot.lane.b32.xlu0 %v1777, 113
      %v4230 = vpop.permute.xlu0 %4229
      %4231 = vrot.lane.b32.xlu0 %v1774, 113
      %v4232 = vpop.permute.xlu0 %4231
      %4233 = vrot.lane.b32.xlu0 %v1778, 113
      %v4234 = vpop.permute.xlu0 %4233
      %4235 = vrot.lane.b32.xlu0 %v1775, 113
      %v4236 = vpop.permute.xlu0 %4235
      %4237 = vrot.lane.b32.xlu0 %v1779, 113
      %v4238 = vpop.permute.xlu0 %4237
      %v4239 = vsel %vm1274, %v4232, %v4236
      %v4240 = vsel %vm1274, %v4234, %v4238
      %v4241 = vsel %vm1274, %v4228, %v4232
      %v4242 = vsel %vm1274, %v4230, %v4234
      %v4243 = vsel %vm1274, %v4224, %v4228
      %v4244 = vsel %vm1274, %v4226, %v4230
      %v4245 = vsel %vm1274, %v4236, %v4224
      %v4246 = vsel %vm1274, %v4238, %v4226
      %v4247 = vmul.f32 %v4243, %v1285
      %v4248 = vmul.f32 %v4241, %v1289
      %v4249 = vmul.f32 %v4239, %v1293
      %v4250 = vmul.f32 %v4245, %v1297
      %v4251 = vmul.f32 %v4244, %v1285
      %v4252 = vmul.f32 %v4242, %v1289
      %v4253 = vmul.f32 %v4240, %v1293
      %v4254 = vmul.f32 %v4246, %v1297
      %v4255 = vpack.c.bf16 %v4251, %v4247
      %v4256 = vpack.c.bf16 %v4252, %v4248
      %v4257 = vpack.c.bf16 %v4253, %v4249
      %v4258 = vpack.c.bf16 %v4254, %v4250
      %v4263 = vunpack.c.l.b16 %v3226
      %v4264 = vunpack.c.l.b16 %v3227
      %v4265 = vunpack.c.l.b16 %v3228
      %v4266 = vunpack.c.l.b16 %v3229
      %v4267 = vpack.c.b16 %v4264, %v4263
      %v4268 = vpack.c.b16 %v4266, %v4265
      %v4270 = vsel %vm3324, %v4267, 0
      %v4273 = vsel %vm3324, %v4268, 0
      %4275 = vmatprep.subr.bf16.mxu0 %v4256
      %4276 = vmatpush1.bf16.msra.mxu0 %v4255
      %4277 = vmatprep.subr.bf16.mxu0 0
      %4278 = vmatpush1.bf16.msra.mxu0 0
      %4279 = vmatprep.subr.bf16.mxu0 0
      %4280 = vmatpush1.bf16.msra.mxu0 0
      %4281 = vmatprep.subr.bf16.mxu0 0
      %4282 = vmatpush1.bf16.msra.mxu0 0
      %4283 = vmatprep.subr.bf16.mxu0 0
      %4284 = vmatpush1.bf16.msra.mxu0 0
      %4285 = vmatprep.subr.bf16.mxu0 0
      %4286 = vmatpush1.bf16.msra.mxu0 0
      %4287 = vmatprep.subr.bf16.mxu0 0
      %4288 = vmatpush1.bf16.msra.mxu0 0
      %4289 = vmatprep.subr.bf16.mxu0 0
      %4290 = vmatpush1.bf16.msra.mxu0 0
      %4291 = vmatprep.subr.bf16.mxu0 0
      %4292 = vmatpush1.bf16.msra.mxu0 0
      %4293 = vmatprep.subr.bf16.mxu0 0
      %4294 = vmatpush1.bf16.msra.mxu0 0
      %4295 = vmatprep.subr.bf16.mxu0 0
      %4296 = vmatpush1.bf16.msra.mxu0 0
      %4297 = vmatprep.subr.bf16.mxu0 0
      %4298 = vmatpush1.bf16.msra.mxu0 0
      %4299 = vmatprep.subr.bf16.mxu0 0
      %4300 = vmatpush1.bf16.msra.mxu0 0
      %4301 = vmatprep.subr.bf16.mxu0 0
      %4302 = vmatpush1.bf16.msra.mxu0 0
      %4303 = vmatprep.subr.bf16.mxu0 0
      %4304 = vmatpush1.bf16.msra.mxu0 0
      %4305 = vmatprep.subr.bf16.mxu0 0
      %4306 = vmatpush1.bf16.msra.mxu0 0
      %4307 = vmatprep.mubr.bf16.mxu0 0
      %4308 = vmatmul.mubr.bf16.gmra.mrb[0].mxu0 %v4270
      %v4309 = vpop.f32.mrb[0].mxu0
      %v4310 = vadd.f32 0.0, %v4309
      %v4311 = vpop.f32.mrb[0].mxu0
      %v4312 = vadd.f32 0.0, %v4311
      %v4313 = vpop.f32.mrb[0].mxu0
      %v4314 = vadd.f32 0.0, %v4313
      %v4315 = vpop.f32.mrb[0].mxu0
      %v4316 = vadd.f32 0.0, %v4315
      %4317 = vmatprep.mubr.bf16.mxu0 0
      %4318 = vmatmul.mubr.bf16.gmra.mrb[0].mxu0 %v4273
      %v4319 = vpop.f32.mrb[0].mxu0
      %v4320 = vadd.f32 0.0, %v4319
      %v4321 = vpop.f32.mrb[0].mxu0
      %v4322 = vadd.f32 0.0, %v4321
      %v4323 = vpop.f32.mrb[0].mxu0
      %v4324 = vadd.f32 0.0, %v4323
      %v4325 = vpop.f32.mrb[0].mxu0
      %v4326 = vadd.f32 0.0, %v4325
      %4327 = vdwg.mxu0
      %4328 = vmatprep.subr.bf16.mxu0 %v4258
      %4329 = vmatpush1.bf16.msra.mxu0 %v4257
      %4330 = vmatprep.subr.bf16.mxu0 0
      %4331 = vmatpush1.bf16.msra.mxu0 0
      %4332 = vmatprep.subr.bf16.mxu0 0
      %4333 = vmatpush1.bf16.msra.mxu0 0
      %4334 = vmatprep.subr.bf16.mxu0 0
      %4335 = vmatpush1.bf16.msra.mxu0 0
      %4336 = vmatprep.subr.bf16.mxu0 0
      %4337 = vmatpush1.bf16.msra.mxu0 0
      %4338 = vmatprep.subr.bf16.mxu0 0
      %4339 = vmatpush1.bf16.msra.mxu0 0
      %4340 = vmatprep.subr.bf16.mxu0 0
      %4341 = vmatpush1.bf16.msra.mxu0 0
      %4342 = vmatprep.subr.bf16.mxu0 0
      %4343 = vmatpush1.bf16.msra.mxu0 0
      %4344 = vmatprep.subr.bf16.mxu0 0
      %4345 = vmatpush1.bf16.msra.mxu0 0
      %4346 = vmatprep.subr.bf16.mxu0 0
      %4347 = vmatpush1.bf16.msra.mxu0 0
      %4348 = vmatprep.subr.bf16.mxu0 0
      %4349 = vmatpush1.bf16.msra.mxu0 0
      %4350 = vmatprep.subr.bf16.mxu0 0
      %4351 = vmatpush1.bf16.msra.mxu0 0
      %4352 = vmatprep.subr.bf16.mxu0 0
      %4353 = vmatpush1.bf16.msra.mxu0 0
      %4354 = vmatprep.subr.bf16.mxu0 0
      %4355 = vmatpush1.bf16.msra.mxu0 0
      %4356 = vmatprep.subr.bf16.mxu0 0
      %4357 = vmatpush1.bf16.msra.mxu0 0
      %4358 = vmatprep.subr.bf16.mxu0 0
      %4359 = vmatpush1.bf16.msra.mxu0 0
      %4360 = vmatprep.mubr.bf16.mxu0 0
      %4361 = vmatmul.mubr.bf16.gmra.mrb[0].mxu0 %v4270
      %v4362 = vpop.f32.mrb[0].mxu0
      %v4363 = vadd.f32 0.0, %v4362
      %v4364 = vpop.f32.mrb[0].mxu0
      %v4365 = vadd.f32 0.0, %v4364
      %v4366 = vpop.f32.mrb[0].mxu0
      %v4367 = vadd.f32 0.0, %v4366
      %v4368 = vpop.f32.mrb[0].mxu0
      %v4369 = vadd.f32 0.0, %v4368
      %4370 = vmatprep.mubr.bf16.mxu0 0
      %4371 = vmatmul.mubr.bf16.gmra.mrb[0].mxu0 %v4273
      %v4372 = vpop.f32.mrb[0].mxu0
      %v4373 = vadd.f32 0.0, %v4372
      %v4374 = vpop.f32.mrb[0].mxu0
      %v4375 = vadd.f32 0.0, %v4374
      %v4376 = vpop.f32.mrb[0].mxu0
      %v4377 = vadd.f32 0.0, %v4376
      %v4378 = vpop.f32.mrb[0].mxu0
      %v4379 = vadd.f32 0.0, %v4378
      %4380 = vdwg.mxu0
      %v4381 = vadd.f32 %v4207, %v4310
      %v4382 = vadd.f32 %v4208, %v4312
      %v4383 = vadd.f32 %v4209, %v4363
      %v4384 = vadd.f32 %v4210, %v4365
      %v4385 = vadd.f32 %v4211, %v4314
      %v4386 = vadd.f32 %v4212, %v4316
      %v4387 = vadd.f32 %v4213, %v4367
      %v4388 = vadd.f32 %v4214, %v4369
      %v4389 = vadd.f32 %v4215, %v4320
      %v4390 = vadd.f32 %v4216, %v4322
      %v4391 = vadd.f32 %v4217, %v4373
      %v4392 = vadd.f32 %v4218, %v4375
      %v4393 = vadd.f32 %v4219, %v4324
      %v4394 = vadd.f32 %v4220, %v4326
      %v4395 = vadd.f32 %v4221, %v4377
      %v4396 = vadd.f32 %v4222, %v4379
      %4397 = vrot.lane.b32.xlu0 %v1772, 112
      %v4398 = vpop.permute.xlu0 %4397
      %4399 = vrot.lane.b32.xlu0 %v1776, 112
      %v4400 = vpop.permute.xlu0 %4399
      %4401 = vrot.lane.b32.xlu0 %v1773, 112
      %v4402 = vpop.permute.xlu0 %4401
      %4403 = vrot.lane.b32.xlu0 %v1777, 112
      %v4404 = vpop.permute.xlu0 %4403
      %4405 = vrot.lane.b32.xlu0 %v1774, 112
      %v4406 = vpop.permute.xlu0 %4405
      %4407 = vrot.lane.b32.xlu0 %v1778, 112
      %v4408 = vpop.permute.xlu0 %4407
      %4409 = vrot.lane.b32.xlu0 %v1775, 112
      %v4410 = vpop.permute.xlu0 %4409
      %4411 = vrot.lane.b32.xlu0 %v1779, 112
      %v4412 = vpop.permute.xlu0 %4411
      %v4413 = vsel %vm1432, %v4406, %v4410
      %v4414 = vsel %vm1432, %v4408, %v4412
      %v4415 = vsel %vm1432, %v4402, %v4406
      %v4416 = vsel %vm1432, %v4404, %v4408
      %v4417 = vsel %vm1432, %v4398, %v4402
      %v4418 = vsel %vm1432, %v4400, %v4404
      %v4419 = vsel %vm1432, %v4410, %v4398
      %v4420 = vsel %vm1432, %v4412, %v4400
      %v4421 = vmul.f32 %v4417, %v1443
      %v4422 = vmul.f32 %v4415, %v1447
      %v4423 = vmul.f32 %v4413, %v1451
      %v4424 = vmul.f32 %v4419, %v1455
      %v4425 = vmul.f32 %v4418, %v1443
      %v4426 = vmul.f32 %v4416, %v1447
      %v4427 = vmul.f32 %v4414, %v1451
      %v4428 = vmul.f32 %v4420, %v1455
      %v4429 = vpack.c.bf16 %v4425, %v4421
      %v4430 = vpack.c.bf16 %v4426, %v4422
      %v4431 = vpack.c.bf16 %v4427, %v4423
      %v4432 = vpack.c.bf16 %v4428, %v4424
      %v4437 = vunpack.c.l.b16 %v3230
      %v4438 = vunpack.c.l.b16 %v3231
      %v4439 = vunpack.c.l.b16 %v3232
      %v4440 = vunpack.c.l.b16 %v3233
      %v4441 = vpack.c.b16 %v4438, %v4437
      %v4442 = vpack.c.b16 %v4440, %v4439
      %v4444 = vsel %vm3324, %v4441, 0
      %v4447 = vsel %vm3324, %v4442, 0
      %4449 = vmatprep.subr.bf16.mxu0 %v4430
      %4450 = vmatpush1.bf16.msra.mxu0 %v4429
      %4451 = vmatprep.subr.bf16.mxu0 0
      %4452 = vmatpush1.bf16.msra.mxu0 0
      %4453 = vmatprep.subr.bf16.mxu0 0
      %4454 = vmatpush1.bf16.msra.mxu0 0
      %4455 = vmatprep.subr.bf16.mxu0 0
      %4456 = vmatpush1.bf16.msra.mxu0 0
      %4457 = vmatprep.subr.bf16.mxu0 0
      %4458 = vmatpush1.bf16.msra.mxu0 0
      %4459 = vmatprep.subr.bf16.mxu0 0
      %4460 = vmatpush1.bf16.msra.mxu0 0
      %4461 = vmatprep.subr.bf16.mxu0 0
      %4462 = vmatpush1.bf16.msra.mxu0 0
      %4463 = vmatprep.subr.bf16.mxu0 0
      %4464 = vmatpush1.bf16.msra.mxu0 0
      %4465 = vmatprep.subr.bf16.mxu0 0
      %4466 = vmatpush1.bf16.msra.mxu0 0
      %4467 = vmatprep.subr.bf16.mxu0 0
      %4468 = vmatpush1.bf16.msra.mxu0 0
      %4469 = vmatprep.subr.bf16.mxu0 0
      %4470 = vmatpush1.bf16.msra.mxu0 0
      %4471 = vmatprep.subr.bf16.mxu0 0
      %4472 = vmatpush1.bf16.msra.mxu0 0
      %4473 = vmatprep.subr.bf16.mxu0 0
      %4474 = vmatpush1.bf16.msra.mxu0 0
      %4475 = vmatprep.subr.bf16.mxu0 0
      %4476 = vmatpush1.bf16.msra.mxu0 0
      %4477 = vmatprep.subr.bf16.mxu0 0
      %4478 = vmatpush1.bf16.msra.mxu0 0
      %4479 = vmatprep.subr.bf16.mxu0 0
      %4480 = vmatpush1.bf16.msra.mxu0 0
      %4481 = vmatprep.mubr.bf16.mxu0 0
      %4482 = vmatmul.mubr.bf16.gmra.mrb[0].mxu0 %v4444
      %v4483 = vpop.f32.mrb[0].mxu0
      %v4484 = vadd.f32 0.0, %v4483
      %v4485 = vpop.f32.mrb[0].mxu0
      %v4486 = vadd.f32 0.0, %v4485
      %v4487 = vpop.f32.mrb[0].mxu0
      %v4488 = vadd.f32 0.0, %v4487
      %v4489 = vpop.f32.mrb[0].mxu0
      %v4490 = vadd.f32 0.0, %v4489
      %4491 = vmatprep.mubr.bf16.mxu0 0
      %4492 = vmatmul.mubr.bf16.gmra.mrb[0].mxu0 %v4447
      %v4493 = vpop.f32.mrb[0].mxu0
      %v4494 = vadd.f32 0.0, %v4493
      %v4495 = vpop.f32.mrb[0].mxu0
      %v4496 = vadd.f32 0.0, %v4495
      %v4497 = vpop.f32.mrb[0].mxu0
      %v4498 = vadd.f32 0.0, %v4497
      %v4499 = vpop.f32.mrb[0].mxu0
      %v4500 = vadd.f32 0.0, %v4499
      %4501 = vdwg.mxu0
      %4502 = vmatprep.subr.bf16.mxu0 %v4432
      %4503 = vmatpush1.bf16.msra.mxu0 %v4431
      %4504 = vmatprep.subr.bf16.mxu0 0
      %4505 = vmatpush1.bf16.msra.mxu0 0
      %4506 = vmatprep.subr.bf16.mxu0 0
      %4507 = vmatpush1.bf16.msra.mxu0 0
      %4508 = vmatprep.subr.bf16.mxu0 0
      %4509 = vmatpush1.bf16.msra.mxu0 0
      %4510 = vmatprep.subr.bf16.mxu0 0
      %4511 = vmatpush1.bf16.msra.mxu0 0
      %4512 = vmatprep.subr.bf16.mxu0 0
      %4513 = vmatpush1.bf16.msra.mxu0 0
      %4514 = vmatprep.subr.bf16.mxu0 0
      %4515 = vmatpush1.bf16.msra.mxu0 0
      %4516 = vmatprep.subr.bf16.mxu0 0
      %4517 = vmatpush1.bf16.msra.mxu0 0
      %4518 = vmatprep.subr.bf16.mxu0 0
      %4519 = vmatpush1.bf16.msra.mxu0 0
      %4520 = vmatprep.subr.bf16.mxu0 0
      %4521 = vmatpush1.bf16.msra.mxu0 0
      %4522 = vmatprep.subr.bf16.mxu0 0
      %4523 = vmatpush1.bf16.msra.mxu0 0
      %4524 = vmatprep.subr.bf16.mxu0 0
      %4525 = vmatpush1.bf16.msra.mxu0 0
      %4526 = vmatprep.subr.bf16.mxu0 0
      %4527 = vmatpush1.bf16.msra.mxu0 0
      %4528 = vmatprep.subr.bf16.mxu0 0
      %4529 = vmatpush1.bf16.msra.mxu0 0
      %4530 = vmatprep.subr.bf16.mxu0 0
      %4531 = vmatpush1.bf16.msra.mxu0 0
      %4532 = vmatprep.subr.bf16.mxu0 0
      %4533 = vmatpush1.bf16.msra.mxu0 0
      %4534 = vmatprep.mubr.bf16.mxu0 0
      %4535 = vmatmul.mubr.bf16.gmra.mrb[0].mxu0 %v4444
      %v4536 = vpop.f32.mrb[0].mxu0
      %v4537 = vadd.f32 0.0, %v4536
      %v4538 = vpop.f32.mrb[0].mxu0
      %v4539 = vadd.f32 0.0, %v4538
      %v4540 = vpop.f32.mrb[0].mxu0
      %v4541 = vadd.f32 0.0, %v4540
      %v4542 = vpop.f32.mrb[0].mxu0
      %v4543 = vadd.f32 0.0, %v4542
      %4544 = vmatprep.mubr.bf16.mxu0 0
      %4545 = vmatmul.mubr.bf16.gmra.mrb[0].mxu0 %v4447
      %v4546 = vpop.f32.mrb[0].mxu0
      %v4547 = vadd.f32 0.0, %v4546
      %v4548 = vpop.f32.mrb[0].mxu0
      %v4549 = vadd.f32 0.0, %v4548
      %v4550 = vpop.f32.mrb[0].mxu0
      %v4551 = vadd.f32 0.0, %v4550
      %v4552 = vpop.f32.mrb[0].mxu0
      %v4553 = vadd.f32 0.0, %v4552
      %4554 = vdwg.mxu0
      %v4555 = vadd.f32 %v4381, %v4484
      %v4556 = vadd.f32 %v4382, %v4486
      %v4557 = vadd.f32 %v4383, %v4537
      %v4558 = vadd.f32 %v4384, %v4539
      %v4559 = vadd.f32 %v4385, %v4488
      %v4560 = vadd.f32 %v4386, %v4490
      %v4561 = vadd.f32 %v4387, %v4541
      %v4562 = vadd.f32 %v4388, %v4543
      %v4563 = vadd.f32 %v4389, %v4494
      %v4564 = vadd.f32 %v4390, %v4496
      %v4565 = vadd.f32 %v4391, %v4547
      %v4566 = vadd.f32 %v4392, %v4549
      %v4567 = vadd.f32 %v4393, %v4498
      %v4568 = vadd.f32 %v4394, %v4500
      %v4569 = vadd.f32 %v4395, %v4551
      %v4570 = vadd.f32 %v4396, %v4553
      %4571 = vrot.lane.b32.xlu0 %v1772, 111
      %v4572 = vpop.permute.xlu0 %4571
      %4573 = vrot.lane.b32.xlu0 %v1776, 111
      %v4574 = vpop.permute.xlu0 %4573
      %4575 = vrot.lane.b32.xlu0 %v1773, 111
      %v4576 = vpop.permute.xlu0 %4575
      %4577 = vrot.lane.b32.xlu0 %v1777, 111
      %v4578 = vpop.permute.xlu0 %4577
      %4579 = vrot.lane.b32.xlu0 %v1774, 111
      %v4580 = vpop.permute.xlu0 %4579
      %4581 = vrot.lane.b32.xlu0 %v1778, 111
      %v4582 = vpop.permute.xlu0 %4581
      %4583 = vrot.lane.b32.xlu0 %v1775, 111
      %v4584 = vpop.permute.xlu0 %4583
      %4585 = vrot.lane.b32.xlu0 %v1779, 111
      %v4586 = vpop.permute.xlu0 %4585
      %v4587 = vsel %vm1590, %v4580, %v4584
      %v4588 = vsel %vm1590, %v4582, %v4586
      %v4589 = vsel %vm1590, %v4576, %v4580
      %v4590 = vsel %vm1590, %v4578, %v4582
      %v4591 = vsel %vm1590, %v4572, %v4576
      %v4592 = vsel %vm1590, %v4574, %v4578
      %v4593 = vsel %vm1590, %v4584, %v4572
      %v4594 = vsel %vm1590, %v4586, %v4574
      %v4595 = vmul.f32 %v4591, %v1601
      %v4596 = vmul.f32 %v4589, %v1605
      %v4597 = vmul.f32 %v4587, %v1609
      %v4598 = vmul.f32 %v4593, %v1613
      %v4599 = vmul.f32 %v4592, %v1601
      %v4600 = vmul.f32 %v4590, %v1605
      %v4601 = vmul.f32 %v4588, %v1609
      %v4602 = vmul.f32 %v4594, %v1613
      %v4603 = vpack.c.bf16 %v4599, %v4595
      %v4604 = vpack.c.bf16 %v4600, %v4596
      %v4605 = vpack.c.bf16 %v4601, %v4597
      %v4606 = vpack.c.bf16 %v4602, %v4598
      %v4611 = vunpack.c.l.b16 %v3234
      %v4612 = vunpack.c.l.b16 %v3235
      %v4613 = vunpack.c.l.b16 %v3236
      %v4614 = vunpack.c.l.b16 %v3237
      %v4615 = vpack.c.b16 %v4612, %v4611
      %v4616 = vpack.c.b16 %v4614, %v4613
      %v4618 = vsel %vm3324, %v4615, 0
      %v4621 = vsel %vm3324, %v4616, 0
      %4623 = vmatprep.subr.bf16.mxu0 %v4604
      %4624 = vmatpush1.bf16.msra.mxu0 %v4603
      %4625 = vmatprep.subr.bf16.mxu0 0
      %4626 = vmatpush1.bf16.msra.mxu0 0
      %4627 = vmatprep.subr.bf16.mxu0 0
      %4628 = vmatpush1.bf16.msra.mxu0 0
      %4629 = vmatprep.subr.bf16.mxu0 0
      %4630 = vmatpush1.bf16.msra.mxu0 0
      %4631 = vmatprep.subr.bf16.mxu0 0
      %4632 = vmatpush1.bf16.msra.mxu0 0
      %4633 = vmatprep.subr.bf16.mxu0 0
      %4634 = vmatpush1.bf16.msra.mxu0 0
      %4635 = vmatprep.subr.bf16.mxu0 0
      %4636 = vmatpush1.bf16.msra.mxu0 0
      %4637 = vmatprep.subr.bf16.mxu0 0
      %4638 = vmatpush1.bf16.msra.mxu0 0
      %4639 = vmatprep.subr.bf16.mxu0 0
      %4640 = vmatpush1.bf16.msra.mxu0 0
      %4641 = vmatprep.subr.bf16.mxu0 0
      %4642 = vmatpush1.bf16.msra.mxu0 0
      %4643 = vmatprep.subr.bf16.mxu0 0
      %4644 = vmatpush1.bf16.msra.mxu0 0
      %4645 = vmatprep.subr.bf16.mxu0 0
      %4646 = vmatpush1.bf16.msra.mxu0 0
      %4647 = vmatprep.subr.bf16.mxu0 0
      %4648 = vmatpush1.bf16.msra.mxu0 0
      %4649 = vmatprep.subr.bf16.mxu0 0
      %4650 = vmatpush1.bf16.msra.mxu0 0
      %4651 = vmatprep.subr.bf16.mxu0 0
      %4652 = vmatpush1.bf16.msra.mxu0 0
      %4653 = vmatprep.subr.bf16.mxu0 0
      %4654 = vmatpush1.bf16.msra.mxu0 0
      %4655 = vmatprep.mubr.bf16.mxu0 0
      %4656 = vmatmul.mubr.bf16.gmra.mrb[0].mxu0 %v4618
      %v4657 = vpop.f32.mrb[0].mxu0
      %v4658 = vadd.f32 0.0, %v4657
      %v4659 = vpop.f32.mrb[0].mxu0
      %v4660 = vadd.f32 0.0, %v4659
      %v4661 = vpop.f32.mrb[0].mxu0
      %v4662 = vadd.f32 0.0, %v4661
      %v4663 = vpop.f32.mrb[0].mxu0
      %v4664 = vadd.f32 0.0, %v4663
      %4665 = vmatprep.mubr.bf16.mxu0 0
      %4666 = vmatmul.mubr.bf16.gmra.mrb[0].mxu0 %v4621
      %v4667 = vpop.f32.mrb[0].mxu0
      %v4668 = vadd.f32 0.0, %v4667
      %v4669 = vpop.f32.mrb[0].mxu0
      %v4670 = vadd.f32 0.0, %v4669
      %v4671 = vpop.f32.mrb[0].mxu0
      %v4672 = vadd.f32 0.0, %v4671
      %v4673 = vpop.f32.mrb[0].mxu0
      %v4674 = vadd.f32 0.0, %v4673
      %4675 = vdwg.mxu0
      %4676 = vmatprep.subr.bf16.mxu0 %v4606
      %4677 = vmatpush1.bf16.msra.mxu0 %v4605
      %4678 = vmatprep.subr.bf16.mxu0 0
      %4679 = vmatpush1.bf16.msra.mxu0 0
      %4680 = vmatprep.subr.bf16.mxu0 0
      %4681 = vmatpush1.bf16.msra.mxu0 0
      %4682 = vmatprep.subr.bf16.mxu0 0
      %4683 = vmatpush1.bf16.msra.mxu0 0
      %4684 = vmatprep.subr.bf16.mxu0 0
      %4685 = vmatpush1.bf16.msra.mxu0 0
      %4686 = vmatprep.subr.bf16.mxu0 0
      %4687 = vmatpush1.bf16.msra.mxu0 0
      %4688 = vmatprep.subr.bf16.mxu0 0
      %4689 = vmatpush1.bf16.msra.mxu0 0
      %4690 = vmatprep.subr.bf16.mxu0 0
      %4691 = vmatpush1.bf16.msra.mxu0 0
      %4692 = vmatprep.subr.bf16.mxu0 0
      %4693 = vmatpush1.bf16.msra.mxu0 0
      %4694 = vmatprep.subr.bf16.mxu0 0
      %4695 = vmatpush1.bf16.msra.mxu0 0
      %4696 = vmatprep.subr.bf16.mxu0 0
      %4697 = vmatpush1.bf16.msra.mxu0 0
      %4698 = vmatprep.subr.bf16.mxu0 0
      %4699 = vmatpush1.bf16.msra.mxu0 0
      %4700 = vmatprep.subr.bf16.mxu0 0
      %4701 = vmatpush1.bf16.msra.mxu0 0
      %4702 = vmatprep.subr.bf16.mxu0 0
      %4703 = vmatpush1.bf16.msra.mxu0 0
      %4704 = vmatprep.subr.bf16.mxu0 0
      %4705 = vmatpush1.bf16.msra.mxu0 0
      %4706 = vmatprep.subr.bf16.mxu0 0
      %4707 = vmatpush1.bf16.msra.mxu0 0
      %4708 = vmatprep.mubr.bf16.mxu0 0
      %4709 = vmatmul.mubr.bf16.gmra.mrb[0].mxu0 %v4618
      %v4710 = vpop.f32.mrb[0].mxu0
      %v4711 = vadd.f32 0.0, %v4710
      %v4712 = vpop.f32.mrb[0].mxu0
      %v4713 = vadd.f32 0.0, %v4712
      %v4714 = vpop.f32.mrb[0].mxu0
      %v4715 = vadd.f32 0.0, %v4714
      %v4716 = vpop.f32.mrb[0].mxu0
      %v4717 = vadd.f32 0.0, %v4716
      %4718 = vmatprep.mubr.bf16.mxu0 0
      %4719 = vmatmul.mubr.bf16.gmra.mrb[0].mxu0 %v4621
      %v4720 = vpop.f32.mrb[0].mxu0
      %v4721 = vadd.f32 0.0, %v4720
      %v4722 = vpop.f32.mrb[0].mxu0
      %v4723 = vadd.f32 0.0, %v4722
      %v4724 = vpop.f32.mrb[0].mxu0
      %v4725 = vadd.f32 0.0, %v4724
      %v4726 = vpop.f32.mrb[0].mxu0
      %v4727 = vadd.f32 0.0, %v4726
      %4728 = vdwg.mxu0
      %v4729 = vadd.f32 %v4555, %v4658
      %v4730 = vadd.f32 %v4556, %v4660
      %v4731 = vadd.f32 %v4557, %v4711
      %v4732 = vadd.f32 %v4558, %v4713
      %v4733 = vadd.f32 %v4559, %v4662
      %v4734 = vadd.f32 %v4560, %v4664
      %v4735 = vadd.f32 %v4561, %v4715
      %v4736 = vadd.f32 %v4562, %v4717
      %v4737 = vadd.f32 %v4563, %v4668
      %v4738 = vadd.f32 %v4564, %v4670
      %v4739 = vadd.f32 %v4565, %v4721
      %v4740 = vadd.f32 %v4566, %v4723
      %v4741 = vadd.f32 %v4567, %v4672
      %v4742 = vadd.f32 %v4568, %v4674
      %v4743 = vadd.f32 %v4569, %v4725
      %v4744 = vadd.f32 %v4570, %v4727
      %4746 = vset.pattern.permute.xlu0 0
      %4747 = vperm.xlu0 %4746, %v3238
      %v4748 = vpop.permute.xlu0 %4747
      %4751 = vset.pattern.permute.xlu0 0
      %4752 = vperm.xlu0 %4751, %v3239
      %v4753 = vpop.permute.xlu0 %4752
      %4756 = vset.pattern.permute.xlu0 0
      %4757 = vperm.xlu0 %4756, %v3240
      %v4758 = vpop.permute.xlu0 %4757
      %4761 = vset.pattern.permute.xlu0 0
      %4762 = vperm.xlu0 %4761, %v3241
      %v4763 = vpop.permute.xlu0 %4762
      %v4765 = vadd.f32 %v4729, %v4748
      %v4766 = vadd.f32 %v4730, %v4748
      %v4767 = vadd.f32 %v4731, %v4748
      %v4768 = vadd.f32 %v4732, %v4748
      %v4769 = vadd.f32 %v4733, %v4753
      %v4770 = vadd.f32 %v4734, %v4753
      %v4771 = vadd.f32 %v4735, %v4753
      %v4772 = vadd.f32 %v4736, %v4753
      %v4773 = vadd.f32 %v4737, %v4758
      %v4774 = vadd.f32 %v4738, %v4758
      %v4775 = vadd.f32 %v4739, %v4758
      %v4776 = vadd.f32 %v4740, %v4758
      %v4777 = vadd.f32 %v4741, %v4763
      %v4778 = vadd.f32 %v4742, %v4763
      %v4779 = vadd.f32 %v4743, %v4763
      %v4780 = vadd.f32 %v4744, %v4763
      %v4781 = vadd.f32 %v4765, %v4773
      %v4782 = vadd.f32 %v4766, %v4774
      %v4783 = vadd.f32 %v4767, %v4775
      %v4784 = vadd.f32 %v4768, %v4776
      %v4785 = vadd.f32 %v4769, %v4777
      %v4786 = vadd.f32 %v4770, %v4778
      %v4787 = vadd.f32 %v4771, %v4779
      %v4788 = vadd.f32 %v4772, %v4780
      %4789 = vst [vmem:[%s340] sm:$0xff] %v4781
      %4790 = vst [vmem:[%s340 + $0x8] sm:$0xff] %v4782
      %4791 = vst [vmem:[%s340 + $0x10] sm:$0xff] %v4783
      %4792 = vst [vmem:[%s340 + $0x18] sm:$0xff] %v4784
      %4793 = vst [vmem:[%s340 + $0x20] sm:$0xff] %v4785
      %4794 = vst [vmem:[%s340 + $0x28] sm:$0xff] %v4786
      %4795 = vst [vmem:[%s340 + $0x30] sm:$0xff] %v4787
      %4796 = vst [vmem:[%s340 + $0x38] sm:$0xff] %v4788
      %4797 = vst [vmem:[%s345] sm:$0xff] %v4773
      %4798 = vst [vmem:[%s345 + $0x8] sm:$0xff] %v4774
      %4799 = vst [vmem:[%s345 + $0x10] sm:$0xff] %v4775
      %4800 = vst [vmem:[%s345 + $0x18] sm:$0xff] %v4776
      %4801 = vst [vmem:[%s345 + $0x20] sm:$0xff] %v4777
      %4802 = vst [vmem:[%s345 + $0x28] sm:$0xff] %v4778
      %4803 = vst [vmem:[%s345 + $0x30] sm:$0xff] %v4779
      %4804 = vst [vmem:[%s345 + $0x38] sm:$0xff] %v4780
      %p4805 = scmp.lt.s32.totalorder %s21, 1
      %s4806 = scalar_select %p4805, %s21, 1
      %s4807 = smul.addr %s4806, 8
      %s4808 = smul.addr %s4807, 8
      %s4809 = scalar_lea.vmem %s8, %s4808
      %p4810 = scmp.lt.s32.totalorder %s21, 1
      %s4811 = scalar_select %p4810, %s21, 1
      %s4812 = smul.addr %s4811, 8
      %s4813 = smul.addr %s4812, 8
      %s4814 = scalar_lea.vmem %s9, %s4813
      // Predicated region
      $region60: #{etds_forward.1} parent=51 // pred_check
        %p4815 = pneg %p212
      $region61: #{etds_forward.1} parent=51 // pred_check_branch
        %4817 = sbr.rel (%p4815) target = $region63
      $region62: #{etds_forward.1} parent=51 // pred_region
        _
      $region63: #{etds_forward.1} parent=51 // pred_fallthru
        _
      // Predicated region
      $region64: #{etds_forward.1} parent=51 // pred_check
        %p4818 = pneg %p238
      $region65: #{etds_forward.1} parent=51 // pred_check_branch
        %4820 = sbr.rel (%p4818) target = $region67
      $region66: #{etds_forward.1} parent=51 // pred_region
        _
      $region67: #{etds_forward.1} parent=51 // pred_fallthru
        _
    $region52: #{etds_forward.1} parent=5 // pred_fallthru
      _
    %p4821 = scmp.le.s32.totalorder 2, %s16
    // Predicated region
    $region68: #{etds_forward.1} parent=5 // pred_check
      %p4822 = pneg %p4821
    $region69: #{etds_forward.1} parent=5 // pred_check_branch
      %4824 = sbr.rel (%p4822) target = $region71
    $region70: #{etds_forward.1} parent=5 // pred_region
      %s4825 = ssub.s32 %s16, 2
      // Predicated region
      $region72: #{etds_forward.1} parent=70 // pred_check
        %p4826 = pneg %p218
      $region73: #{etds_forward.1} parent=70 // pred_check_branch
        %4828 = sbr.rel (%p4826) target = $region75
      $region74: #{etds_forward.1} parent=70 // pred_region
        %p4829 = scmp.lt.s32.totalorder %s22, 1
        %s4830 = scalar_select %p4829, %s22, 1
        %s4831 = smul.addr %s4830, 8
        %s4832 = smul.addr %s4831, 8
        %s4833 = scalar_lea.vmem %s8, %s4832
      $region75: #{etds_forward.1} parent=70 // pred_fallthru
        _
      // Predicated region
      $region76: #{etds_forward.1} parent=70 // pred_check
        %p4834 = pneg %p244
      $region77: #{etds_forward.1} parent=70 // pred_check_branch
        %4836 = sbr.rel (%p4834) target = $region79
      $region78: #{etds_forward.1} parent=70 // pred_region
        %p4837 = scmp.lt.s32.totalorder %s22, 1
        %s4838 = scalar_select %p4837, %s22, 1
        %s4839 = smul.addr %s4838, 8
        %s4840 = smul.addr %s4839, 8
        %s4841 = scalar_lea.vmem %s9, %s4840
      $region79: #{etds_forward.1} parent=70 // pred_fallthru
        _
    $region71: #{etds_forward.1} parent=5 // pred_fallthru
      _
  $region6: #{etds_forward.1} parent=0 // loop_footer
    %s20 = sadd.s32 1, %s16
  $region7: #{etds_forward.1} parent=0 // loop_footer_branch
    %15 = sbr.rel target = $region3
  $region8: #{etds_forward.1} parent=0 // loop_exit
    _

</llo_original>
